<compile_context>
chip_gen: v6e
topology: v6e:2x2x1
jax: 0.10.0
libtpu: 0.0.40
codegen_flags: <defaults>
</compile_context>

<pallas_src>
import functools

import jax
import jax.numpy as jnp
from jax.experimental import pallas as pl
from jax.experimental.pallas import tpu as pltpu

BN_EPS = 1e-5
C1P = 128          # conv1 out channels, 10  -> padded to 128 lanes
C2P = 128          # conv2 out channels, 64  -> padded to 128 lanes
C2R = 64           # conv2 real channels (fc1 contracts only these)
HP = 128           # fc1 hidden,         100 -> padded to 128 lanes
OP = 128           # fc2 out,             10 -> padded to 128 lanes
S2 = 49            # 7x7 spatial positions after conv2
VMEM_LIMIT = 32 * 1024 * 1024   # <= 48 MiB so it is also valid on v7x


# ---------------------------------------------------------------------------
# Single fused kernel: conv1 + BN1 + ReLU + conv2 + BN2 + ReLU + fc1 + ReLU + fc2
# ---------------------------------------------------------------------------
def _net_kernel(p_ref, w1_ref, g1_ref, be1_ref, w2_ref, g2_ref, be2_ref,
                fw1_ref, fb1_ref, fw2_ref, fb2_ref, o_ref, z2_ref,
                *, batch, n1, n2):
    # conv1 as a block-diagonal matmul (bf16 operands, f32 accumulation).
    # rows = (ho7, wo7, b); wide lanes = (kh2, kw2, c1).
    y1 = jnp.dot(p_ref[...], w1_ref[...], preferred_element_type=jnp.float32)

    # BN1 (training / batch stats): one pass of sum + sum-of-squares, pooled
    # over the 4 (kh2, kw2) lane groups, folded to z = y*a + c.
    s = jnp.sum(y1, axis=0, keepdims=True)                      # (1, 4*C1P)
    q = jnp.sum(y1 * y1, axis=0, keepdims=True)
    s = s[:, 0:C1P] + s[:, C1P:2 * C1P] + s[:, 2 * C1P:3 * C1P] + s[:, 3 * C1P:4 * C1P]
    q = q[:, 0:C1P] + q[:, C1P:2 * C1P] + q[:, 2 * C1P:3 * C1P] + q[:, 3 * C1P:4 * C1P]
    mu = s * (1.0 / n1)
    var = q * (1.0 / n1) - mu * mu                              # biased var (PyTorch norm path)
    a1 = g1_ref[...] * jax.lax.rsqrt(var + BN_EPS)              # (1, C1P)
    c1 = be1_ref[...] - mu * a1
    aw = jnp.concatenate([a1, a1, a1, a1], axis=1)              # widen to (1, 4*C1P)
    cw = jnp.concatenate([c1, c1, c1, c1], axis=1)
    # z1 produced directly in bf16 (conv2 MXU operand; fewer f32 VALU passes).
    z1 = jnp.maximum(y1 * aw + cw, 0.0).astype(jnp.bfloat16)

    # conv2: contraction over the wide lane dim -> one (M, 512)@(512, 128) matmul.
    y2 = jnp.dot(z1, w2_ref[...], preferred_element_type=jnp.float32)

    # BN2 + ReLU, same folded form; z2 kept in VMEM scratch as bf16.
    s2 = jnp.sum(y2, axis=0, keepdims=True)
    q2 = jnp.sum(y2 * y2, axis=0, keepdims=True)
    mu2 = s2 * (1.0 / n2)
    var2 = q2 * (1.0 / n2) - mu2 * mu2
    a2 = g2_ref[...] * jax.lax.rsqrt(var2 + BN_EPS)
    c2 = be2_ref[...] - mu2 * a2
    z2_ref[...] = jnp.maximum(y2 * a2 + c2, 0.0).astype(jnp.bfloat16)

    # fc1: contraction over (spatial, channel) as 49 accumulated
    # (B, 64)@(64, HP) dots (rows are spatial-major so each slice is a
    # contiguous row block); avoids the (B*49,128)->(B,6272) relayout.
    h = jnp.zeros((batch, HP), jnp.float32)
    for sidx in range(S2):
        zs = z2_ref[sidx * batch:(sidx + 1) * batch, 0:C2R]     # (B, 64) bf16
        h = h + jnp.dot(zs, fw1_ref[sidx], preferred_element_type=jnp.float32)
    h = jnp.maximum(h + fb1_ref[...], 0.0).astype(jnp.bfloat16)

    # fc2
    o_ref[...] = (jnp.dot(h, fw2_ref[...], preferred_element_type=jnp.float32)
                  + fb2_ref[...])


# ---------------------------------------------------------------------------
# Wrapper (single grid point; everything fits comfortably in VMEM at small B)
# ---------------------------------------------------------------------------
def _spec(shape):
    return pl.BlockSpec(shape, lambda i, _s=shape: (0,) * len(_s))


def fused_net(p1w, w1bd, g1, be1, w2s, g2, be2, fw1, fb1, fw2, fb2, *, batch):
    m = p1w.shape[0]                                            # 49 * batch
    kernel = functools.partial(_net_kernel, batch=batch,
                               n1=float(4 * m), n2=float(m))
    args = (p1w, w1bd, g1, be1, w2s, g2, be2, fw1, fb1, fw2, fb2)
    flops = 2 * (m * 16 * 4 * C1P + m * 4 * C1P * C2P
                 + batch * S2 * C2R * HP + batch * HP * OP)
    bytes_accessed = (sum(int(a.size) * a.dtype.itemsize for a in args)
                      + batch * OP * 4)
    # TODO(synk): for large batch, add an M (row) grid axis with a two-pass BN
    # (sum/sumsq accumulation pass, then apply + conv2 + fc1 pass), mark it
    # "parallel" so v7x's 2 TensorCores split the work, and tile the fc rows;
    # a single monolithic block is the right shape only at small/demo batch.
    return pl.pallas_call(
        kernel,
        out_shape=jax.ShapeDtypeStruct((batch, OP), jnp.float32),
        grid=(1,),
        in_specs=[_spec(a.shape) for a in args],
        out_specs=_spec((batch, OP)),
        scratch_shapes=[pltpu.VMEM((m, C2P), jnp.bfloat16)],
        compiler_params=pltpu.CompilerParams(
            dimension_semantics=("arbitrary",),
            vmem_limit_bytes=VMEM_LIMIT),
        cost_estimate=pl.CostEstimate(flops=flops,
                                      transcendentals=C1P + C2P,
                                      bytes_accessed=bytes_accessed),
    )(*args)


# ---------------------------------------------------------------------------
# Plain-JAX glue (trace-time layout plumbing only)
# ---------------------------------------------------------------------------
def net_forward(x_nchw, params):
    B = x_nchw.shape[0]
    x = jnp.transpose(x_nchw, (0, 2, 3, 1)).astype(jnp.float32)  # NHWC (B,28,28,1)

    # Joint im2col for both stride-2 / k=2 convs:
    # rows = (ho7, wo7, b)   (spatial-major so fc1 slices contiguous row blocks)
    # lanes = (kh2, kw2, kh1, kw1, c=1)  -> (49*B, 16)
    x8 = x.reshape(B, 7, 2, 2, 7, 2, 2, 1)      # (b, ho, kh2, kh1, wo, kw2, kw1, c)
    p1w = (x8.transpose(1, 4, 0, 2, 5, 3, 6, 7)
             .reshape(S2 * B, 16).astype(jnp.bfloat16))

    out = fused_net(p1w, params["w1bd"], params["g1"], params["be1"],
                    params["w2s"], params["g2"], params["be2"],
                    params["fw1"], params["fb1"], params["fw2"], params["fb2"],
                    batch=B)
    return out[:, :10]


def init_params(key):
    ks = jax.random.split(key, 6)

    def u(k, shape, fan_in):
        bound = 1.0 / jnp.sqrt(fan_in)
        return jax.random.uniform(k, shape, jnp.float32, -bound, bound)

    # conv1: OIHW (10,1,2,2). Bias dropped (exactly cancelled by BN1 batch mean).
    w1_oihw = u(ks[0], (10, 1, 2, 2), 1 * 2 * 2)
    w1 = w1_oihw.reshape(10, 4).T                               # (4, 10), rows=(kh1,kw1)
    w1p = jnp.zeros((4, C1P), jnp.float32).at[:, :10].set(w1)
    w1bd = jnp.zeros((16, 4 * C1P), jnp.float32)
    for j in range(4):                                          # block-diagonal, j=(kh2,kw2)
        w1bd = w1bd.at[j * 4:(j + 1) * 4, j * C1P:(j + 1) * C1P].set(w1p)
    w1bd = w1bd.astype(jnp.bfloat16)

    # conv2: OIHW (64,10,2,2) -> rows ordered (kh2, kw2, cin_padded). Bias dropped.
    w2_oihw = u(ks[1], (64, 10, 2, 2), 10 * 2 * 2)
    w2_t = w2_oihw.transpose(2, 3, 1, 0).reshape(4, 10, 64)     # (kh, kw, cin, cout)
    w2s = jnp.zeros((4, C1P, C2P), jnp.float32).at[:, :10, :64].set(w2_t)
    w2s = w2s.reshape(4 * C1P, C2P).astype(jnp.bfloat16)

    # BN affine params (gamma=1, beta=0 on real channels; 0 on padding lanes).
    g1 = jnp.zeros((1, C1P), jnp.float32).at[:, :10].set(1.0)
    be1 = jnp.zeros((1, C1P), jnp.float32)
    g2 = jnp.zeros((1, C2P), jnp.float32).at[:, :64].set(1.0)
    be2 = jnp.zeros((1, C2P), jnp.float32)

    # fc1: torch weight (100, 3136), columns in NCHW-flatten order (c, h, w).
    # Re-ordered to (s=(h,w), c_real, out), padded ONLY on the output lanes,
    # stored bf16 -> (49, 64, 128), ~half the previous fw1 HBM transfer.
    fw1_t = u(ks[2], (100, 64 * 7 * 7), 64 * 7 * 7)
    fb1_t = u(ks[3], (100,), 64 * 7 * 7)
    fw1_v = fw1_t.reshape(100, 64, 7, 7).transpose(2, 3, 1, 0).reshape(S2, C2R, 100)
    fw1 = (jnp.zeros((S2, C2R, HP), jnp.float32).at[:, :, :100].set(fw1_v)
           .astype(jnp.bfloat16))
    fb1 = jnp.zeros((1, HP), jnp.float32).at[:, :100].set(fb1_t)

    # fc2: torch weight (10, 100).
    fw2_t = u(ks[4], (10, 100), 100)
    fb2_t = u(ks[5], (10,), 100)
    fw2 = (jnp.zeros((HP, OP), jnp.float32).at[:100, :10].set(fw2_t.T)
           .astype(jnp.bfloat16))
    fb2 = jnp.zeros((1, OP), jnp.float32).at[:, :10].set(fb2_t)

    # TODO(synk): BatchNorm running_mean/running_var buffers are not tracked
    # (forward uses training-mode batch statistics, matching the nn.Module);
    # an eval-mode forward would need the dropped conv biases and running stats.
    return dict(w1bd=w1bd, g1=g1, be1=be1, w2s=w2s, g2=g2, be2=be2,
                fw1=fw1, fb1=fb1, fw2=fw2, fb2=fb2)


if __name__ == "__main__":
    key = jax.random.PRNGKey(0)
    k_x, k_p = jax.random.split(key)
    # Input implied by fc1 = Linear(64*7*7, 100): (B, 1, 28, 28); small batch.
    x = jax.random.normal(k_x, (2, 1, 28, 28), dtype=jnp.float32)
    params = init_params(k_p)

    out = jax.jit(net_forward)(x, params)
    out = jax.block_until_ready(out)
    assert out.shape == (2, 10), out.shape
    print("KERNEL_OK")
</pallas_src>

<mosaic_0001>
module attributes {stable_mosaic.version = 11 : i64} {
  func.func @_net_kernel(%arg0: i32, %arg1: memref<98x16xbf16, #tpu.memory_space<vmem>>, %arg2: memref<16x512xbf16, #tpu.memory_space<vmem>>, %arg3: memref<1x128xf32, #tpu.memory_space<vmem>>, %arg4: memref<1x128xf32, #tpu.memory_space<vmem>>, %arg5: memref<512x128xbf16, #tpu.memory_space<vmem>>, %arg6: memref<1x128xf32, #tpu.memory_space<vmem>>, %arg7: memref<1x128xf32, #tpu.memory_space<vmem>>, %arg8: memref<49x64x128xbf16, #tpu.memory_space<vmem>>, %arg9: memref<1x128xf32, #tpu.memory_space<vmem>>, %arg10: memref<128x128xbf16, #tpu.memory_space<vmem>>, %arg11: memref<1x128xf32, #tpu.memory_space<vmem>>, %arg12: memref<2x128xf32, #tpu.memory_space<vmem>>, %arg13: memref<98x128xbf16, #tpu.memory_space<vmem>>) attributes {dimension_semantics = [#tpu.dimension_semantics<arbitrary>], iteration_bounds = array<i64: 1>, scalar_prefetch = 0 : i64, scratch_operands = 1 : i64, tpu.core_type = #tpu.core_type<tc>, window_params = [{pipeline_mode = #tpu.pipeline_mode<synchronous>, transform_indices = @transform_0, window_bounds = array<i64: 98, 16>}, {pipeline_mode = #tpu.pipeline_mode<synchronous>, transform_indices = @transform_1, window_bounds = array<i64: 16, 512>}, {pipeline_mode = #tpu.pipeline_mode<synchronous>, transform_indices = @transform_2, window_bounds = array<i64: 1, 128>}, {pipeline_mode = #tpu.pipeline_mode<synchronous>, transform_indices = @transform_3, window_bounds = array<i64: 1, 128>}, {pipeline_mode = #tpu.pipeline_mode<synchronous>, transform_indices = @transform_4, window_bounds = array<i64: 512, 128>}, {pipeline_mode = #tpu.pipeline_mode<synchronous>, transform_indices = @transform_5, window_bounds = array<i64: 1, 128>}, {pipeline_mode = #tpu.pipeline_mode<synchronous>, transform_indices = @transform_6, window_bounds = array<i64: 1, 128>}, {pipeline_mode = #tpu.pipeline_mode<synchronous>, transform_indices = @transform_7, window_bounds = array<i64: 49, 64, 128>}, {pipeline_mode = #tpu.pipeline_mode<synchronous>, transform_indices = @transform_8, window_bounds = array<i64: 1, 128>}, {pipeline_mode = #tpu.pipeline_mode<synchronous>, transform_indices = @transform_9, window_bounds = array<i64: 128, 128>}, {pipeline_mode = #tpu.pipeline_mode<synchronous>, transform_indices = @transform_10, window_bounds = array<i64: 1, 128>}, {pipeline_mode = #tpu.pipeline_mode<synchronous>, transform_indices = @transform_11, window_bounds = array<i64: 2, 128>}]} {
    %c0 = arith.constant 0 : index
    %c0_0 = arith.constant 0 : index
    %0 = vector.load %arg1[%c0, %c0_0] : memref<98x16xbf16, #tpu.memory_space<vmem>>, vector<98x16xbf16>
    %c0_1 = arith.constant 0 : index
    %c0_2 = arith.constant 0 : index
    %1 = vector.load %arg2[%c0_1, %c0_2] : memref<16x512xbf16, #tpu.memory_space<vmem>>, vector<16x512xbf16>
    %cst = arith.constant dense<0.000000e+00> : vector<98x512xf32>
    %2 = tpu.matmul %0, %1, %cst {dimension_numbers = #tpu.dot_dimension_numbers<[1], [0], [0], [1], [0, 0, 1, 1], [], []>} : vector<98x16xbf16>, vector<16x512xbf16>, vector<98x512xf32> -> vector<98x512xf32>
    %cst_3 = arith.constant dense<0.000000e+00> : vector<512xf32>
    %3 = vector.multi_reduction <add>, %2, %cst_3 [0] : vector<98x512xf32> to vector<512xf32>
    %4 = vector.shape_cast %3 : vector<512xf32> to vector<1x512xf32>
    %5 = arith.mulf %2, %2 : vector<98x512xf32>
    %cst_4 = arith.constant dense<0.000000e+00> : vector<512xf32>
    %6 = vector.multi_reduction <add>, %5, %cst_4 [0] : vector<98x512xf32> to vector<512xf32>
    %7 = vector.shape_cast %6 : vector<512xf32> to vector<1x512xf32>
    %8 = vector.extract_strided_slice %4 {offsets = [0, 0], sizes = [1, 128], strides = [1, 1]} : vector<1x512xf32> to vector<1x128xf32>
    %9 = vector.extract_strided_slice %4 {offsets = [0, 128], sizes = [1, 128], strides = [1, 1]} : vector<1x512xf32> to vector<1x128xf32>
    %10 = arith.addf %8, %9 : vector<1x128xf32>
    %11 = vector.extract_strided_slice %4 {offsets = [0, 256], sizes = [1, 128], strides = [1, 1]} : vector<1x512xf32> to vector<1x128xf32>
    %12 = arith.addf %10, %11 : vector<1x128xf32>
    %13 = vector.extract_strided_slice %4 {offsets = [0, 384], sizes = [1, 128], strides = [1, 1]} : vector<1x512xf32> to vector<1x128xf32>
    %14 = arith.addf %12, %13 : vector<1x128xf32>
    %15 = vector.extract_strided_slice %7 {offsets = [0, 0], sizes = [1, 128], strides = [1, 1]} : vector<1x512xf32> to vector<1x128xf32>
    %16 = vector.extract_strided_slice %7 {offsets = [0, 128], sizes = [1, 128], strides = [1, 1]} : vector<1x512xf32> to vector<1x128xf32>
    %17 = arith.addf %15, %16 : vector<1x128xf32>
    %18 = vector.extract_strided_slice %7 {offsets = [0, 256], sizes = [1, 128], strides = [1, 1]} : vector<1x512xf32> to vector<1x128xf32>
    %19 = arith.addf %17, %18 : vector<1x128xf32>
    %20 = vector.extract_strided_slice %7 {offsets = [0, 384], sizes = [1, 128], strides = [1, 1]} : vector<1x512xf32> to vector<1x128xf32>
    %21 = arith.addf %19, %20 : vector<1x128xf32>
    %cst_5 = arith.constant 0.00255102036 : f32
    %22 = vector.broadcast %cst_5 : f32 to vector<1x128xf32>
    %23 = arith.mulf %14, %22 : vector<1x128xf32>
    %cst_6 = arith.constant 0.00255102036 : f32
    %24 = vector.broadcast %cst_6 : f32 to vector<1x128xf32>
    %25 = arith.mulf %21, %24 : vector<1x128xf32>
    %26 = arith.mulf %23, %23 : vector<1x128xf32>
    %27 = arith.subf %25, %26 : vector<1x128xf32>
    %c0_7 = arith.constant 0 : index
    %c0_8 = arith.constant 0 : index
    %28 = vector.load %arg3[%c0_7, %c0_8] : memref<1x128xf32, #tpu.memory_space<vmem>>, vector<1x128xf32>
    %cst_9 = arith.constant 9.99999974E-6 : f32
    %29 = vector.broadcast %cst_9 : f32 to vector<1x128xf32>
    %30 = arith.addf %27, %29 : vector<1x128xf32>
    %31 = math.rsqrt %30 : vector<1x128xf32>
    %32 = arith.mulf %28, %31 : vector<1x128xf32>
    %c0_10 = arith.constant 0 : index
    %c0_11 = arith.constant 0 : index
    %33 = vector.load %arg4[%c0_10, %c0_11] : memref<1x128xf32, #tpu.memory_space<vmem>>, vector<1x128xf32>
    %34 = arith.mulf %23, %32 : vector<1x128xf32>
    %35 = arith.subf %33, %34 : vector<1x128xf32>
    %36 = tpu.concatenate %32, %32, %32, %32 in 1 : vector<1x128xf32>, vector<1x128xf32>, vector<1x128xf32>, vector<1x128xf32> -> vector<1x512xf32>
    %37 = tpu.concatenate %35, %35, %35, %35 in 1 : vector<1x128xf32>, vector<1x128xf32>, vector<1x128xf32>, vector<1x128xf32> -> vector<1x512xf32>
    %38 = vector.broadcast %36 : vector<1x512xf32> to vector<98x512xf32>
    %39 = arith.mulf %2, %38 : vector<98x512xf32>
    %40 = vector.broadcast %37 : vector<1x512xf32> to vector<98x512xf32>
    %41 = arith.addf %39, %40 : vector<98x512xf32>
    %cst_12 = arith.constant 0.000000e+00 : f32
    %42 = vector.broadcast %cst_12 : f32 to vector<98x512xf32>
    %43 = arith.maximumf %41, %42 : vector<98x512xf32>
    %44 = arith.truncf %43 : vector<98x512xf32> to vector<98x512xbf16>
    %c0_13 = arith.constant 0 : index
    %c0_14 = arith.constant 0 : index
    %45 = vector.load %arg5[%c0_13, %c0_14] : memref<512x128xbf16, #tpu.memory_space<vmem>>, vector<512x128xbf16>
    %cst_15 = arith.constant dense<0.000000e+00> : vector<98x128xf32>
    %46 = tpu.matmul %44, %45, %cst_15 {dimension_numbers = #tpu.dot_dimension_numbers<[1], [0], [0], [1], [0, 0, 1, 1], [], []>} : vector<98x512xbf16>, vector<512x128xbf16>, vector<98x128xf32> -> vector<98x128xf32>
    %cst_16 = arith.constant dense<0.000000e+00> : vector<128xf32>
    %47 = vector.multi_reduction <add>, %46, %cst_16 [0] : vector<98x128xf32> to vector<128xf32>
    %48 = vector.shape_cast %47 : vector<128xf32> to vector<1x128xf32>
    %49 = arith.mulf %46, %46 : vector<98x128xf32>
    %cst_17 = arith.constant dense<0.000000e+00> : vector<128xf32>
    %50 = vector.multi_reduction <add>, %49, %cst_17 [0] : vector<98x128xf32> to vector<128xf32>
    %51 = vector.shape_cast %50 : vector<128xf32> to vector<1x128xf32>
    %cst_18 = arith.constant 0.0102040814 : f32
    %52 = vector.broadcast %cst_18 : f32 to vector<1x128xf32>
    %53 = arith.mulf %48, %52 : vector<1x128xf32>
    %cst_19 = arith.constant 0.0102040814 : f32
    %54 = vector.broadcast %cst_19 : f32 to vector<1x128xf32>
    %55 = arith.mulf %51, %54 : vector<1x128xf32>
    %56 = arith.mulf %53, %53 : vector<1x128xf32>
    %57 = arith.subf %55, %56 : vector<1x128xf32>
    %c0_20 = arith.constant 0 : index
    %c0_21 = arith.constant 0 : index
    %58 = vector.load %arg6[%c0_20, %c0_21] : memref<1x128xf32, #tpu.memory_space<vmem>>, vector<1x128xf32>
    %cst_22 = arith.constant 9.99999974E-6 : f32
    %59 = vector.broadcast %cst_22 : f32 to vector<1x128xf32>
    %60 = arith.addf %57, %59 : vector<1x128xf32>
    %61 = math.rsqrt %60 : vector<1x128xf32>
    %62 = arith.mulf %58, %61 : vector<1x128xf32>
    %c0_23 = arith.constant 0 : index
    %c0_24 = arith.constant 0 : index
    %63 = vector.load %arg7[%c0_23, %c0_24] : memref<1x128xf32, #tpu.memory_space<vmem>>, vector<1x128xf32>
    %64 = arith.mulf %53, %62 : vector<1x128xf32>
    %65 = arith.subf %63, %64 : vector<1x128xf32>
    %66 = vector.broadcast %62 : vector<1x128xf32> to vector<98x128xf32>
    %67 = arith.mulf %46, %66 : vector<98x128xf32>
    %68 = vector.broadcast %65 : vector<1x128xf32> to vector<98x128xf32>
    %69 = arith.addf %67, %68 : vector<98x128xf32>
    %cst_25 = arith.constant 0.000000e+00 : f32
    %70 = vector.broadcast %cst_25 : f32 to vector<98x128xf32>
    %71 = arith.maximumf %69, %70 : vector<98x128xf32>
    %72 = arith.truncf %71 : vector<98x128xf32> to vector<98x128xbf16>
    %c0_26 = arith.constant 0 : index
    %c0_27 = arith.constant 0 : index
    %73 = vector.load %arg13[%c0_26, %c0_27] : memref<98x128xbf16, #tpu.memory_space<vmem>>, vector<98x128xbf16>
    tpu.vector_store %arg13[%c0_26, %c0_27], %72 {strides = array<i32>} : memref<98x128xbf16, #tpu.memory_space<vmem>>, vector<98x128xbf16>,
    %cst_28 = arith.constant 0.000000e+00 : f32
    %74 = vector.broadcast %cst_28 : f32 to vector<2x128xf32>
    %c0_29 = arith.constant 0 : index
    %c0_30 = arith.constant 0 : index
    %75 = vector.load %arg13[%c0_29, %c0_30] : memref<98x128xbf16, #tpu.memory_space<vmem>>, vector<2x64xbf16>
    %c0_31 = arith.constant 0 : index
    %c0_32 = arith.constant 0 : index
    %c0_33 = arith.constant 0 : index
    %76 = vector.load %arg8[%c0_31, %c0_32, %c0_33] : memref<49x64x128xbf16, #tpu.memory_space<vmem>>, vector<1x64x128xbf16>
    %77 = vector.shape_cast %76 : vector<1x64x128xbf16> to vector<64x128xbf16>
    %cst_34 = arith.constant dense<0.000000e+00> : vector<2x128xf32>
    %78 = tpu.matmul %75, %77, %cst_34 {dimension_numbers = #tpu.dot_dimension_numbers<[1], [0], [0], [1], [0, 0, 1, 1], [], []>} : vector<2x64xbf16>, vector<64x128xbf16>, vector<2x128xf32> -> vector<2x128xf32>
    %79 = arith.addf %74, %78 : vector<2x128xf32>
    %c2 = arith.constant 2 : index
    %c0_35 = arith.constant 0 : index
    %80 = vector.load %arg13[%c2, %c0_35] : memref<98x128xbf16, #tpu.memory_space<vmem>>, vector<2x64xbf16>
    %c1 = arith.constant 1 : index
    %c0_36 = arith.constant 0 : index
    %c0_37 = arith.constant 0 : index
    %81 = vector.load %arg8[%c1, %c0_36, %c0_37] : memref<49x64x128xbf16, #tpu.memory_space<vmem>>, vector<1x64x128xbf16>
    %82 = vector.shape_cast %81 : vector<1x64x128xbf16> to vector<64x128xbf16>
    %cst_38 = arith.constant dense<0.000000e+00> : vector<2x128xf32>
    %83 = tpu.matmul %80, %82, %cst_38 {dimension_numbers = #tpu.dot_dimension_numbers<[1], [0], [0], [1], [0, 0, 1, 1], [], []>} : vector<2x64xbf16>, vector<64x128xbf16>, vector<2x128xf32> -> vector<2x128xf32>
    %84 = arith.addf %79, %83 : vector<2x128xf32>
    %c4 = arith.constant 4 : index
    %c0_39 = arith.constant 0 : index
    %85 = vector.load %arg13[%c4, %c0_39] : memref<98x128xbf16, #tpu.memory_space<vmem>>, vector<2x64xbf16>
    %c2_40 = arith.constant 2 : index
    %c0_41 = arith.constant 0 : index
    %c0_42 = arith.constant 0 : index
    %86 = vector.load %arg8[%c2_40, %c0_41, %c0_42] : memref<49x64x128xbf16, #tpu.memory_space<vmem>>, vector<1x64x128xbf16>
    %87 = vector.shape_cast %86 : vector<1x64x128xbf16> to vector<64x128xbf16>
    %cst_43 = arith.constant dense<0.000000e+00> : vector<2x128xf32>
    %88 = tpu.matmul %85, %87, %cst_43 {dimension_numbers = #tpu.dot_dimension_numbers<[1], [0], [0], [1], [0, 0, 1, 1], [], []>} : vector<2x64xbf16>, vector<64x128xbf16>, vector<2x128xf32> -> vector<2x128xf32>
    %89 = arith.addf %84, %88 : vector<2x128xf32>
    %c6 = arith.constant 6 : index
    %c0_44 = arith.constant 0 : index
    %90 = vector.load %arg13[%c6, %c0_44] : memref<98x128xbf16, #tpu.memory_space<vmem>>, vector<2x64xbf16>
    %c3 = arith.constant 3 : index
    %c0_45 = arith.constant 0 : index
    %c0_46 = arith.constant 0 : index
    %91 = vector.load %arg8[%c3, %c0_45, %c0_46] : memref<49x64x128xbf16, #tpu.memory_space<vmem>>, vector<1x64x128xbf16>
    %92 = vector.shape_cast %91 : vector<1x64x128xbf16> to vector<64x128xbf16>
    %cst_47 = arith.constant dense<0.000000e+00> : vector<2x128xf32>
    %93 = tpu.matmul %90, %92, %cst_47 {dimension_numbers = #tpu.dot_dimension_numbers<[1], [0], [0], [1], [0, 0, 1, 1], [], []>} : vector<2x64xbf16>, vector<64x128xbf16>, vector<2x128xf32> -> vector<2x128xf32>
    %94 = arith.addf %89, %93 : vector<2x128xf32>
    %c8 = arith.constant 8 : index
    %c0_48 = arith.constant 0 : index
    %95 = vector.load %arg13[%c8, %c0_48] : memref<98x128xbf16, #tpu.memory_space<vmem>>, vector<2x64xbf16>
    %c4_49 = arith.constant 4 : index
    %c0_50 = arith.constant 0 : index
    %c0_51 = arith.constant 0 : index
    %96 = vector.load %arg8[%c4_49, %c0_50, %c0_51] : memref<49x64x128xbf16, #tpu.memory_space<vmem>>, vector<1x64x128xbf16>
    %97 = vector.shape_cast %96 : vector<1x64x128xbf16> to vector<64x128xbf16>
    %cst_52 = arith.constant dense<0.000000e+00> : vector<2x128xf32>
    %98 = tpu.matmul %95, %97, %cst_52 {dimension_numbers = #tpu.dot_dimension_numbers<[1], [0], [0], [1], [0, 0, 1, 1], [], []>} : vector<2x64xbf16>, vector<64x128xbf16>, vector<2x128xf32> -> vector<2x128xf32>
    %99 = arith.addf %94, %98 : vector<2x128xf32>
    %c10 = arith.constant 10 : index
    %c0_53 = arith.constant 0 : index
    %100 = vector.load %arg13[%c10, %c0_53] : memref<98x128xbf16, #tpu.memory_space<vmem>>, vector<2x64xbf16>
    %c5 = arith.constant 5 : index
    %c0_54 = arith.constant 0 : index
    %c0_55 = arith.constant 0 : index
    %101 = vector.load %arg8[%c5, %c0_54, %c0_55] : memref<49x64x128xbf16, #tpu.memory_space<vmem>>, vector<1x64x128xbf16>
    %102 = vector.shape_cast %101 : vector<1x64x128xbf16> to vector<64x128xbf16>
    %cst_56 = arith.constant dense<0.000000e+00> : vector<2x128xf32>
    %103 = tpu.matmul %100, %102, %cst_56 {dimension_numbers = #tpu.dot_dimension_numbers<[1], [0], [0], [1], [0, 0, 1, 1], [], []>} : vector<2x64xbf16>, vector<64x128xbf16>, vector<2x128xf32> -> vector<2x128xf32>
    %104 = arith.addf %99, %103 : vector<2x128xf32>
    %c12 = arith.constant 12 : index
    %c0_57 = arith.constant 0 : index
    %105 = vector.load %arg13[%c12, %c0_57] : memref<98x128xbf16, #tpu.memory_space<vmem>>, vector<2x64xbf16>
    %c6_58 = arith.constant 6 : index
    %c0_59 = arith.constant 0 : index
    %c0_60 = arith.constant 0 : index
    %106 = vector.load %arg8[%c6_58, %c0_59, %c0_60] : memref<49x64x128xbf16, #tpu.memory_space<vmem>>, vector<1x64x128xbf16>
    %107 = vector.shape_cast %106 : vector<1x64x128xbf16> to vector<64x128xbf16>
    %cst_61 = arith.constant dense<0.000000e+00> : vector<2x128xf32>
    %108 = tpu.matmul %105, %107, %cst_61 {dimension_numbers = #tpu.dot_dimension_numbers<[1], [0], [0], [1], [0, 0, 1, 1], [], []>} : vector<2x64xbf16>, vector<64x128xbf16>, vector<2x128xf32> -> vector<2x128xf32>
    %109 = arith.addf %104, %108 : vector<2x128xf32>
    %c14 = arith.constant 14 : index
    %c0_62 = arith.constant 0 : index
    %110 = vector.load %arg13[%c14, %c0_62] : memref<98x128xbf16, #tpu.memory_space<vmem>>, vector<2x64xbf16>
    %c7 = arith.constant 7 : index
    %c0_63 = arith.constant 0 : index
    %c0_64 = arith.constant 0 : index
    %111 = vector.load %arg8[%c7, %c0_63, %c0_64] : memref<49x64x128xbf16, #tpu.memory_space<vmem>>, vector<1x64x128xbf16>
    %112 = vector.shape_cast %111 : vector<1x64x128xbf16> to vector<64x128xbf16>
    %cst_65 = arith.constant dense<0.000000e+00> : vector<2x128xf32>
    %113 = tpu.matmul %110, %112, %cst_65 {dimension_numbers = #tpu.dot_dimension_numbers<[1], [0], [0], [1], [0, 0, 1, 1], [], []>} : vector<2x64xbf16>, vector<64x128xbf16>, vector<2x128xf32> -> vector<2x128xf32>
    %114 = arith.addf %109, %113 : vector<2x128xf32>
    %c16 = arith.constant 16 : index
    %c0_66 = arith.constant 0 : index
    %115 = vector.load %arg13[%c16, %c0_66] : memref<98x128xbf16, #tpu.memory_space<vmem>>, vector<2x64xbf16>
    %c8_67 = arith.constant 8 : index
    %c0_68 = arith.constant 0 : index
    %c0_69 = arith.constant 0 : index
    %116 = vector.load %arg8[%c8_67, %c0_68, %c0_69] : memref<49x64x128xbf16, #tpu.memory_space<vmem>>, vector<1x64x128xbf16>
    %117 = vector.shape_cast %116 : vector<1x64x128xbf16> to vector<64x128xbf16>
    %cst_70 = arith.constant dense<0.000000e+00> : vector<2x128xf32>
    %118 = tpu.matmul %115, %117, %cst_70 {dimension_numbers = #tpu.dot_dimension_numbers<[1], [0], [0], [1], [0, 0, 1, 1], [], []>} : vector<2x64xbf16>, vector<64x128xbf16>, vector<2x128xf32> -> vector<2x128xf32>
    %119 = arith.addf %114, %118 : vector<2x128xf32>
    %c18 = arith.constant 18 : index
    %c0_71 = arith.constant 0 : index
    %120 = vector.load %arg13[%c18, %c0_71] : memref<98x128xbf16, #tpu.memory_space<vmem>>, vector<2x64xbf16>
    %c9 = arith.constant 9 : index
    %c0_72 = arith.constant 0 : index
    %c0_73 = arith.constant 0 : index
    %121 = vector.load %arg8[%c9, %c0_72, %c0_73] : memref<49x64x128xbf16, #tpu.memory_space<vmem>>, vector<1x64x128xbf16>
    %122 = vector.shape_cast %121 : vector<1x64x128xbf16> to vector<64x128xbf16>
    %cst_74 = arith.constant dense<0.000000e+00> : vector<2x128xf32>
    %123 = tpu.matmul %120, %122, %cst_74 {dimension_numbers = #tpu.dot_dimension_numbers<[1], [0], [0], [1], [0, 0, 1, 1], [], []>} : vector<2x64xbf16>, vector<64x128xbf16>, vector<2x128xf32> -> vector<2x128xf32>
    %124 = arith.addf %119, %123 : vector<2x128xf32>
    %c20 = arith.constant 20 : index
    %c0_75 = arith.constant 0 : index
    %125 = vector.load %arg13[%c20, %c0_75] : memref<98x128xbf16, #tpu.memory_space<vmem>>, vector<2x64xbf16>
    %c10_76 = arith.constant 10 : index
    %c0_77 = arith.constant 0 : index
    %c0_78 = arith.constant 0 : index
    %126 = vector.load %arg8[%c10_76, %c0_77, %c0_78] : memref<49x64x128xbf16, #tpu.memory_space<vmem>>, vector<1x64x128xbf16>
    %127 = vector.shape_cast %126 : vector<1x64x128xbf16> to vector<64x128xbf16>
    %cst_79 = arith.constant dense<0.000000e+00> : vector<2x128xf32>
    %128 = tpu.matmul %125, %127, %cst_79 {dimension_numbers = #tpu.dot_dimension_numbers<[1], [0], [0], [1], [0, 0, 1, 1], [], []>} : vector<2x64xbf16>, vector<64x128xbf16>, vector<2x128xf32> -> vector<2x128xf32>
    %129 = arith.addf %124, %128 : vector<2x128xf32>
    %c22 = arith.constant 22 : index
    %c0_80 = arith.constant 0 : index
    %130 = vector.load %arg13[%c22, %c0_80] : memref<98x128xbf16, #tpu.memory_space<vmem>>, vector<2x64xbf16>
    %c11 = arith.constant 11 : index
    %c0_81 = arith.constant 0 : index
    %c0_82 = arith.constant 0 : index
    %131 = vector.load %arg8[%c11, %c0_81, %c0_82] : memref<49x64x128xbf16, #tpu.memory_space<vmem>>, vector<1x64x128xbf16>
    %132 = vector.shape_cast %131 : vector<1x64x128xbf16> to vector<64x128xbf16>
    %cst_83 = arith.constant dense<0.000000e+00> : vector<2x128xf32>
    %133 = tpu.matmul %130, %132, %cst_83 {dimension_numbers = #tpu.dot_dimension_numbers<[1], [0], [0], [1], [0, 0, 1, 1], [], []>} : vector<2x64xbf16>, vector<64x128xbf16>, vector<2x128xf32> -> vector<2x128xf32>
    %134 = arith.addf %129, %133 : vector<2x128xf32>
    %c24 = arith.constant 24 : index
    %c0_84 = arith.constant 0 : index
    %135 = vector.load %arg13[%c24, %c0_84] : memref<98x128xbf16, #tpu.memory_space<vmem>>, vector<2x64xbf16>
    %c12_85 = arith.constant 12 : index
    %c0_86 = arith.constant 0 : index
    %c0_87 = arith.constant 0 : index
    %136 = vector.load %arg8[%c12_85, %c0_86, %c0_87] : memref<49x64x128xbf16, #tpu.memory_space<vmem>>, vector<1x64x128xbf16>
    %137 = vector.shape_cast %136 : vector<1x64x128xbf16> to vector<64x128xbf16>
    %cst_88 = arith.constant dense<0.000000e+00> : vector<2x128xf32>
    %138 = tpu.matmul %135, %137, %cst_88 {dimension_numbers = #tpu.dot_dimension_numbers<[1], [0], [0], [1], [0, 0, 1, 1], [], []>} : vector<2x64xbf16>, vector<64x128xbf16>, vector<2x128xf32> -> vector<2x128xf32>
    %139 = arith.addf %134, %138 : vector<2x128xf32>
    %c26 = arith.constant 26 : index
    %c0_89 = arith.constant 0 : index
    %140 = vector.load %arg13[%c26, %c0_89] : memref<98x128xbf16, #tpu.memory_space<vmem>>, vector<2x64xbf16>
    %c13 = arith.constant 13 : index
    %c0_90 = arith.constant 0 : index
    %c0_91 = arith.constant 0 : index
    %141 = vector.load %arg8[%c13, %c0_90, %c0_91] : memref<49x64x128xbf16, #tpu.memory_space<vmem>>, vector<1x64x128xbf16>
    %142 = vector.shape_cast %141 : vector<1x64x128xbf16> to vector<64x128xbf16>
    %cst_92 = arith.constant dense<0.000000e+00> : vector<2x128xf32>
    %143 = tpu.matmul %140, %142, %cst_92 {dimension_numbers = #tpu.dot_dimension_numbers<[1], [0], [0], [1], [0, 0, 1, 1], [], []>} : vector<2x64xbf16>, vector<64x128xbf16>, vector<2x128xf32> -> vector<2x128xf32>
    %144 = arith.addf %139, %143 : vector<2x128xf32>
    %c28 = arith.constant 28 : index
    %c0_93 = arith.constant 0 : index
    %145 = vector.load %arg13[%c28, %c0_93] : memref<98x128xbf16, #tpu.memory_space<vmem>>, vector<2x64xbf16>
    %c14_94 = arith.constant 14 : index
    %c0_95 = arith.constant 0 : index
    %c0_96 = arith.constant 0 : index
    %146 = vector.load %arg8[%c14_94, %c0_95, %c0_96] : memref<49x64x128xbf16, #tpu.memory_space<vmem>>, vector<1x64x128xbf16>
    %147 = vector.shape_cast %146 : vector<1x64x128xbf16> to vector<64x128xbf16>
    %cst_97 = arith.constant dense<0.000000e+00> : vector<2x128xf32>
    %148 = tpu.matmul %145, %147, %cst_97 {dimension_numbers = #tpu.dot_dimension_numbers<[1], [0], [0], [1], [0, 0, 1, 1], [], []>} : vector<2x64xbf16>, vector<64x128xbf16>, vector<2x128xf32> -> vector<2x128xf32>
    %149 = arith.addf %144, %148 : vector<2x128xf32>
    %c30 = arith.constant 30 : index
    %c0_98 = arith.constant 0 : index
    %150 = vector.load %arg13[%c30, %c0_98] : memref<98x128xbf16, #tpu.memory_space<vmem>>, vector<2x64xbf16>
    %c15 = arith.constant 15 : index
    %c0_99 = arith.constant 0 : index
    %c0_100 = arith.constant 0 : index
    %151 = vector.load %arg8[%c15, %c0_99, %c0_100] : memref<49x64x128xbf16, #tpu.memory_space<vmem>>, vector<1x64x128xbf16>
    %152 = vector.shape_cast %151 : vector<1x64x128xbf16> to vector<64x128xbf16>
    %cst_101 = arith.constant dense<0.000000e+00> : vector<2x128xf32>
    %153 = tpu.matmul %150, %152, %cst_101 {dimension_numbers = #tpu.dot_dimension_numbers<[1], [0], [0], [1], [0, 0, 1, 1], [], []>} : vector<2x64xbf16>, vector<64x128xbf16>, vector<2x128xf32> -> vector<2x128xf32>
    %154 = arith.addf %149, %153 : vector<2x128xf32>
    %c32 = arith.constant 32 : index
    %c0_102 = arith.constant 0 : index
    %155 = vector.load %arg13[%c32, %c0_102] : memref<98x128xbf16, #tpu.memory_space<vmem>>, vector<2x64xbf16>
    %c16_103 = arith.constant 16 : index
    %c0_104 = arith.constant 0 : index
    %c0_105 = arith.constant 0 : index
    %156 = vector.load %arg8[%c16_103, %c0_104, %c0_105] : memref<49x64x128xbf16, #tpu.memory_space<vmem>>, vector<1x64x128xbf16>
    %157 = vector.shape_cast %156 : vector<1x64x128xbf16> to vector<64x128xbf16>
    %cst_106 = arith.constant dense<0.000000e+00> : vector<2x128xf32>
    %158 = tpu.matmul %155, %157, %cst_106 {dimension_numbers = #tpu.dot_dimension_numbers<[1], [0], [0], [1], [0, 0, 1, 1], [], []>} : vector<2x64xbf16>, vector<64x128xbf16>, vector<2x128xf32> -> vector<2x128xf32>
    %159 = arith.addf %154, %158 : vector<2x128xf32>
    %c34 = arith.constant 34 : index
    %c0_107 = arith.constant 0 : index
    %160 = vector.load %arg13[%c34, %c0_107] : memref<98x128xbf16, #tpu.memory_space<vmem>>, vector<2x64xbf16>
    %c17 = arith.constant 17 : index
    %c0_108 = arith.constant 0 : index
    %c0_109 = arith.constant 0 : index
    %161 = vector.load %arg8[%c17, %c0_108, %c0_109] : memref<49x64x128xbf16, #tpu.memory_space<vmem>>, vector<1x64x128xbf16>
    %162 = vector.shape_cast %161 : vector<1x64x128xbf16> to vector<64x128xbf16>
    %cst_110 = arith.constant dense<0.000000e+00> : vector<2x128xf32>
    %163 = tpu.matmul %160, %162, %cst_110 {dimension_numbers = #tpu.dot_dimension_numbers<[1], [0], [0], [1], [0, 0, 1, 1], [], []>} : vector<2x64xbf16>, vector<64x128xbf16>, vector<2x128xf32> -> vector<2x128xf32>
    %164 = arith.addf %159, %163 : vector<2x128xf32>
    %c36 = arith.constant 36 : index
    %c0_111 = arith.constant 0 : index
    %165 = vector.load %arg13[%c36, %c0_111] : memref<98x128xbf16, #tpu.memory_space<vmem>>, vector<2x64xbf16>
    %c18_112 = arith.constant 18 : index
    %c0_113 = arith.constant 0 : index
    %c0_114 = arith.constant 0 : index
    %166 = vector.load %arg8[%c18_112, %c0_113, %c0_114] : memref<49x64x128xbf16, #tpu.memory_space<vmem>>, vector<1x64x128xbf16>
    %167 = vector.shape_cast %166 : vector<1x64x128xbf16> to vector<64x128xbf16>
    %cst_115 = arith.constant dense<0.000000e+00> : vector<2x128xf32>
    %168 = tpu.matmul %165, %167, %cst_115 {dimension_numbers = #tpu.dot_dimension_numbers<[1], [0], [0], [1], [0, 0, 1, 1], [], []>} : vector<2x64xbf16>, vector<64x128xbf16>, vector<2x128xf32> -> vector<2x128xf32>
    %169 = arith.addf %164, %168 : vector<2x128xf32>
    %c38 = arith.constant 38 : index
    %c0_116 = arith.constant 0 : index
    %170 = vector.load %arg13[%c38, %c0_116] : memref<98x128xbf16, #tpu.memory_space<vmem>>, vector<2x64xbf16>
    %c19 = arith.constant 19 : index
    %c0_117 = arith.constant 0 : index
    %c0_118 = arith.constant 0 : index
    %171 = vector.load %arg8[%c19, %c0_117, %c0_118] : memref<49x64x128xbf16, #tpu.memory_space<vmem>>, vector<1x64x128xbf16>
    %172 = vector.shape_cast %171 : vector<1x64x128xbf16> to vector<64x128xbf16>
    %cst_119 = arith.constant dense<0.000000e+00> : vector<2x128xf32>
    %173 = tpu.matmul %170, %172, %cst_119 {dimension_numbers = #tpu.dot_dimension_numbers<[1], [0], [0], [1], [0, 0, 1, 1], [], []>} : vector<2x64xbf16>, vector<64x128xbf16>, vector<2x128xf32> -> vector<2x128xf32>
    %174 = arith.addf %169, %173 : vector<2x128xf32>
    %c40 = arith.constant 40 : index
    %c0_120 = arith.constant 0 : index
    %175 = vector.load %arg13[%c40, %c0_120] : memref<98x128xbf16, #tpu.memory_space<vmem>>, vector<2x64xbf16>
    %c20_121 = arith.constant 20 : index
    %c0_122 = arith.constant 0 : index
    %c0_123 = arith.constant 0 : index
    %176 = vector.load %arg8[%c20_121, %c0_122, %c0_123] : memref<49x64x128xbf16, #tpu.memory_space<vmem>>, vector<1x64x128xbf16>
    %177 = vector.shape_cast %176 : vector<1x64x128xbf16> to vector<64x128xbf16>
    %cst_124 = arith.constant dense<0.000000e+00> : vector<2x128xf32>
    %178 = tpu.matmul %175, %177, %cst_124 {dimension_numbers = #tpu.dot_dimension_numbers<[1], [0], [0], [1], [0, 0, 1, 1], [], []>} : vector<2x64xbf16>, vector<64x128xbf16>, vector<2x128xf32> -> vector<2x128xf32>
    %179 = arith.addf %174, %178 : vector<2x128xf32>
    %c42 = arith.constant 42 : index
    %c0_125 = arith.constant 0 : index
    %180 = vector.load %arg13[%c42, %c0_125] : memref<98x128xbf16, #tpu.memory_space<vmem>>, vector<2x64xbf16>
    %c21 = arith.constant 21 : index
    %c0_126 = arith.constant 0 : index
    %c0_127 = arith.constant 0 : index
    %181 = vector.load %arg8[%c21, %c0_126, %c0_127] : memref<49x64x128xbf16, #tpu.memory_space<vmem>>, vector<1x64x128xbf16>
    %182 = vector.shape_cast %181 : vector<1x64x128xbf16> to vector<64x128xbf16>
    %cst_128 = arith.constant dense<0.000000e+00> : vector<2x128xf32>
    %183 = tpu.matmul %180, %182, %cst_128 {dimension_numbers = #tpu.dot_dimension_numbers<[1], [0], [0], [1], [0, 0, 1, 1], [], []>} : vector<2x64xbf16>, vector<64x128xbf16>, vector<2x128xf32> -> vector<2x128xf32>
    %184 = arith.addf %179, %183 : vector<2x128xf32>
    %c44 = arith.constant 44 : index
    %c0_129 = arith.constant 0 : index
    %185 = vector.load %arg13[%c44, %c0_129] : memref<98x128xbf16, #tpu.memory_space<vmem>>, vector<2x64xbf16>
    %c22_130 = arith.constant 22 : index
    %c0_131 = arith.constant 0 : index
    %c0_132 = arith.constant 0 : index
    %186 = vector.load %arg8[%c22_130, %c0_131, %c0_132] : memref<49x64x128xbf16, #tpu.memory_space<vmem>>, vector<1x64x128xbf16>
    %187 = vector.shape_cast %186 : vector<1x64x128xbf16> to vector<64x128xbf16>
    %cst_133 = arith.constant dense<0.000000e+00> : vector<2x128xf32>
    %188 = tpu.matmul %185, %187, %cst_133 {dimension_numbers = #tpu.dot_dimension_numbers<[1], [0], [0], [1], [0, 0, 1, 1], [], []>} : vector<2x64xbf16>, vector<64x128xbf16>, vector<2x128xf32> -> vector<2x128xf32>
    %189 = arith.addf %184, %188 : vector<2x128xf32>
    %c46 = arith.constant 46 : index
    %c0_134 = arith.constant 0 : index
    %190 = vector.load %arg13[%c46, %c0_134] : memref<98x128xbf16, #tpu.memory_space<vmem>>, vector<2x64xbf16>
    %c23 = arith.constant 23 : index
    %c0_135 = arith.constant 0 : index
    %c0_136 = arith.constant 0 : index
    %191 = vector.load %arg8[%c23, %c0_135, %c0_136] : memref<49x64x128xbf16, #tpu.memory_space<vmem>>, vector<1x64x128xbf16>
    %192 = vector.shape_cast %191 : vector<1x64x128xbf16> to vector<64x128xbf16>
    %cst_137 = arith.constant dense<0.000000e+00> : vector<2x128xf32>
    %193 = tpu.matmul %190, %192, %cst_137 {dimension_numbers = #tpu.dot_dimension_numbers<[1], [0], [0], [1], [0, 0, 1, 1], [], []>} : vector<2x64xbf16>, vector<64x128xbf16>, vector<2x128xf32> -> vector<2x128xf32>
    %194 = arith.addf %189, %193 : vector<2x128xf32>
    %c48 = arith.constant 48 : index
    %c0_138 = arith.constant 0 : index
    %195 = vector.load %arg13[%c48, %c0_138] : memref<98x128xbf16, #tpu.memory_space<vmem>>, vector<2x64xbf16>
    %c24_139 = arith.constant 24 : index
    %c0_140 = arith.constant 0 : index
    %c0_141 = arith.constant 0 : index
    %196 = vector.load %arg8[%c24_139, %c0_140, %c0_141] : memref<49x64x128xbf16, #tpu.memory_space<vmem>>, vector<1x64x128xbf16>
    %197 = vector.shape_cast %196 : vector<1x64x128xbf16> to vector<64x128xbf16>
    %cst_142 = arith.constant dense<0.000000e+00> : vector<2x128xf32>
    %198 = tpu.matmul %195, %197, %cst_142 {dimension_numbers = #tpu.dot_dimension_numbers<[1], [0], [0], [1], [0, 0, 1, 1], [], []>} : vector<2x64xbf16>, vector<64x128xbf16>, vector<2x128xf32> -> vector<2x128xf32>
    %199 = arith.addf %194, %198 : vector<2x128xf32>
    %c50 = arith.constant 50 : index
    %c0_143 = arith.constant 0 : index
    %200 = vector.load %arg13[%c50, %c0_143] : memref<98x128xbf16, #tpu.memory_space<vmem>>, vector<2x64xbf16>
    %c25 = arith.constant 25 : index
    %c0_144 = arith.constant 0 : index
    %c0_145 = arith.constant 0 : index
    %201 = vector.load %arg8[%c25, %c0_144, %c0_145] : memref<49x64x128xbf16, #tpu.memory_space<vmem>>, vector<1x64x128xbf16>
    %202 = vector.shape_cast %201 : vector<1x64x128xbf16> to vector<64x128xbf16>
    %cst_146 = arith.constant dense<0.000000e+00> : vector<2x128xf32>
    %203 = tpu.matmul %200, %202, %cst_146 {dimension_numbers = #tpu.dot_dimension_numbers<[1], [0], [0], [1], [0, 0, 1, 1], [], []>} : vector<2x64xbf16>, vector<64x128xbf16>, vector<2x128xf32> -> vector<2x128xf32>
    %204 = arith.addf %199, %203 : vector<2x128xf32>
    %c52 = arith.constant 52 : index
    %c0_147 = arith.constant 0 : index
    %205 = vector.load %arg13[%c52, %c0_147] : memref<98x128xbf16, #tpu.memory_space<vmem>>, vector<2x64xbf16>
    %c26_148 = arith.constant 26 : index
    %c0_149 = arith.constant 0 : index
    %c0_150 = arith.constant 0 : index
    %206 = vector.load %arg8[%c26_148, %c0_149, %c0_150] : memref<49x64x128xbf16, #tpu.memory_space<vmem>>, vector<1x64x128xbf16>
    %207 = vector.shape_cast %206 : vector<1x64x128xbf16> to vector<64x128xbf16>
    %cst_151 = arith.constant dense<0.000000e+00> : vector<2x128xf32>
    %208 = tpu.matmul %205, %207, %cst_151 {dimension_numbers = #tpu.dot_dimension_numbers<[1], [0], [0], [1], [0, 0, 1, 1], [], []>} : vector<2x64xbf16>, vector<64x128xbf16>, vector<2x128xf32> -> vector<2x128xf32>
    %209 = arith.addf %204, %208 : vector<2x128xf32>
    %c54 = arith.constant 54 : index
    %c0_152 = arith.constant 0 : index
    %210 = vector.load %arg13[%c54, %c0_152] : memref<98x128xbf16, #tpu.memory_space<vmem>>, vector<2x64xbf16>
    %c27 = arith.constant 27 : index
    %c0_153 = arith.constant 0 : index
    %c0_154 = arith.constant 0 : index
    %211 = vector.load %arg8[%c27, %c0_153, %c0_154] : memref<49x64x128xbf16, #tpu.memory_space<vmem>>, vector<1x64x128xbf16>
    %212 = vector.shape_cast %211 : vector<1x64x128xbf16> to vector<64x128xbf16>
    %cst_155 = arith.constant dense<0.000000e+00> : vector<2x128xf32>
    %213 = tpu.matmul %210, %212, %cst_155 {dimension_numbers = #tpu.dot_dimension_numbers<[1], [0], [0], [1], [0, 0, 1, 1], [], []>} : vector<2x64xbf16>, vector<64x128xbf16>, vector<2x128xf32> -> vector<2x128xf32>
    %214 = arith.addf %209, %213 : vector<2x128xf32>
    %c56 = arith.constant 56 : index
    %c0_156 = arith.constant 0 : index
    %215 = vector.load %arg13[%c56, %c0_156] : memref<98x128xbf16, #tpu.memory_space<vmem>>, vector<2x64xbf16>
    %c28_157 = arith.constant 28 : index
    %c0_158 = arith.constant 0 : index
    %c0_159 = arith.constant 0 : index
    %216 = vector.load %arg8[%c28_157, %c0_158, %c0_159] : memref<49x64x128xbf16, #tpu.memory_space<vmem>>, vector<1x64x128xbf16>
    %217 = vector.shape_cast %216 : vector<1x64x128xbf16> to vector<64x128xbf16>
    %cst_160 = arith.constant dense<0.000000e+00> : vector<2x128xf32>
    %218 = tpu.matmul %215, %217, %cst_160 {dimension_numbers = #tpu.dot_dimension_numbers<[1], [0], [0], [1], [0, 0, 1, 1], [], []>} : vector<2x64xbf16>, vector<64x128xbf16>, vector<2x128xf32> -> vector<2x128xf32>
    %219 = arith.addf %214, %218 : vector<2x128xf32>
    %c58 = arith.constant 58 : index
    %c0_161 = arith.constant 0 : index
    %220 = vector.load %arg13[%c58, %c0_161] : memref<98x128xbf16, #tpu.memory_space<vmem>>, vector<2x64xbf16>
    %c29 = arith.constant 29 : index
    %c0_162 = arith.constant 0 : index
    %c0_163 = arith.constant 0 : index
    %221 = vector.load %arg8[%c29, %c0_162, %c0_163] : memref<49x64x128xbf16, #tpu.memory_space<vmem>>, vector<1x64x128xbf16>
    %222 = vector.shape_cast %221 : vector<1x64x128xbf16> to vector<64x128xbf16>
    %cst_164 = arith.constant dense<0.000000e+00> : vector<2x128xf32>
    %223 = tpu.matmul %220, %222, %cst_164 {dimension_numbers = #tpu.dot_dimension_numbers<[1], [0], [0], [1], [0, 0, 1, 1], [], []>} : vector<2x64xbf16>, vector<64x128xbf16>, vector<2x128xf32> -> vector<2x128xf32>
    %224 = arith.addf %219, %223 : vector<2x128xf32>
    %c60 = arith.constant 60 : index
    %c0_165 = arith.constant 0 : index
    %225 = vector.load %arg13[%c60, %c0_165] : memref<98x128xbf16, #tpu.memory_space<vmem>>, vector<2x64xbf16>
    %c30_166 = arith.constant 30 : index
    %c0_167 = arith.constant 0 : index
    %c0_168 = arith.constant 0 : index
    %226 = vector.load %arg8[%c30_166, %c0_167, %c0_168] : memref<49x64x128xbf16, #tpu.memory_space<vmem>>, vector<1x64x128xbf16>
    %227 = vector.shape_cast %226 : vector<1x64x128xbf16> to vector<64x128xbf16>
    %cst_169 = arith.constant dense<0.000000e+00> : vector<2x128xf32>
    %228 = tpu.matmul %225, %227, %cst_169 {dimension_numbers = #tpu.dot_dimension_numbers<[1], [0], [0], [1], [0, 0, 1, 1], [], []>} : vector<2x64xbf16>, vector<64x128xbf16>, vector<2x128xf32> -> vector<2x128xf32>
    %229 = arith.addf %224, %228 : vector<2x128xf32>
    %c62 = arith.constant 62 : index
    %c0_170 = arith.constant 0 : index
    %230 = vector.load %arg13[%c62, %c0_170] : memref<98x128xbf16, #tpu.memory_space<vmem>>, vector<2x64xbf16>
    %c31 = arith.constant 31 : index
    %c0_171 = arith.constant 0 : index
    %c0_172 = arith.constant 0 : index
    %231 = vector.load %arg8[%c31, %c0_171, %c0_172] : memref<49x64x128xbf16, #tpu.memory_space<vmem>>, vector<1x64x128xbf16>
    %232 = vector.shape_cast %231 : vector<1x64x128xbf16> to vector<64x128xbf16>
    %cst_173 = arith.constant dense<0.000000e+00> : vector<2x128xf32>
    %233 = tpu.matmul %230, %232, %cst_173 {dimension_numbers = #tpu.dot_dimension_numbers<[1], [0], [0], [1], [0, 0, 1, 1], [], []>} : vector<2x64xbf16>, vector<64x128xbf16>, vector<2x128xf32> -> vector<2x128xf32>
    %234 = arith.addf %229, %233 : vector<2x128xf32>
    %c64 = arith.constant 64 : index
    %c0_174 = arith.constant 0 : index
    %235 = vector.load %arg13[%c64, %c0_174] : memref<98x128xbf16, #tpu.memory_space<vmem>>, vector<2x64xbf16>
    %c32_175 = arith.constant 32 : index
    %c0_176 = arith.constant 0 : index
    %c0_177 = arith.constant 0 : index
    %236 = vector.load %arg8[%c32_175, %c0_176, %c0_177] : memref<49x64x128xbf16, #tpu.memory_space<vmem>>, vector<1x64x128xbf16>
    %237 = vector.shape_cast %236 : vector<1x64x128xbf16> to vector<64x128xbf16>
    %cst_178 = arith.constant dense<0.000000e+00> : vector<2x128xf32>
    %238 = tpu.matmul %235, %237, %cst_178 {dimension_numbers = #tpu.dot_dimension_numbers<[1], [0], [0], [1], [0, 0, 1, 1], [], []>} : vector<2x64xbf16>, vector<64x128xbf16>, vector<2x128xf32> -> vector<2x128xf32>
    %239 = arith.addf %234, %238 : vector<2x128xf32>
    %c66 = arith.constant 66 : index
    %c0_179 = arith.constant 0 : index
    %240 = vector.load %arg13[%c66, %c0_179] : memref<98x128xbf16, #tpu.memory_space<vmem>>, vector<2x64xbf16>
    %c33 = arith.constant 33 : index
    %c0_180 = arith.constant 0 : index
    %c0_181 = arith.constant 0 : index
    %241 = vector.load %arg8[%c33, %c0_180, %c0_181] : memref<49x64x128xbf16, #tpu.memory_space<vmem>>, vector<1x64x128xbf16>
    %242 = vector.shape_cast %241 : vector<1x64x128xbf16> to vector<64x128xbf16>
    %cst_182 = arith.constant dense<0.000000e+00> : vector<2x128xf32>
    %243 = tpu.matmul %240, %242, %cst_182 {dimension_numbers = #tpu.dot_dimension_numbers<[1], [0], [0], [1], [0, 0, 1, 1], [], []>} : vector<2x64xbf16>, vector<64x128xbf16>, vector<2x128xf32> -> vector<2x128xf32>
    %244 = arith.addf %239, %243 : vector<2x128xf32>
    %c68 = arith.constant 68 : index
    %c0_183 = arith.constant 0 : index
    %245 = vector.load %arg13[%c68, %c0_183] : memref<98x128xbf16, #tpu.memory_space<vmem>>, vector<2x64xbf16>
    %c34_184 = arith.constant 34 : index
    %c0_185 = arith.constant 0 : index
    %c0_186 = arith.constant 0 : index
    %246 = vector.load %arg8[%c34_184, %c0_185, %c0_186] : memref<49x64x128xbf16, #tpu.memory_space<vmem>>, vector<1x64x128xbf16>
    %247 = vector.shape_cast %246 : vector<1x64x128xbf16> to vector<64x128xbf16>
    %cst_187 = arith.constant dense<0.000000e+00> : vector<2x128xf32>
    %248 = tpu.matmul %245, %247, %cst_187 {dimension_numbers = #tpu.dot_dimension_numbers<[1], [0], [0], [1], [0, 0, 1, 1], [], []>} : vector<2x64xbf16>, vector<64x128xbf16>, vector<2x128xf32> -> vector<2x128xf32>
    %249 = arith.addf %244, %248 : vector<2x128xf32>
    %c70 = arith.constant 70 : index
    %c0_188 = arith.constant 0 : index
    %250 = vector.load %arg13[%c70, %c0_188] : memref<98x128xbf16, #tpu.memory_space<vmem>>, vector<2x64xbf16>
    %c35 = arith.constant 35 : index
    %c0_189 = arith.constant 0 : index
    %c0_190 = arith.constant 0 : index
    %251 = vector.load %arg8[%c35, %c0_189, %c0_190] : memref<49x64x128xbf16, #tpu.memory_space<vmem>>, vector<1x64x128xbf16>
    %252 = vector.shape_cast %251 : vector<1x64x128xbf16> to vector<64x128xbf16>
    %cst_191 = arith.constant dense<0.000000e+00> : vector<2x128xf32>
    %253 = tpu.matmul %250, %252, %cst_191 {dimension_numbers = #tpu.dot_dimension_numbers<[1], [0], [0], [1], [0, 0, 1, 1], [], []>} : vector<2x64xbf16>, vector<64x128xbf16>, vector<2x128xf32> -> vector<2x128xf32>
    %254 = arith.addf %249, %253 : vector<2x128xf32>
    %c72 = arith.constant 72 : index
    %c0_192 = arith.constant 0 : index
    %255 = vector.load %arg13[%c72, %c0_192] : memref<98x128xbf16, #tpu.memory_space<vmem>>, vector<2x64xbf16>
    %c36_193 = arith.constant 36 : index
    %c0_194 = arith.constant 0 : index
    %c0_195 = arith.constant 0 : index
    %256 = vector.load %arg8[%c36_193, %c0_194, %c0_195] : memref<49x64x128xbf16, #tpu.memory_space<vmem>>, vector<1x64x128xbf16>
    %257 = vector.shape_cast %256 : vector<1x64x128xbf16> to vector<64x128xbf16>
    %cst_196 = arith.constant dense<0.000000e+00> : vector<2x128xf32>
    %258 = tpu.matmul %255, %257, %cst_196 {dimension_numbers = #tpu.dot_dimension_numbers<[1], [0], [0], [1], [0, 0, 1, 1], [], []>} : vector<2x64xbf16>, vector<64x128xbf16>, vector<2x128xf32> -> vector<2x128xf32>
    %259 = arith.addf %254, %258 : vector<2x128xf32>
    %c74 = arith.constant 74 : index
    %c0_197 = arith.constant 0 : index
    %260 = vector.load %arg13[%c74, %c0_197] : memref<98x128xbf16, #tpu.memory_space<vmem>>, vector<2x64xbf16>
    %c37 = arith.constant 37 : index
    %c0_198 = arith.constant 0 : index
    %c0_199 = arith.constant 0 : index
    %261 = vector.load %arg8[%c37, %c0_198, %c0_199] : memref<49x64x128xbf16, #tpu.memory_space<vmem>>, vector<1x64x128xbf16>
    %262 = vector.shape_cast %261 : vector<1x64x128xbf16> to vector<64x128xbf16>
    %cst_200 = arith.constant dense<0.000000e+00> : vector<2x128xf32>
    %263 = tpu.matmul %260, %262, %cst_200 {dimension_numbers = #tpu.dot_dimension_numbers<[1], [0], [0], [1], [0, 0, 1, 1], [], []>} : vector<2x64xbf16>, vector<64x128xbf16>, vector<2x128xf32> -> vector<2x128xf32>
    %264 = arith.addf %259, %263 : vector<2x128xf32>
    %c76 = arith.constant 76 : index
    %c0_201 = arith.constant 0 : index
    %265 = vector.load %arg13[%c76, %c0_201] : memref<98x128xbf16, #tpu.memory_space<vmem>>, vector<2x64xbf16>
    %c38_202 = arith.constant 38 : index
    %c0_203 = arith.constant 0 : index
    %c0_204 = arith.constant 0 : index
    %266 = vector.load %arg8[%c38_202, %c0_203, %c0_204] : memref<49x64x128xbf16, #tpu.memory_space<vmem>>, vector<1x64x128xbf16>
    %267 = vector.shape_cast %266 : vector<1x64x128xbf16> to vector<64x128xbf16>
    %cst_205 = arith.constant dense<0.000000e+00> : vector<2x128xf32>
    %268 = tpu.matmul %265, %267, %cst_205 {dimension_numbers = #tpu.dot_dimension_numbers<[1], [0], [0], [1], [0, 0, 1, 1], [], []>} : vector<2x64xbf16>, vector<64x128xbf16>, vector<2x128xf32> -> vector<2x128xf32>
    %269 = arith.addf %264, %268 : vector<2x128xf32>
    %c78 = arith.constant 78 : index
    %c0_206 = arith.constant 0 : index
    %270 = vector.load %arg13[%c78, %c0_206] : memref<98x128xbf16, #tpu.memory_space<vmem>>, vector<2x64xbf16>
    %c39 = arith.constant 39 : index
    %c0_207 = arith.constant 0 : index
    %c0_208 = arith.constant 0 : index
    %271 = vector.load %arg8[%c39, %c0_207, %c0_208] : memref<49x64x128xbf16, #tpu.memory_space<vmem>>, vector<1x64x128xbf16>
    %272 = vector.shape_cast %271 : vector<1x64x128xbf16> to vector<64x128xbf16>
    %cst_209 = arith.constant dense<0.000000e+00> : vector<2x128xf32>
    %273 = tpu.matmul %270, %272, %cst_209 {dimension_numbers = #tpu.dot_dimension_numbers<[1], [0], [0], [1], [0, 0, 1, 1], [], []>} : vector<2x64xbf16>, vector<64x128xbf16>, vector<2x128xf32> -> vector<2x128xf32>
    %274 = arith.addf %269, %273 : vector<2x128xf32>
    %c80 = arith.constant 80 : index
    %c0_210 = arith.constant 0 : index
    %275 = vector.load %arg13[%c80, %c0_210] : memref<98x128xbf16, #tpu.memory_space<vmem>>, vector<2x64xbf16>
    %c40_211 = arith.constant 40 : index
    %c0_212 = arith.constant 0 : index
    %c0_213 = arith.constant 0 : index
    %276 = vector.load %arg8[%c40_211, %c0_212, %c0_213] : memref<49x64x128xbf16, #tpu.memory_space<vmem>>, vector<1x64x128xbf16>
    %277 = vector.shape_cast %276 : vector<1x64x128xbf16> to vector<64x128xbf16>
    %cst_214 = arith.constant dense<0.000000e+00> : vector<2x128xf32>
    %278 = tpu.matmul %275, %277, %cst_214 {dimension_numbers = #tpu.dot_dimension_numbers<[1], [0], [0], [1], [0, 0, 1, 1], [], []>} : vector<2x64xbf16>, vector<64x128xbf16>, vector<2x128xf32> -> vector<2x128xf32>
    %279 = arith.addf %274, %278 : vector<2x128xf32>
    %c82 = arith.constant 82 : index
    %c0_215 = arith.constant 0 : index
    %280 = vector.load %arg13[%c82, %c0_215] : memref<98x128xbf16, #tpu.memory_space<vmem>>, vector<2x64xbf16>
    %c41 = arith.constant 41 : index
    %c0_216 = arith.constant 0 : index
    %c0_217 = arith.constant 0 : index
    %281 = vector.load %arg8[%c41, %c0_216, %c0_217] : memref<49x64x128xbf16, #tpu.memory_space<vmem>>, vector<1x64x128xbf16>
    %282 = vector.shape_cast %281 : vector<1x64x128xbf16> to vector<64x128xbf16>
    %cst_218 = arith.constant dense<0.000000e+00> : vector<2x128xf32>
    %283 = tpu.matmul %280, %282, %cst_218 {dimension_numbers = #tpu.dot_dimension_numbers<[1], [0], [0], [1], [0, 0, 1, 1], [], []>} : vector<2x64xbf16>, vector<64x128xbf16>, vector<2x128xf32> -> vector<2x128xf32>
    %284 = arith.addf %279, %283 : vector<2x128xf32>
    %c84 = arith.constant 84 : index
    %c0_219 = arith.constant 0 : index
    %285 = vector.load %arg13[%c84, %c0_219] : memref<98x128xbf16, #tpu.memory_space<vmem>>, vector<2x64xbf16>
    %c42_220 = arith.constant 42 : index
    %c0_221 = arith.constant 0 : index
    %c0_222 = arith.constant 0 : index
    %286 = vector.load %arg8[%c42_220, %c0_221, %c0_222] : memref<49x64x128xbf16, #tpu.memory_space<vmem>>, vector<1x64x128xbf16>
    %287 = vector.shape_cast %286 : vector<1x64x128xbf16> to vector<64x128xbf16>
    %cst_223 = arith.constant dense<0.000000e+00> : vector<2x128xf32>
    %288 = tpu.matmul %285, %287, %cst_223 {dimension_numbers = #tpu.dot_dimension_numbers<[1], [0], [0], [1], [0, 0, 1, 1], [], []>} : vector<2x64xbf16>, vector<64x128xbf16>, vector<2x128xf32> -> vector<2x128xf32>
    %289 = arith.addf %284, %288 : vector<2x128xf32>
    %c86 = arith.constant 86 : index
    %c0_224 = arith.constant 0 : index
    %290 = vector.load %arg13[%c86, %c0_224] : memref<98x128xbf16, #tpu.memory_space<vmem>>, vector<2x64xbf16>
    %c43 = arith.constant 43 : index
    %c0_225 = arith.constant 0 : index
    %c0_226 = arith.constant 0 : index
    %291 = vector.load %arg8[%c43, %c0_225, %c0_226] : memref<49x64x128xbf16, #tpu.memory_space<vmem>>, vector<1x64x128xbf16>
    %292 = vector.shape_cast %291 : vector<1x64x128xbf16> to vector<64x128xbf16>
    %cst_227 = arith.constant dense<0.000000e+00> : vector<2x128xf32>
    %293 = tpu.matmul %290, %292, %cst_227 {dimension_numbers = #tpu.dot_dimension_numbers<[1], [0], [0], [1], [0, 0, 1, 1], [], []>} : vector<2x64xbf16>, vector<64x128xbf16>, vector<2x128xf32> -> vector<2x128xf32>
    %294 = arith.addf %289, %293 : vector<2x128xf32>
    %c88 = arith.constant 88 : index
    %c0_228 = arith.constant 0 : index
    %295 = vector.load %arg13[%c88, %c0_228] : memref<98x128xbf16, #tpu.memory_space<vmem>>, vector<2x64xbf16>
    %c44_229 = arith.constant 44 : index
    %c0_230 = arith.constant 0 : index
    %c0_231 = arith.constant 0 : index
    %296 = vector.load %arg8[%c44_229, %c0_230, %c0_231] : memref<49x64x128xbf16, #tpu.memory_space<vmem>>, vector<1x64x128xbf16>
    %297 = vector.shape_cast %296 : vector<1x64x128xbf16> to vector<64x128xbf16>
    %cst_232 = arith.constant dense<0.000000e+00> : vector<2x128xf32>
    %298 = tpu.matmul %295, %297, %cst_232 {dimension_numbers = #tpu.dot_dimension_numbers<[1], [0], [0], [1], [0, 0, 1, 1], [], []>} : vector<2x64xbf16>, vector<64x128xbf16>, vector<2x128xf32> -> vector<2x128xf32>
    %299 = arith.addf %294, %298 : vector<2x128xf32>
    %c90 = arith.constant 90 : index
    %c0_233 = arith.constant 0 : index
    %300 = vector.load %arg13[%c90, %c0_233] : memref<98x128xbf16, #tpu.memory_space<vmem>>, vector<2x64xbf16>
    %c45 = arith.constant 45 : index
    %c0_234 = arith.constant 0 : index
    %c0_235 = arith.constant 0 : index
    %301 = vector.load %arg8[%c45, %c0_234, %c0_235] : memref<49x64x128xbf16, #tpu.memory_space<vmem>>, vector<1x64x128xbf16>
    %302 = vector.shape_cast %301 : vector<1x64x128xbf16> to vector<64x128xbf16>
    %cst_236 = arith.constant dense<0.000000e+00> : vector<2x128xf32>
    %303 = tpu.matmul %300, %302, %cst_236 {dimension_numbers = #tpu.dot_dimension_numbers<[1], [0], [0], [1], [0, 0, 1, 1], [], []>} : vector<2x64xbf16>, vector<64x128xbf16>, vector<2x128xf32> -> vector<2x128xf32>
    %304 = arith.addf %299, %303 : vector<2x128xf32>
    %c92 = arith.constant 92 : index
    %c0_237 = arith.constant 0 : index
    %305 = vector.load %arg13[%c92, %c0_237] : memref<98x128xbf16, #tpu.memory_space<vmem>>, vector<2x64xbf16>
    %c46_238 = arith.constant 46 : index
    %c0_239 = arith.constant 0 : index
    %c0_240 = arith.constant 0 : index
    %306 = vector.load %arg8[%c46_238, %c0_239, %c0_240] : memref<49x64x128xbf16, #tpu.memory_space<vmem>>, vector<1x64x128xbf16>
    %307 = vector.shape_cast %306 : vector<1x64x128xbf16> to vector<64x128xbf16>
    %cst_241 = arith.constant dense<0.000000e+00> : vector<2x128xf32>
    %308 = tpu.matmul %305, %307, %cst_241 {dimension_numbers = #tpu.dot_dimension_numbers<[1], [0], [0], [1], [0, 0, 1, 1], [], []>} : vector<2x64xbf16>, vector<64x128xbf16>, vector<2x128xf32> -> vector<2x128xf32>
    %309 = arith.addf %304, %308 : vector<2x128xf32>
    %c94 = arith.constant 94 : index
    %c0_242 = arith.constant 0 : index
    %310 = vector.load %arg13[%c94, %c0_242] : memref<98x128xbf16, #tpu.memory_space<vmem>>, vector<2x64xbf16>
    %c47 = arith.constant 47 : index
    %c0_243 = arith.constant 0 : index
    %c0_244 = arith.constant 0 : index
    %311 = vector.load %arg8[%c47, %c0_243, %c0_244] : memref<49x64x128xbf16, #tpu.memory_space<vmem>>, vector<1x64x128xbf16>
    %312 = vector.shape_cast %311 : vector<1x64x128xbf16> to vector<64x128xbf16>
    %cst_245 = arith.constant dense<0.000000e+00> : vector<2x128xf32>
    %313 = tpu.matmul %310, %312, %cst_245 {dimension_numbers = #tpu.dot_dimension_numbers<[1], [0], [0], [1], [0, 0, 1, 1], [], []>} : vector<2x64xbf16>, vector<64x128xbf16>, vector<2x128xf32> -> vector<2x128xf32>
    %314 = arith.addf %309, %313 : vector<2x128xf32>
    %c96 = arith.constant 96 : index
    %c0_246 = arith.constant 0 : index
    %315 = vector.load %arg13[%c96, %c0_246] : memref<98x128xbf16, #tpu.memory_space<vmem>>, vector<2x64xbf16>
    %c48_247 = arith.constant 48 : index
    %c0_248 = arith.constant 0 : index
    %c0_249 = arith.constant 0 : index
    %316 = vector.load %arg8[%c48_247, %c0_248, %c0_249] : memref<49x64x128xbf16, #tpu.memory_space<vmem>>, vector<1x64x128xbf16>
    %317 = vector.shape_cast %316 : vector<1x64x128xbf16> to vector<64x128xbf16>
    %cst_250 = arith.constant dense<0.000000e+00> : vector<2x128xf32>
    %318 = tpu.matmul %315, %317, %cst_250 {dimension_numbers = #tpu.dot_dimension_numbers<[1], [0], [0], [1], [0, 0, 1, 1], [], []>} : vector<2x64xbf16>, vector<64x128xbf16>, vector<2x128xf32> -> vector<2x128xf32>
    %319 = arith.addf %314, %318 : vector<2x128xf32>
    %c0_251 = arith.constant 0 : index
    %c0_252 = arith.constant 0 : index
    %320 = vector.load %arg9[%c0_251, %c0_252] : memref<1x128xf32, #tpu.memory_space<vmem>>, vector<1x128xf32>
    %321 = vector.broadcast %320 : vector<1x128xf32> to vector<2x128xf32>
    %322 = arith.addf %319, %321 : vector<2x128xf32>
    %cst_253 = arith.constant 0.000000e+00 : f32
    %323 = vector.broadcast %cst_253 : f32 to vector<2x128xf32>
    %324 = arith.maximumf %322, %323 : vector<2x128xf32>
    %325 = arith.truncf %324 : vector<2x128xf32> to vector<2x128xbf16>
    %c0_254 = arith.constant 0 : index
    %c0_255 = arith.constant 0 : index
    %326 = vector.load %arg10[%c0_254, %c0_255] : memref<128x128xbf16, #tpu.memory_space<vmem>>, vector<128x128xbf16>
    %cst_256 = arith.constant dense<0.000000e+00> : vector<2x128xf32>
    %327 = tpu.matmul %325, %326, %cst_256 {dimension_numbers = #tpu.dot_dimension_numbers<[1], [0], [0], [1], [0, 0, 1, 1], [], []>} : vector<2x128xbf16>, vector<128x128xbf16>, vector<2x128xf32> -> vector<2x128xf32>
    %c0_257 = arith.constant 0 : index
    %c0_258 = arith.constant 0 : index
    %328 = vector.load %arg11[%c0_257, %c0_258] : memref<1x128xf32, #tpu.memory_space<vmem>>, vector<1x128xf32>
    %329 = vector.broadcast %328 : vector<1x128xf32> to vector<2x128xf32>
    %330 = arith.addf %327, %329 : vector<2x128xf32>
    %c0_259 = arith.constant 0 : index
    %c0_260 = arith.constant 0 : index
    %331 = vector.load %arg12[%c0_259, %c0_260] : memref<2x128xf32, #tpu.memory_space<vmem>>, vector<2x128xf32>
    tpu.vector_store %arg12[%c0_259, %c0_260], %330 {strides = array<i32>} : memref<2x128xf32, #tpu.memory_space<vmem>>, vector<2x128xf32>,
    return
  }
  func.func @transform_0(%arg0: i32) -> (i32, i32) {
    %c0_i32 = arith.constant 0 : i32
    %c0_i32_0 = arith.constant 0 : i32
    %c0_i32_1 = arith.constant 0 : i32
    return %c0_i32, %c0_i32_0 : i32, i32
  }
  func.func @transform_1(%arg0: i32) -> (i32, i32) {
    %c0_i32 = arith.constant 0 : i32
    %c0_i32_0 = arith.constant 0 : i32
    %c0_i32_1 = arith.constant 0 : i32
    return %c0_i32, %c0_i32_0 : i32, i32
  }
  func.func @transform_2(%arg0: i32) -> (i32, i32) {
    %c0_i32 = arith.constant 0 : i32
    %c0_i32_0 = arith.constant 0 : i32
    %c0_i32_1 = arith.constant 0 : i32
    return %c0_i32, %c0_i32_0 : i32, i32
  }
  func.func @transform_3(%arg0: i32) -> (i32, i32) {
    %c0_i32 = arith.constant 0 : i32
    %c0_i32_0 = arith.constant 0 : i32
    %c0_i32_1 = arith.constant 0 : i32
    return %c0_i32, %c0_i32_0 : i32, i32
  }
  func.func @transform_4(%arg0: i32) -> (i32, i32) {
    %c0_i32 = arith.constant 0 : i32
    %c0_i32_0 = arith.constant 0 : i32
    %c0_i32_1 = arith.constant 0 : i32
    return %c0_i32, %c0_i32_0 : i32, i32
  }
  func.func @transform_5(%arg0: i32) -> (i32, i32) {
    %c0_i32 = arith.constant 0 : i32
    %c0_i32_0 = arith.constant 0 : i32
    %c0_i32_1 = arith.constant 0 : i32
    return %c0_i32, %c0_i32_0 : i32, i32
  }
  func.func @transform_6(%arg0: i32) -> (i32, i32) {
    %c0_i32 = arith.constant 0 : i32
    %c0_i32_0 = arith.constant 0 : i32
    %c0_i32_1 = arith.constant 0 : i32
    return %c0_i32, %c0_i32_0 : i32, i32
  }
  func.func @transform_7(%arg0: i32) -> (i32, i32, i32) {
    %c0_i32 = arith.constant 0 : i32
    %c0_i32_0 = arith.constant 0 : i32
    %c0_i32_1 = arith.constant 0 : i32
    %c0_i32_2 = arith.constant 0 : i32
    return %c0_i32, %c0_i32_0, %c0_i32_1 : i32, i32, i32
  }
  func.func @transform_8(%arg0: i32) -> (i32, i32) {
    %c0_i32 = arith.constant 0 : i32
    %c0_i32_0 = arith.constant 0 : i32
    %c0_i32_1 = arith.constant 0 : i32
    return %c0_i32, %c0_i32_0 : i32, i32
  }
  func.func @transform_9(%arg0: i32) -> (i32, i32) {
    %c0_i32 = arith.constant 0 : i32
    %c0_i32_0 = arith.constant 0 : i32
    %c0_i32_1 = arith.constant 0 : i32
    return %c0_i32, %c0_i32_0 : i32, i32
  }
  func.func @transform_10(%arg0: i32) -> (i32, i32) {
    %c0_i32 = arith.constant 0 : i32
    %c0_i32_0 = arith.constant 0 : i32
    %c0_i32_1 = arith.constant 0 : i32
    return %c0_i32, %c0_i32_0 : i32, i32
  }
  func.func @transform_11(%arg0: i32) -> (i32, i32) {
    %c0_i32 = arith.constant 0 : i32
    %c0_i32_0 = arith.constant 0 : i32
    %c0_i32_1 = arith.constant 0 : i32
    return %c0_i32, %c0_i32_0 : i32, i32
  }
}

</mosaic_0001>

<llo_original>
// kernel: net_forward.1
$region0: #{net_forward.1}
  #allocation0 [shape = 'u32[]', space=smem, size = 0x4, offset = 0x4, fixed_abs, tag = 'smem constant byte address 0x4 - core index']
  #allocation1 [shape = 'u32[144,128]{1,0:T(1,128)}', space=vmem, size = 0x12000, scoped, tag = 'internal scratch']
  #allocation2 [shape = 'bf16[98,128]{1,0:T(8,128)(2,1)}', space=vmem, size = 0x6800, scoped, tag = 'scratch operand']
  %s0 = inlined_call_operand.vmem [shape: bf16[98,16], index: 0, kind: input, shape index: {}]
  %s1 = inlined_call_operand.hbm [shape: bf16[16,512], index: 1, kind: input, shape index: {}]
  %s2 = inlined_call_operand.vmem [shape: f32[1,128], index: 2, kind: input, shape index: {}]
  %s3 = inlined_call_operand.vmem [shape: f32[1,128], index: 3, kind: input, shape index: {}]
  %s4 = inlined_call_operand.vmem [shape: bf16[512,128], index: 4, kind: input, shape index: {}]
  %s5 = inlined_call_operand.vmem [shape: f32[1,128], index: 5, kind: input, shape index: {}]
  %s6 = inlined_call_operand.vmem [shape: f32[1,128], index: 6, kind: input, shape index: {}]
  %s7 = inlined_call_operand.vmem [shape: bf16[49,64,128], index: 7, kind: input, shape index: {}]
  %s8 = inlined_call_operand.vmem [shape: f32[1,128], index: 8, kind: input, shape index: {}]
  %s9 = inlined_call_operand.hbm [shape: bf16[128,128], index: 9, kind: input, shape index: {}]
  %s10 = inlined_call_operand.vmem [shape: f32[1,128], index: 10, kind: input, shape index: {}]
  %s11 = inlined_call_operand.hbm [shape: f32[2,128], index: 11, kind: output, shape index: {}]
  %s12 = sld [smem:[#allocation0]]
  $region62: #{net_forward.1} parent=0
    _
  %s14 = ssub.s32 1, %s12
  %s15 = scalar_select 0, %s14, %s12
  $region1: #{net_forward.1} parent=0
    #allocation3 [shape = 'u8[16384]{0}', space=vmem, size = 0x4000, scoped, tag = 'input window, operand 1, single buffered']
    #allocation4 [shape = 's32[1]{0}', space=sflag, size = 0x4, scoped, tag = 'scoped memory for net_forward.1']
    #allocation5 [shape = 's32[1]{0}', space=sflag, size = 0x4, scoped, tag = 'scoped memory for net_forward.1']
    #allocation6 [shape = 'u8[32768]{0}', space=vmem, size = 0x8000, scoped, tag = 'input window, operand 9, single buffered']
    #allocation7 [shape = 's32[1]{0}', space=sflag, size = 0x4, scoped, tag = 'scoped memory for net_forward.1']
    #allocation8 [shape = 'u8[1024]{0}', space=vmem, size = 0x400, scoped, tag = 'output window, operand 0, single buffered']
    %16 = vsyncpa [#allocation4], 0
    %17 = vsyncpa [#allocation7], 0
    %18 = vsyncpa [#allocation5], 0
    // Predicated region
    $region2: #{net_forward.1} parent=1 // pred_check
      _
    $region3: #{net_forward.1} parent=1 // pred_check_branch
      %20 = sbr.rel (0) target = $region5
    $region4: #{net_forward.1} parent=1 // pred_region
      _
    $region5: #{net_forward.1} parent=1 // pred_fallthru
      _
    // Predicated region
    $region6: #{net_forward.1} parent=1 // pred_check
      _
    $region7: #{net_forward.1} parent=1 // pred_check_branch
      %22 = sbr.rel (0) target = $region9
    $region8: #{net_forward.1} parent=1 // pred_region
      %s24 = ssub.s32 512, 512
      %25 = vsyncadd [#allocation4], %s24
      %s26 = sshll.u32 [#allocation3], 4
      %s27 = int_to_ptr.vmem [resolvable:$true] %s26
      %32 = dma.hbm_to_vmem [thread:$0]  %s1, 512, %s27, [#allocation4], 256, 256, 16
    $region9: #{net_forward.1} parent=1 // pred_fallthru
      _
    // Predicated region
    $region10: #{net_forward.1} parent=1 // pred_check
      _
    $region11: #{net_forward.1} parent=1 // pred_check_branch
      %34 = sbr.rel (0) target = $region13
    $region12: #{net_forward.1} parent=1 // pred_region
      _
    $region13: #{net_forward.1} parent=1 // pred_fallthru
      _
    // Predicated region
    $region14: #{net_forward.1} parent=1 // pred_check
      _
    $region15: #{net_forward.1} parent=1 // pred_check_branch
      %36 = sbr.rel (0) target = $region17
    $region16: #{net_forward.1} parent=1 // pred_region
      _
    $region17: #{net_forward.1} parent=1 // pred_fallthru
      _
    // Predicated region
    $region18: #{net_forward.1} parent=1 // pred_check
      _
    $region19: #{net_forward.1} parent=1 // pred_check_branch
      %38 = sbr.rel (0) target = $region21
    $region20: #{net_forward.1} parent=1 // pred_region
      _
    $region21: #{net_forward.1} parent=1 // pred_fallthru
      _
    // Predicated region
    $region22: #{net_forward.1} parent=1 // pred_check
      _
    $region23: #{net_forward.1} parent=1 // pred_check_branch
      %40 = sbr.rel (0) target = $region25
    $region24: #{net_forward.1} parent=1 // pred_region
      _
    $region25: #{net_forward.1} parent=1 // pred_fallthru
      _
    // Predicated region
    $region26: #{net_forward.1} parent=1 // pred_check
      _
    $region27: #{net_forward.1} parent=1 // pred_check_branch
      %42 = sbr.rel (0) target = $region29
    $region28: #{net_forward.1} parent=1 // pred_region
      _
    $region29: #{net_forward.1} parent=1 // pred_fallthru
      _
    // Predicated region
    $region30: #{net_forward.1} parent=1 // pred_check
      _
    $region31: #{net_forward.1} parent=1 // pred_check_branch
      %44 = sbr.rel (0) target = $region33
    $region32: #{net_forward.1} parent=1 // pred_region
      _
    $region33: #{net_forward.1} parent=1 // pred_fallthru
      _
    // Predicated region
    $region34: #{net_forward.1} parent=1 // pred_check
      _
    $region35: #{net_forward.1} parent=1 // pred_check_branch
      %46 = sbr.rel (0) target = $region37
    $region36: #{net_forward.1} parent=1 // pred_region
      _
    $region37: #{net_forward.1} parent=1 // pred_fallthru
      _
    // Predicated region
    $region38: #{net_forward.1} parent=1 // pred_check
      _
    $region39: #{net_forward.1} parent=1 // pred_check_branch
      %48 = sbr.rel (0) target = $region41
    $region40: #{net_forward.1} parent=1 // pred_region
      %s50 = ssub.s32 1024, 1024
      %51 = vsyncadd [#allocation7], %s50
      %s52 = sshll.u32 [#allocation6], 4
      %s53 = int_to_ptr.vmem [resolvable:$true] %s52
      %58 = dma.hbm_to_vmem [thread:$0]  %s9, 1024, %s53, [#allocation7], 64, 64, 4
    $region41: #{net_forward.1} parent=1 // pred_fallthru
      _
    // Predicated region
    $region42: #{net_forward.1} parent=1 // pred_check
      _
    $region43: #{net_forward.1} parent=1 // pred_check_branch
      %60 = sbr.rel (0) target = $region45
    $region44: #{net_forward.1} parent=1 // pred_region
      _
    $region45: #{net_forward.1} parent=1 // pred_fallthru
      _
    // Predicated region
    $region46: #{net_forward.1} parent=1 // pred_check
      _
    $region47: #{net_forward.1} parent=1 // pred_check_branch
      %62 = sbr.rel (0) target = $region49
    $region48: #{net_forward.1} parent=1 // pred_region
      %63 = dma.done [#allocation4], 512
    $region49: #{net_forward.1} parent=1 // pred_fallthru
      _
    // Predicated region
    $region50: #{net_forward.1} parent=1 // pred_check
      _
    $region51: #{net_forward.1} parent=1 // pred_check_branch
      %65 = sbr.rel (0) target = $region53
    $region52: #{net_forward.1} parent=1 // pred_region
      %66 = dma.done [#allocation7], 1024
    $region53: #{net_forward.1} parent=1 // pred_fallthru
      _
    %v68 = vld [vmem:[%s0] sm:$0xf]
    %v69 = vld [vmem:[%s0 + $0x4] sm:$0xf]
    %v70 = vld [vmem:[%s0 + $0x8] sm:$0xf]
    %v71 = vld [vmem:[%s0 + $0xc] sm:$0xf]
    %v72 = vld [vmem:[%s0 + $0x10] sm:$0xf]
    %v73 = vld [vmem:[%s0 + $0x14] sm:$0xf]
    %v74 = vld [vmem:[%s0 + $0x18] sm:$0xf]
    %v75 = vld [vmem:[%s0 + $0x1c] sm:$0xf]
    %v76 = vld [vmem:[%s0 + $0x20] sm:$0xf]
    %v77 = vld [vmem:[%s0 + $0x24] sm:$0xf]
    %v78 = vld [vmem:[%s0 + $0x28] sm:$0xf]
    %v79 = vld [vmem:[%s0 + $0x2c] sm:$0xf]
    %v80 = vld [vmem:[%s0 + $0x30] sm:$0x1]
    %v81 = vld [vmem:[#allocation3] sm:$0xff]
    %v82 = vld [vmem:[#allocation3 + $0x8] sm:$0xff]
    %v83 = vld [vmem:[#allocation3 + $0x10] sm:$0xff]
    %v84 = vld [vmem:[#allocation3 + $0x18] sm:$0xff]
    %v98 = vunpack.c.l.b16 %v68
    %v99 = vunpack.c.l.b16 %v69
    %v100 = vunpack.c.l.b16 %v70
    %v101 = vunpack.c.l.b16 %v71
    %v102 = vunpack.c.l.b16 %v72
    %v103 = vunpack.c.l.b16 %v73
    %v104 = vunpack.c.l.b16 %v74
    %v105 = vunpack.c.l.b16 %v75
    %v106 = vunpack.c.l.b16 %v76
    %v107 = vunpack.c.l.b16 %v77
    %v108 = vunpack.c.l.b16 %v78
    %v109 = vunpack.c.l.b16 %v79
    %v110 = vunpack.c.l.b16 %v80
    %v111 = vpack.c.b16 %v99, %v98
    %v112 = vpack.c.b16 %v101, %v100
    %v113 = vpack.c.b16 %v103, %v102
    %v114 = vpack.c.b16 %v105, %v104
    %v115 = vpack.c.b16 %v107, %v106
    %v116 = vpack.c.b16 %v109, %v108
    %v117 = vpack.c.b16 %v110, %v110
    %v122 = vunpack.c.l.b16 %v81
    %v123 = vunpack.c.h.b16 %v81
    %v124 = vunpack.c.l.b16 %v82
    %v125 = vunpack.c.h.b16 %v82
    %v126 = vunpack.c.l.b16 %v83
    %v127 = vunpack.c.h.b16 %v83
    %v128 = vunpack.c.l.b16 %v84
    %v129 = vunpack.c.h.b16 %v84
    %v130 = vpack.c.b16 %v126, %v122
    %v131 = vpack.c.b16 %v127, %v123
    %v132 = vpack.c.b16 %v128, %v124
    %v133 = vpack.c.b16 %v129, %v125
    %vm138 = vcmask 130048
    %v140 = vsel %vm138, %v111, 0
    %v143 = vsel %vm138, %v112, 0
    %v146 = vsel %vm138, %v113, 0
    %v149 = vsel %vm138, %v114, 0
    %v152 = vsel %vm138, %v115, 0
    %v155 = vsel %vm138, %v116, 0
    %v158 = vsel %vm138, %v117, 0
    %160 = vmatprep.subr.bf16.mxu0 0
    %161 = vmatpush1.bf16.msra.mxu0 0
    %162 = vmatprep.subr.bf16.mxu0 0
    %163 = vmatpush1.bf16.msra.mxu0 0
    %164 = vmatprep.subr.bf16.mxu0 0
    %165 = vmatpush1.bf16.msra.mxu0 0
    %166 = vmatprep.subr.bf16.mxu0 0
    %167 = vmatpush1.bf16.msra.mxu0 0
    %168 = vmatprep.subr.bf16.mxu0 0
    %169 = vmatpush1.bf16.msra.mxu0 0
    %170 = vmatprep.subr.bf16.mxu0 0
    %171 = vmatpush1.bf16.msra.mxu0 0
    %172 = vmatprep.subr.bf16.mxu0 0
    %173 = vmatpush1.bf16.msra.mxu0 0
    %174 = vmatprep.subr.bf16.mxu0 %v131
    %175 = vmatpush1.bf16.msra.mxu0 %v130
    %176 = vmatprep.subr.bf16.mxu0 0
    %177 = vmatpush2.bf16.msra.mxu0 0
    %178 = vmatprep.subr.bf16.mxu0 0
    %179 = vmatpush2.bf16.msra.mxu0 0
    %180 = vmatprep.subr.bf16.mxu0 0
    %181 = vmatpush2.bf16.msra.mxu0 0
    %182 = vmatprep.subr.bf16.mxu0 0
    %183 = vmatpush2.bf16.msra.mxu0 0
    %184 = vmatprep.subr.bf16.mxu0 0
    %185 = vmatpush2.bf16.msra.mxu0 0
    %186 = vmatprep.subr.bf16.mxu0 0
    %187 = vmatpush2.bf16.msra.mxu0 0
    %188 = vmatprep.subr.bf16.mxu0 0
    %189 = vmatpush2.bf16.msra.mxu0 0
    %190 = vmatprep.subr.bf16.mxu0 0
    %191 = vmatpush2.bf16.msra.mxu0 0
    %192 = vmatprep.mubr.bf16.mxu0 0
    %193 = vmatmul.mubr.bf16.gmra.mxu0 %v140
    %v194 = vpop.f32.mrf.mxu0
    %v195 = vadd.f32 0.0, %v194
    %v196 = vpop.f32.mrf.mxu0
    %v197 = vadd.f32 0.0, %v196
    %v198 = vpop.f32.mrf.mxu0
    %v199 = vadd.f32 0.0, %v198
    %v200 = vpop.f32.mrf.mxu0
    %v201 = vadd.f32 0.0, %v200
    %202 = vmatprep.mubr.bf16.mxu0 0
    %203 = vmatmul.mubr.bf16.gmra.mxu0 %v143
    %v204 = vpop.f32.mrf.mxu0
    %v205 = vadd.f32 0.0, %v204
    %v206 = vpop.f32.mrf.mxu0
    %v207 = vadd.f32 0.0, %v206
    %v208 = vpop.f32.mrf.mxu0
    %v209 = vadd.f32 0.0, %v208
    %v210 = vpop.f32.mrf.mxu0
    %v211 = vadd.f32 0.0, %v210
    %212 = vmatprep.mubr.bf16.mxu0 0
    %213 = vmatmul.mubr.bf16.gmra.mxu0 %v146
    %v214 = vpop.f32.mrf.mxu0
    %v215 = vadd.f32 0.0, %v214
    %v216 = vpop.f32.mrf.mxu0
    %v217 = vadd.f32 0.0, %v216
    %v218 = vpop.f32.mrf.mxu0
    %v219 = vadd.f32 0.0, %v218
    %v220 = vpop.f32.mrf.mxu0
    %v221 = vadd.f32 0.0, %v220
    %222 = vmatprep.mubr.bf16.mxu0 0
    %223 = vmatmul.mubr.bf16.gmra.mxu0 %v149
    %v224 = vpop.f32.mrf.mxu0
    %v225 = vadd.f32 0.0, %v224
    %v226 = vpop.f32.mrf.mxu0
    %v227 = vadd.f32 0.0, %v226
    %v228 = vpop.f32.mrf.mxu0
    %v229 = vadd.f32 0.0, %v228
    %v230 = vpop.f32.mrf.mxu0
    %v231 = vadd.f32 0.0, %v230
    %232 = vmatprep.mubr.bf16.mxu0 0
    %233 = vmatmul.mubr.bf16.gmra.mxu0 %v152
    %v234 = vpop.f32.mrf.mxu0
    %v235 = vadd.f32 0.0, %v234
    %v236 = vpop.f32.mrf.mxu0
    %v237 = vadd.f32 0.0, %v236
    %v238 = vpop.f32.mrf.mxu0
    %v239 = vadd.f32 0.0, %v238
    %v240 = vpop.f32.mrf.mxu0
    %v241 = vadd.f32 0.0, %v240
    %242 = vmatprep.mubr.bf16.mxu0 0
    %243 = vmatmul.mubr.bf16.gmra.mxu0 %v155
    %v244 = vpop.f32.mrf.mxu0
    %v245 = vadd.f32 0.0, %v244
    %v246 = vpop.f32.mrf.mxu0
    %v247 = vadd.f32 0.0, %v246
    %v248 = vpop.f32.mrf.mxu0
    %v249 = vadd.f32 0.0, %v248
    %v250 = vpop.f32.mrf.mxu0
    %v251 = vadd.f32 0.0, %v250
    %252 = vmatprep.mubr.bf16.mxu0 0
    %253 = vmatmul.mubr.bf16.gmra.mxu0 %v158
    %v254 = vpop.f32.mrf.mxu0
    %v255 = vadd.f32 0.0, %v254
    %v256 = vpop.f32.mrf.mxu0
    %v257 = vadd.f32 0.0, %v256
    %v258 = vpop.f32.mrf.mxu0
    %v259 = vpop.f32.mrf.mxu0
    %260 = vdwg.mxu0
    %261 = vmatprep.subr.bf16.mxu0 0
    %262 = vmatpush1.bf16.msra.mxu0 0
    %263 = vmatprep.subr.bf16.mxu0 0
    %264 = vmatpush1.bf16.msra.mxu0 0
    %265 = vmatprep.subr.bf16.mxu0 0
    %266 = vmatpush1.bf16.msra.mxu0 0
    %267 = vmatprep.subr.bf16.mxu0 0
    %268 = vmatpush1.bf16.msra.mxu0 0
    %269 = vmatprep.subr.bf16.mxu0 0
    %270 = vmatpush1.bf16.msra.mxu0 0
    %271 = vmatprep.subr.bf16.mxu0 0
    %272 = vmatpush1.bf16.msra.mxu0 0
    %273 = vmatprep.subr.bf16.mxu0 0
    %274 = vmatpush1.bf16.msra.mxu0 0
    %275 = vmatprep.subr.bf16.mxu0 %v133
    %276 = vmatpush1.bf16.msra.mxu0 %v132
    %277 = vmatprep.subr.bf16.mxu0 0
    %278 = vmatpush2.bf16.msra.mxu0 0
    %279 = vmatprep.subr.bf16.mxu0 0
    %280 = vmatpush2.bf16.msra.mxu0 0
    %281 = vmatprep.subr.bf16.mxu0 0
    %282 = vmatpush2.bf16.msra.mxu0 0
    %283 = vmatprep.subr.bf16.mxu0 0
    %284 = vmatpush2.bf16.msra.mxu0 0
    %285 = vmatprep.subr.bf16.mxu0 0
    %286 = vmatpush2.bf16.msra.mxu0 0
    %287 = vmatprep.subr.bf16.mxu0 0
    %288 = vmatpush2.bf16.msra.mxu0 0
    %289 = vmatprep.subr.bf16.mxu0 0
    %290 = vmatpush2.bf16.msra.mxu0 0
    %291 = vmatprep.subr.bf16.mxu0 0
    %292 = vmatpush2.bf16.msra.mxu0 0
    %293 = vmatprep.mubr.bf16.mxu0 0
    %294 = vmatmul.mubr.bf16.gmra.mxu0 %v140
    %v295 = vpop.f32.mrf.mxu0
    %v296 = vadd.f32 0.0, %v295
    %v297 = vpop.f32.mrf.mxu0
    %v298 = vadd.f32 0.0, %v297
    %v299 = vpop.f32.mrf.mxu0
    %v300 = vadd.f32 0.0, %v299
    %v301 = vpop.f32.mrf.mxu0
    %v302 = vadd.f32 0.0, %v301
    %303 = vmatprep.mubr.bf16.mxu0 0
    %304 = vmatmul.mubr.bf16.gmra.mxu0 %v143
    %v305 = vpop.f32.mrf.mxu0
    %v306 = vadd.f32 0.0, %v305
    %v307 = vpop.f32.mrf.mxu0
    %v308 = vadd.f32 0.0, %v307
    %v309 = vpop.f32.mrf.mxu0
    %v310 = vadd.f32 0.0, %v309
    %v311 = vpop.f32.mrf.mxu0
    %v312 = vadd.f32 0.0, %v311
    %313 = vmatprep.mubr.bf16.mxu0 0
    %314 = vmatmul.mubr.bf16.gmra.mxu0 %v146
    %v315 = vpop.f32.mrf.mxu0
    %v316 = vadd.f32 0.0, %v315
    %v317 = vpop.f32.mrf.mxu0
    %v318 = vadd.f32 0.0, %v317
    %v319 = vpop.f32.mrf.mxu0
    %v320 = vadd.f32 0.0, %v319
    %v321 = vpop.f32.mrf.mxu0
    %v322 = vadd.f32 0.0, %v321
    %323 = vmatprep.mubr.bf16.mxu0 0
    %324 = vmatmul.mubr.bf16.gmra.mxu0 %v149
    %v325 = vpop.f32.mrf.mxu0
    %v326 = vadd.f32 0.0, %v325
    %v327 = vpop.f32.mrf.mxu0
    %v328 = vadd.f32 0.0, %v327
    %v329 = vpop.f32.mrf.mxu0
    %v330 = vadd.f32 0.0, %v329
    %v331 = vpop.f32.mrf.mxu0
    %v332 = vadd.f32 0.0, %v331
    %333 = vmatprep.mubr.bf16.mxu0 0
    %334 = vmatmul.mubr.bf16.gmra.mxu0 %v152
    %v335 = vpop.f32.mrf.mxu0
    %v336 = vadd.f32 0.0, %v335
    %v337 = vpop.f32.mrf.mxu0
    %v338 = vadd.f32 0.0, %v337
    %v339 = vpop.f32.mrf.mxu0
    %v340 = vadd.f32 0.0, %v339
    %v341 = vpop.f32.mrf.mxu0
    %v342 = vadd.f32 0.0, %v341
    %343 = vmatprep.mubr.bf16.mxu0 0
    %344 = vmatmul.mubr.bf16.gmra.mxu0 %v155
    %v345 = vpop.f32.mrf.mxu0
    %v346 = vadd.f32 0.0, %v345
    %v347 = vpop.f32.mrf.mxu0
    %v348 = vadd.f32 0.0, %v347
    %v349 = vpop.f32.mrf.mxu0
    %v350 = vadd.f32 0.0, %v349
    %v351 = vpop.f32.mrf.mxu0
    %v352 = vadd.f32 0.0, %v351
    %353 = vmatprep.mubr.bf16.mxu0 0
    %354 = vmatmul.mubr.bf16.gmra.mxu0 %v158
    %v355 = vpop.f32.mrf.mxu0
    %v356 = vadd.f32 0.0, %v355
    %v357 = vpop.f32.mrf.mxu0
    %v358 = vadd.f32 0.0, %v357
    %v359 = vpop.f32.mrf.mxu0
    %v360 = vpop.f32.mrf.mxu0
    %361 = vdwg.mxu0
    %v362 = vadd.f32 %v195, %v199
    %v363 = vadd.f32 %v362, %v205
    %v364 = vadd.f32 %v363, %v209
    %v365 = vadd.f32 %v364, %v215
    %v366 = vadd.f32 %v365, %v219
    %v367 = vadd.f32 %v366, %v225
    %v368 = vadd.f32 %v367, %v229
    %v369 = vadd.f32 %v368, %v235
    %v370 = vadd.f32 %v369, %v239
    %v371 = vadd.f32 %v370, %v245
    %v372 = vadd.f32 %v371, %v249
    %vm373 = vcmask 1041408
    %v374 = vsel %vm373, %v255, 0.0
    %v375 = vadd.f32 %v372, %v374
    %v376 = vrot.slane %v375, 4
    %v377 = vadd.f32 %v375, %v376
    %v378 = vrot.slane %v377, 2
    %v379 = vadd.f32 %v377, %v378
    %v380 = vrot.slane %v379, 1
    %v381 = vadd.f32 %v379, %v380
    %v382 = vadd.f32 %v197, %v201
    %v383 = vadd.f32 %v382, %v207
    %v384 = vadd.f32 %v383, %v211
    %v385 = vadd.f32 %v384, %v217
    %v386 = vadd.f32 %v385, %v221
    %v387 = vadd.f32 %v386, %v227
    %v388 = vadd.f32 %v387, %v231
    %v389 = vadd.f32 %v388, %v237
    %v390 = vadd.f32 %v389, %v241
    %v391 = vadd.f32 %v390, %v247
    %v392 = vadd.f32 %v391, %v251
    %v393 = vsel %vm373, %v257, 0.0
    %v394 = vadd.f32 %v392, %v393
    %v395 = vrot.slane %v394, 4
    %v396 = vadd.f32 %v394, %v395
    %v397 = vrot.slane %v396, 2
    %v398 = vadd.f32 %v396, %v397
    %v399 = vrot.slane %v398, 1
    %v400 = vadd.f32 %v398, %v399
    %v401 = vadd.f32 %v296, %v300
    %v402 = vadd.f32 %v401, %v306
    %v403 = vadd.f32 %v402, %v310
    %v404 = vadd.f32 %v403, %v316
    %v405 = vadd.f32 %v404, %v320
    %v406 = vadd.f32 %v405, %v326
    %v407 = vadd.f32 %v406, %v330
    %v408 = vadd.f32 %v407, %v336
    %v409 = vadd.f32 %v408, %v340
    %v410 = vadd.f32 %v409, %v346
    %v411 = vadd.f32 %v410, %v350
    %v412 = vsel %vm373, %v356, 0.0
    %v413 = vadd.f32 %v411, %v412
    %v414 = vrot.slane %v413, 4
    %v415 = vadd.f32 %v413, %v414
    %v416 = vrot.slane %v415, 2
    %v417 = vadd.f32 %v415, %v416
    %v418 = vrot.slane %v417, 1
    %v419 = vadd.f32 %v417, %v418
    %v420 = vadd.f32 %v298, %v302
    %v421 = vadd.f32 %v420, %v308
    %v422 = vadd.f32 %v421, %v312
    %v423 = vadd.f32 %v422, %v318
    %v424 = vadd.f32 %v423, %v322
    %v425 = vadd.f32 %v424, %v328
    %v426 = vadd.f32 %v425, %v332
    %v427 = vadd.f32 %v426, %v338
    %v428 = vadd.f32 %v427, %v342
    %v429 = vadd.f32 %v428, %v348
    %v430 = vadd.f32 %v429, %v352
    %v431 = vsel %vm373, %v358, 0.0
    %v432 = vadd.f32 %v430, %v431
    %v433 = vrot.slane %v432, 4
    %v434 = vadd.f32 %v432, %v433
    %v435 = vrot.slane %v434, 2
    %v436 = vadd.f32 %v434, %v435
    %v437 = vrot.slane %v436, 1
    %v438 = vadd.f32 %v436, %v437
    %v439 = vmul.f32 %v195, %v195
    %v440 = vmul.f32 %v197, %v197
    %v441 = vmul.f32 %v296, %v296
    %v442 = vmul.f32 %v298, %v298
    %v443 = vmul.f32 %v199, %v199
    %v444 = vmul.f32 %v201, %v201
    %v445 = vmul.f32 %v300, %v300
    %v446 = vmul.f32 %v302, %v302
    %v447 = vmul.f32 %v205, %v205
    %v448 = vmul.f32 %v207, %v207
    %v449 = vmul.f32 %v306, %v306
    %v450 = vmul.f32 %v308, %v308
    %v451 = vmul.f32 %v209, %v209
    %v452 = vmul.f32 %v211, %v211
    %v453 = vmul.f32 %v310, %v310
    %v454 = vmul.f32 %v312, %v312
    %v455 = vmul.f32 %v215, %v215
    %v456 = vmul.f32 %v217, %v217
    %v457 = vmul.f32 %v316, %v316
    %v458 = vmul.f32 %v318, %v318
    %v459 = vmul.f32 %v219, %v219
    %v460 = vmul.f32 %v221, %v221
    %v461 = vmul.f32 %v320, %v320
    %v462 = vmul.f32 %v322, %v322
    %v463 = vmul.f32 %v225, %v225
    %v464 = vmul.f32 %v227, %v227
    %v465 = vmul.f32 %v326, %v326
    %v466 = vmul.f32 %v328, %v328
    %v467 = vmul.f32 %v229, %v229
    %v468 = vmul.f32 %v231, %v231
    %v469 = vmul.f32 %v330, %v330
    %v470 = vmul.f32 %v332, %v332
    %v471 = vmul.f32 %v235, %v235
    %v472 = vmul.f32 %v237, %v237
    %v473 = vmul.f32 %v336, %v336
    %v474 = vmul.f32 %v338, %v338
    %v475 = vmul.f32 %v239, %v239
    %v476 = vmul.f32 %v241, %v241
    %v477 = vmul.f32 %v340, %v340
    %v478 = vmul.f32 %v342, %v342
    %v479 = vmul.f32 %v245, %v245
    %v480 = vmul.f32 %v247, %v247
    %v481 = vmul.f32 %v346, %v346
    %v482 = vmul.f32 %v348, %v348
    %v483 = vmul.f32 %v249, %v249
    %v484 = vmul.f32 %v251, %v251
    %v485 = vmul.f32 %v350, %v350
    %v486 = vmul.f32 %v352, %v352
    %v487 = vmul.f32 %v255, %v255
    %v488 = vmul.f32 %v257, %v257
    %v489 = vmul.f32 %v356, %v356
    %v490 = vmul.f32 %v358, %v358
    %v491 = vadd.f32 %v439, %v443
    %v492 = vadd.f32 %v491, %v447
    %v493 = vadd.f32 %v492, %v451
    %v494 = vadd.f32 %v493, %v455
    %v495 = vadd.f32 %v494, %v459
    %v496 = vadd.f32 %v495, %v463
    %v497 = vadd.f32 %v496, %v467
    %v498 = vadd.f32 %v497, %v471
    %v499 = vadd.f32 %v498, %v475
    %v500 = vadd.f32 %v499, %v479
    %v501 = vadd.f32 %v500, %v483
    %v502 = vsel %vm373, %v487, 0.0
    %v503 = vadd.f32 %v501, %v502
    %v504 = vrot.slane %v503, 4
    %v505 = vadd.f32 %v503, %v504
    %v506 = vrot.slane %v505, 2
    %v507 = vadd.f32 %v505, %v506
    %v508 = vrot.slane %v507, 1
    %v509 = vadd.f32 %v507, %v508
    %v510 = vadd.f32 %v440, %v444
    %v511 = vadd.f32 %v510, %v448
    %v512 = vadd.f32 %v511, %v452
    %v513 = vadd.f32 %v512, %v456
    %v514 = vadd.f32 %v513, %v460
    %v515 = vadd.f32 %v514, %v464
    %v516 = vadd.f32 %v515, %v468
    %v517 = vadd.f32 %v516, %v472
    %v518 = vadd.f32 %v517, %v476
    %v519 = vadd.f32 %v518, %v480
    %v520 = vadd.f32 %v519, %v484
    %v521 = vsel %vm373, %v488, 0.0
    %v522 = vadd.f32 %v520, %v521
    %v523 = vrot.slane %v522, 4
    %v524 = vadd.f32 %v522, %v523
    %v525 = vrot.slane %v524, 2
    %v526 = vadd.f32 %v524, %v525
    %v527 = vrot.slane %v526, 1
    %v528 = vadd.f32 %v526, %v527
    %v529 = vadd.f32 %v441, %v445
    %v530 = vadd.f32 %v529, %v449
    %v531 = vadd.f32 %v530, %v453
    %v532 = vadd.f32 %v531, %v457
    %v533 = vadd.f32 %v532, %v461
    %v534 = vadd.f32 %v533, %v465
    %v535 = vadd.f32 %v534, %v469
    %v536 = vadd.f32 %v535, %v473
    %v537 = vadd.f32 %v536, %v477
    %v538 = vadd.f32 %v537, %v481
    %v539 = vadd.f32 %v538, %v485
    %v540 = vsel %vm373, %v489, 0.0
    %v541 = vadd.f32 %v539, %v540
    %v542 = vrot.slane %v541, 4
    %v543 = vadd.f32 %v541, %v542
    %v544 = vrot.slane %v543, 2
    %v545 = vadd.f32 %v543, %v544
    %v546 = vrot.slane %v545, 1
    %v547 = vadd.f32 %v545, %v546
    %v548 = vadd.f32 %v442, %v446
    %v549 = vadd.f32 %v548, %v450
    %v550 = vadd.f32 %v549, %v454
    %v551 = vadd.f32 %v550, %v458
    %v552 = vadd.f32 %v551, %v462
    %v553 = vadd.f32 %v552, %v466
    %v554 = vadd.f32 %v553, %v470
    %v555 = vadd.f32 %v554, %v474
    %v556 = vadd.f32 %v555, %v478
    %v557 = vadd.f32 %v556, %v482
    %v558 = vadd.f32 %v557, %v486
    %v559 = vsel %vm373, %v490, 0.0
    %v560 = vadd.f32 %v558, %v559
    %v561 = vrot.slane %v560, 4
    %v562 = vadd.f32 %v560, %v561
    %v563 = vrot.slane %v562, 2
    %v564 = vadd.f32 %v562, %v563
    %v565 = vrot.slane %v564, 1
    %v566 = vadd.f32 %v564, %v565
    %v567 = vadd.f32 %v381, %v400
    %v568 = vadd.f32 %v567, %v419
    %v569 = vadd.f32 %v568, %v438
    %v570 = vadd.f32 %v509, %v528
    %v571 = vadd.f32 %v570, %v547
    %v572 = vadd.f32 %v571, %v566
    %v573 = vmul.f32 %v569, 0.0025510204
    %v574 = vmul.f32 %v572, 0.0025510204
    %v575 = vmul.f32 %v573, %v573
    %v576 = vsub.f32 %v574, %v575
    %v577 = vld [vmem:[%s2] sm:$0x1]
    %v578 = vadd.f32 %v576, 1e-05
    %v579 = vrsqrt.pop %v578
    %v580 = vmul.f32 %v577, %v579
    %v581 = vld [vmem:[%s3] sm:$0x1]
    %v582 = vmul.f32 %v573, %v580
    %v583 = vsub.f32 %v581, %v582
    %v584 = vlaneseq
    %v585 = vshrl.u32 %v584, 7
    %v586 = vsub.s32 0, %v585
    %v587 = vrot.slane %v580, %v586
    %v588 = vmul.f32 %v195, %v587
    %v589 = vmul.f32 %v197, %v587
    %v590 = vmul.f32 %v296, %v587
    %v591 = vmul.f32 %v298, %v587
    %v592 = vmul.f32 %v199, %v587
    %v593 = vmul.f32 %v201, %v587
    %v594 = vmul.f32 %v300, %v587
    %v595 = vmul.f32 %v302, %v587
    %v596 = vmul.f32 %v205, %v587
    %v597 = vmul.f32 %v207, %v587
    %v598 = vmul.f32 %v306, %v587
    %v599 = vmul.f32 %v308, %v587
    %v600 = vmul.f32 %v209, %v587
    %v601 = vmul.f32 %v211, %v587
    %v602 = vmul.f32 %v310, %v587
    %v603 = vmul.f32 %v312, %v587
    %v604 = vmul.f32 %v215, %v587
    %v605 = vmul.f32 %v217, %v587
    %v606 = vmul.f32 %v316, %v587
    %v607 = vmul.f32 %v318, %v587
    %v608 = vmul.f32 %v219, %v587
    %v609 = vmul.f32 %v221, %v587
    %v610 = vmul.f32 %v320, %v587
    %v611 = vmul.f32 %v322, %v587
    %v612 = vmul.f32 %v225, %v587
    %v613 = vmul.f32 %v227, %v587
    %v614 = vmul.f32 %v326, %v587
    %v615 = vmul.f32 %v328, %v587
    %v616 = vmul.f32 %v229, %v587
    %v617 = vmul.f32 %v231, %v587
    %v618 = vmul.f32 %v330, %v587
    %v619 = vmul.f32 %v332, %v587
    %v620 = vmul.f32 %v235, %v587
    %v621 = vmul.f32 %v237, %v587
    %v622 = vmul.f32 %v336, %v587
    %v623 = vmul.f32 %v338, %v587
    %v624 = vmul.f32 %v239, %v587
    %v625 = vmul.f32 %v241, %v587
    %v626 = vmul.f32 %v340, %v587
    %v627 = vmul.f32 %v342, %v587
    %v628 = vmul.f32 %v245, %v587
    %v629 = vmul.f32 %v247, %v587
    %v630 = vmul.f32 %v346, %v587
    %v631 = vmul.f32 %v348, %v587
    %v632 = vmul.f32 %v249, %v587
    %v633 = vmul.f32 %v251, %v587
    %v634 = vmul.f32 %v350, %v587
    %v635 = vmul.f32 %v352, %v587
    %v636 = vmul.f32 %v255, %v587
    %v637 = vmul.f32 %v257, %v587
    %v638 = vmul.f32 %v356, %v587
    %v639 = vmul.f32 %v358, %v587
    %v640 = vlaneseq
    %v641 = vshrl.u32 %v640, 7
    %v642 = vsub.s32 0, %v641
    %v643 = vrot.slane %v583, %v642
    %v644 = vadd.f32 %v588, %v643
    %v645 = vadd.f32 %v589, %v643
    %v646 = vadd.f32 %v590, %v643
    %v647 = vadd.f32 %v591, %v643
    %v648 = vadd.f32 %v592, %v643
    %v649 = vadd.f32 %v593, %v643
    %v650 = vadd.f32 %v594, %v643
    %v651 = vadd.f32 %v595, %v643
    %v652 = vadd.f32 %v596, %v643
    %v653 = vadd.f32 %v597, %v643
    %v654 = vadd.f32 %v598, %v643
    %v655 = vadd.f32 %v599, %v643
    %v656 = vadd.f32 %v600, %v643
    %v657 = vadd.f32 %v601, %v643
    %v658 = vadd.f32 %v602, %v643
    %v659 = vadd.f32 %v603, %v643
    %v660 = vadd.f32 %v604, %v643
    %v661 = vadd.f32 %v605, %v643
    %v662 = vadd.f32 %v606, %v643
    %v663 = vadd.f32 %v607, %v643
    %v664 = vadd.f32 %v608, %v643
    %v665 = vadd.f32 %v609, %v643
    %v666 = vadd.f32 %v610, %v643
    %v667 = vadd.f32 %v611, %v643
    %v668 = vadd.f32 %v612, %v643
    %v669 = vadd.f32 %v613, %v643
    %v670 = vadd.f32 %v614, %v643
    %v671 = vadd.f32 %v615, %v643
    %v672 = vadd.f32 %v616, %v643
    %v673 = vadd.f32 %v617, %v643
    %v674 = vadd.f32 %v618, %v643
    %v675 = vadd.f32 %v619, %v643
    %v676 = vadd.f32 %v620, %v643
    %v677 = vadd.f32 %v621, %v643
    %v678 = vadd.f32 %v622, %v643
    %v679 = vadd.f32 %v623, %v643
    %v680 = vadd.f32 %v624, %v643
    %v681 = vadd.f32 %v625, %v643
    %v682 = vadd.f32 %v626, %v643
    %v683 = vadd.f32 %v627, %v643
    %v684 = vadd.f32 %v628, %v643
    %v685 = vadd.f32 %v629, %v643
    %v686 = vadd.f32 %v630, %v643
    %v687 = vadd.f32 %v631, %v643
    %v688 = vadd.f32 %v632, %v643
    %v689 = vadd.f32 %v633, %v643
    %v690 = vadd.f32 %v634, %v643
    %v691 = vadd.f32 %v635, %v643
    %v692 = vadd.f32 %v636, %v643
    %v693 = vadd.f32 %v637, %v643
    %v694 = vadd.f32 %v638, %v643
    %v695 = vadd.f32 %v639, %v643
    %v696 = vmax.f32 %v644, 0.0
    %v697 = vmax.f32 %v645, 0.0
    %v698 = vmax.f32 %v646, 0.0
    %v699 = vmax.f32 %v647, 0.0
    %v700 = vmax.f32 %v648, 0.0
    %v701 = vmax.f32 %v649, 0.0
    %v702 = vmax.f32 %v650, 0.0
    %v703 = vmax.f32 %v651, 0.0
    %v704 = vmax.f32 %v652, 0.0
    %v705 = vmax.f32 %v653, 0.0
    %v706 = vmax.f32 %v654, 0.0
    %v707 = vmax.f32 %v655, 0.0
    %v708 = vmax.f32 %v656, 0.0
    %v709 = vmax.f32 %v657, 0.0
    %v710 = vmax.f32 %v658, 0.0
    %v711 = vmax.f32 %v659, 0.0
    %v712 = vmax.f32 %v660, 0.0
    %v713 = vmax.f32 %v661, 0.0
    %v714 = vmax.f32 %v662, 0.0
    %v715 = vmax.f32 %v663, 0.0
    %v716 = vmax.f32 %v664, 0.0
    %v717 = vmax.f32 %v665, 0.0
    %v718 = vmax.f32 %v666, 0.0
    %v719 = vmax.f32 %v667, 0.0
    %v720 = vmax.f32 %v668, 0.0
    %v721 = vmax.f32 %v669, 0.0
    %v722 = vmax.f32 %v670, 0.0
    %v723 = vmax.f32 %v671, 0.0
    %v724 = vmax.f32 %v672, 0.0
    %v725 = vmax.f32 %v673, 0.0
    %v726 = vmax.f32 %v674, 0.0
    %v727 = vmax.f32 %v675, 0.0
    %v728 = vmax.f32 %v676, 0.0
    %v729 = vmax.f32 %v677, 0.0
    %v730 = vmax.f32 %v678, 0.0
    %v731 = vmax.f32 %v679, 0.0
    %v732 = vmax.f32 %v680, 0.0
    %v733 = vmax.f32 %v681, 0.0
    %v734 = vmax.f32 %v682, 0.0
    %v735 = vmax.f32 %v683, 0.0
    %v736 = vmax.f32 %v684, 0.0
    %v737 = vmax.f32 %v685, 0.0
    %v738 = vmax.f32 %v686, 0.0
    %v739 = vmax.f32 %v687, 0.0
    %v740 = vmax.f32 %v688, 0.0
    %v741 = vmax.f32 %v689, 0.0
    %v742 = vmax.f32 %v690, 0.0
    %v743 = vmax.f32 %v691, 0.0
    %v744 = vmax.f32 %v692, 0.0
    %v745 = vmax.f32 %v693, 0.0
    %v746 = vmax.f32 %v694, 0.0
    %v747 = vmax.f32 %v695, 0.0
    %v748 = vpack.c.bf16 %v700, %v696
    %v749 = vpack.c.bf16 %v701, %v697
    %v750 = vpack.c.bf16 %v702, %v698
    %v751 = vpack.c.bf16 %v703, %v699
    %v752 = vpack.c.bf16 %v708, %v704
    %v753 = vpack.c.bf16 %v709, %v705
    %v754 = vpack.c.bf16 %v710, %v706
    %v755 = vpack.c.bf16 %v711, %v707
    %v756 = vpack.c.bf16 %v716, %v712
    %v757 = vpack.c.bf16 %v717, %v713
    %v758 = vpack.c.bf16 %v718, %v714
    %v759 = vpack.c.bf16 %v719, %v715
    %v760 = vpack.c.bf16 %v724, %v720
    %v761 = vpack.c.bf16 %v725, %v721
    %v762 = vpack.c.bf16 %v726, %v722
    %v763 = vpack.c.bf16 %v727, %v723
    %v764 = vpack.c.bf16 %v732, %v728
    %v765 = vpack.c.bf16 %v733, %v729
    %v766 = vpack.c.bf16 %v734, %v730
    %v767 = vpack.c.bf16 %v735, %v731
    %v768 = vpack.c.bf16 %v740, %v736
    %v769 = vpack.c.bf16 %v741, %v737
    %v770 = vpack.c.bf16 %v742, %v738
    %v771 = vpack.c.bf16 %v743, %v739
    %v772 = vpack.c.bf16 %v744, %v744
    %v773 = vpack.c.bf16 %v745, %v745
    %v774 = vpack.c.bf16 %v746, %v746
    %v775 = vpack.c.bf16 %v747, %v747
    %v776 = vld [vmem:[%s4] sm:$0xf]
    %v777 = vld [vmem:[%s4 + $0x4] sm:$0xf]
    %v778 = vld [vmem:[%s4 + $0x8] sm:$0xf]
    %v779 = vld [vmem:[%s4 + $0xc] sm:$0xf]
    %v780 = vld [vmem:[%s4 + $0x10] sm:$0xf]
    %v781 = vld [vmem:[%s4 + $0x14] sm:$0xf]
    %v782 = vld [vmem:[%s4 + $0x18] sm:$0xf]
    %v783 = vld [vmem:[%s4 + $0x1c] sm:$0xf]
    %v784 = vld [vmem:[%s4 + $0x20] sm:$0xf]
    %v785 = vld [vmem:[%s4 + $0x24] sm:$0xf]
    %v786 = vld [vmem:[%s4 + $0x28] sm:$0xf]
    %v787 = vld [vmem:[%s4 + $0x2c] sm:$0xf]
    %v788 = vld [vmem:[%s4 + $0x30] sm:$0xf]
    %v789 = vld [vmem:[%s4 + $0x34] sm:$0xf]
    %v790 = vld [vmem:[%s4 + $0x38] sm:$0xf]
    %v791 = vld [vmem:[%s4 + $0x3c] sm:$0xf]
    %v792 = vld [vmem:[%s4 + $0x40] sm:$0xf]
    %v793 = vld [vmem:[%s4 + $0x44] sm:$0xf]
    %v794 = vld [vmem:[%s4 + $0x48] sm:$0xf]
    %v795 = vld [vmem:[%s4 + $0x4c] sm:$0xf]
    %v796 = vld [vmem:[%s4 + $0x50] sm:$0xf]
    %v797 = vld [vmem:[%s4 + $0x54] sm:$0xf]
    %v798 = vld [vmem:[%s4 + $0x58] sm:$0xf]
    %v799 = vld [vmem:[%s4 + $0x5c] sm:$0xf]
    %v800 = vld [vmem:[%s4 + $0x60] sm:$0xf]
    %v801 = vld [vmem:[%s4 + $0x64] sm:$0xf]
    %v802 = vld [vmem:[%s4 + $0x68] sm:$0xf]
    %v803 = vld [vmem:[%s4 + $0x6c] sm:$0xf]
    %v804 = vld [vmem:[%s4 + $0x70] sm:$0xf]
    %v805 = vld [vmem:[%s4 + $0x74] sm:$0xf]
    %v806 = vld [vmem:[%s4 + $0x78] sm:$0xf]
    %v807 = vld [vmem:[%s4 + $0x7c] sm:$0xf]
    %v808 = vld [vmem:[%s4 + $0x80] sm:$0xf]
    %v809 = vld [vmem:[%s4 + $0x84] sm:$0xf]
    %v810 = vld [vmem:[%s4 + $0x88] sm:$0xf]
    %v811 = vld [vmem:[%s4 + $0x8c] sm:$0xf]
    %v812 = vld [vmem:[%s4 + $0x90] sm:$0xf]
    %v813 = vld [vmem:[%s4 + $0x94] sm:$0xf]
    %v814 = vld [vmem:[%s4 + $0x98] sm:$0xf]
    %v815 = vld [vmem:[%s4 + $0x9c] sm:$0xf]
    %v816 = vld [vmem:[%s4 + $0xa0] sm:$0xf]
    %v817 = vld [vmem:[%s4 + $0xa4] sm:$0xf]
    %v818 = vld [vmem:[%s4 + $0xa8] sm:$0xf]
    %v819 = vld [vmem:[%s4 + $0xac] sm:$0xf]
    %v820 = vld [vmem:[%s4 + $0xb0] sm:$0xf]
    %v821 = vld [vmem:[%s4 + $0xb4] sm:$0xf]
    %v822 = vld [vmem:[%s4 + $0xb8] sm:$0xf]
    %v823 = vld [vmem:[%s4 + $0xbc] sm:$0xf]
    %v824 = vld [vmem:[%s4 + $0xc0] sm:$0xf]
    %v825 = vld [vmem:[%s4 + $0xc4] sm:$0xf]
    %v826 = vld [vmem:[%s4 + $0xc8] sm:$0xf]
    %v827 = vld [vmem:[%s4 + $0xcc] sm:$0xf]
    %v828 = vld [vmem:[%s4 + $0xd0] sm:$0xf]
    %v829 = vld [vmem:[%s4 + $0xd4] sm:$0xf]
    %v830 = vld [vmem:[%s4 + $0xd8] sm:$0xf]
    %v831 = vld [vmem:[%s4 + $0xdc] sm:$0xf]
    %v832 = vld [vmem:[%s4 + $0xe0] sm:$0xf]
    %v833 = vld [vmem:[%s4 + $0xe4] sm:$0xf]
    %v834 = vld [vmem:[%s4 + $0xe8] sm:$0xf]
    %v835 = vld [vmem:[%s4 + $0xec] sm:$0xf]
    %v836 = vld [vmem:[%s4 + $0xf0] sm:$0xf]
    %v837 = vld [vmem:[%s4 + $0xf4] sm:$0xf]
    %v838 = vld [vmem:[%s4 + $0xf8] sm:$0xf]
    %v839 = vld [vmem:[%s4 + $0xfc] sm:$0xf]
    %v904 = vunpack.c.l.b16 %v776
    %v905 = vunpack.c.l.b16 %v777
    %v906 = vunpack.c.l.b16 %v778
    %v907 = vunpack.c.l.b16 %v779
    %v908 = vunpack.c.l.b16 %v780
    %v909 = vunpack.c.l.b16 %v781
    %v910 = vunpack.c.l.b16 %v782
    %v911 = vunpack.c.l.b16 %v783
    %v912 = vunpack.c.l.b16 %v784
    %v913 = vunpack.c.l.b16 %v785
    %v914 = vunpack.c.l.b16 %v786
    %v915 = vunpack.c.l.b16 %v787
    %v916 = vunpack.c.l.b16 %v788
    %v917 = vunpack.c.l.b16 %v789
    %v918 = vunpack.c.l.b16 %v790
    %v919 = vunpack.c.l.b16 %v791
    %v920 = vunpack.c.l.b16 %v792
    %v921 = vunpack.c.l.b16 %v793
    %v922 = vunpack.c.l.b16 %v794
    %v923 = vunpack.c.l.b16 %v795
    %v924 = vunpack.c.l.b16 %v796
    %v925 = vunpack.c.l.b16 %v797
    %v926 = vunpack.c.l.b16 %v798
    %v927 = vunpack.c.l.b16 %v799
    %v928 = vunpack.c.l.b16 %v800
    %v929 = vunpack.c.l.b16 %v801
    %v930 = vunpack.c.l.b16 %v802
    %v931 = vunpack.c.l.b16 %v803
    %v932 = vunpack.c.l.b16 %v804
    %v933 = vunpack.c.l.b16 %v805
    %v934 = vunpack.c.l.b16 %v806
    %v935 = vunpack.c.l.b16 %v807
    %v936 = vunpack.c.l.b16 %v808
    %v937 = vunpack.c.l.b16 %v809
    %v938 = vunpack.c.l.b16 %v810
    %v939 = vunpack.c.l.b16 %v811
    %v940 = vunpack.c.l.b16 %v812
    %v941 = vunpack.c.l.b16 %v813
    %v942 = vunpack.c.l.b16 %v814
    %v943 = vunpack.c.l.b16 %v815
    %v944 = vunpack.c.l.b16 %v816
    %v945 = vunpack.c.l.b16 %v817
    %v946 = vunpack.c.l.b16 %v818
    %v947 = vunpack.c.l.b16 %v819
    %v948 = vunpack.c.l.b16 %v820
    %v949 = vunpack.c.l.b16 %v821
    %v950 = vunpack.c.l.b16 %v822
    %v951 = vunpack.c.l.b16 %v823
    %v952 = vunpack.c.l.b16 %v824
    %v953 = vunpack.c.l.b16 %v825
    %v954 = vunpack.c.l.b16 %v826
    %v955 = vunpack.c.l.b16 %v827
    %v956 = vunpack.c.l.b16 %v828
    %v957 = vunpack.c.l.b16 %v829
    %v958 = vunpack.c.l.b16 %v830
    %v959 = vunpack.c.l.b16 %v831
    %v960 = vunpack.c.l.b16 %v832
    %v961 = vunpack.c.l.b16 %v833
    %v962 = vunpack.c.l.b16 %v834
    %v963 = vunpack.c.l.b16 %v835
    %v964 = vunpack.c.l.b16 %v836
    %v965 = vunpack.c.l.b16 %v837
    %v966 = vunpack.c.l.b16 %v838
    %v967 = vunpack.c.l.b16 %v839
    %v968 = vpack.c.b16 %v905, %v904
    %v969 = vpack.c.b16 %v907, %v906
    %v970 = vpack.c.b16 %v909, %v908
    %v971 = vpack.c.b16 %v911, %v910
    %v972 = vpack.c.b16 %v913, %v912
    %v973 = vpack.c.b16 %v915, %v914
    %v974 = vpack.c.b16 %v917, %v916
    %v975 = vpack.c.b16 %v919, %v918
    %v976 = vpack.c.b16 %v921, %v920
    %v977 = vpack.c.b16 %v923, %v922
    %v978 = vpack.c.b16 %v925, %v924
    %v979 = vpack.c.b16 %v927, %v926
    %v980 = vpack.c.b16 %v929, %v928
    %v981 = vpack.c.b16 %v931, %v930
    %v982 = vpack.c.b16 %v933, %v932
    %v983 = vpack.c.b16 %v935, %v934
    %v984 = vpack.c.b16 %v937, %v936
    %v985 = vpack.c.b16 %v939, %v938
    %v986 = vpack.c.b16 %v941, %v940
    %v987 = vpack.c.b16 %v943, %v942
    %v988 = vpack.c.b16 %v945, %v944
    %v989 = vpack.c.b16 %v947, %v946
    %v990 = vpack.c.b16 %v949, %v948
    %v991 = vpack.c.b16 %v951, %v950
    %v992 = vpack.c.b16 %v953, %v952
    %v993 = vpack.c.b16 %v955, %v954
    %v994 = vpack.c.b16 %v957, %v956
    %v995 = vpack.c.b16 %v959, %v958
    %v996 = vpack.c.b16 %v961, %v960
    %v997 = vpack.c.b16 %v963, %v962
    %v998 = vpack.c.b16 %v965, %v964
    %v999 = vpack.c.b16 %v967, %v966
    %1032 = vmatprep.subr.bf16.mxu0 0
    %1033 = vmatpush1.bf16.msra.mxu0 %v975
    %1034 = vmatprep.subr.bf16.mxu0 0
    %1035 = vmatpush1.bf16.msra.mxu0 %v974
    %1036 = vmatprep.subr.bf16.mxu0 0
    %1037 = vmatpush1.bf16.msra.mxu0 %v973
    %1038 = vmatprep.subr.bf16.mxu0 0
    %1039 = vmatpush1.bf16.msra.mxu0 %v972
    %1040 = vmatprep.subr.bf16.mxu0 0
    %1041 = vmatpush1.bf16.msra.mxu0 %v971
    %1042 = vmatprep.subr.bf16.mxu0 0
    %1043 = vmatpush1.bf16.msra.mxu0 %v970
    %1044 = vmatprep.subr.bf16.mxu0 0
    %1045 = vmatpush1.bf16.msra.mxu0 %v969
    %1046 = vmatprep.subr.bf16.mxu0 0
    %1047 = vmatpush1.bf16.msra.mxu0 %v968
    %1048 = vmatprep.subr.bf16.mxu0 0
    %1049 = vmatpush2.bf16.msra.mxu0 %v983
    %1050 = vmatprep.subr.bf16.mxu0 0
    %1051 = vmatpush2.bf16.msra.mxu0 %v982
    %1052 = vmatprep.subr.bf16.mxu0 0
    %1053 = vmatpush2.bf16.msra.mxu0 %v981
    %1054 = vmatprep.subr.bf16.mxu0 0
    %1055 = vmatpush2.bf16.msra.mxu0 %v980
    %1056 = vmatprep.subr.bf16.mxu0 0
    %1057 = vmatpush2.bf16.msra.mxu0 %v979
    %1058 = vmatprep.subr.bf16.mxu0 0
    %1059 = vmatpush2.bf16.msra.mxu0 %v978
    %1060 = vmatprep.subr.bf16.mxu0 0
    %1061 = vmatpush2.bf16.msra.mxu0 %v977
    %1062 = vmatprep.subr.bf16.mxu0 0
    %1063 = vmatpush2.bf16.msra.mxu0 %v976
    %1064 = vmatprep.mubr.bf16.mxu0 %v749
    %1065 = vmatmul.mubr.bf16.gmra.mxu0 %v748
    %v1066 = vpop.f32.mrf.mxu0
    %v1067 = vadd.f32 0.0, %v1066
    %v1068 = vpop.f32.mrf.mxu0
    %v1069 = vpop.f32.mrf.mxu0
    %v1070 = vadd.f32 0.0, %v1069
    %v1071 = vpop.f32.mrf.mxu0
    %1072 = vmatprep.mubr.bf16.mxu0 %v753
    %1073 = vmatmul.mubr.bf16.gmra.mxu0 %v752
    %v1074 = vpop.f32.mrf.mxu0
    %v1075 = vadd.f32 0.0, %v1074
    %v1076 = vpop.f32.mrf.mxu0
    %v1077 = vpop.f32.mrf.mxu0
    %v1078 = vadd.f32 0.0, %v1077
    %v1079 = vpop.f32.mrf.mxu0
    %1080 = vmatprep.mubr.bf16.mxu0 %v757
    %1081 = vmatmul.mubr.bf16.gmra.mxu0 %v756
    %v1082 = vpop.f32.mrf.mxu0
    %v1083 = vadd.f32 0.0, %v1082
    %v1084 = vpop.f32.mrf.mxu0
    %v1085 = vpop.f32.mrf.mxu0
    %v1086 = vadd.f32 0.0, %v1085
    %v1087 = vpop.f32.mrf.mxu0
    %1088 = vmatprep.mubr.bf16.mxu0 %v761
    %1089 = vmatmul.mubr.bf16.gmra.mxu0 %v760
    %v1090 = vpop.f32.mrf.mxu0
    %v1091 = vadd.f32 0.0, %v1090
    %v1092 = vpop.f32.mrf.mxu0
    %v1093 = vpop.f32.mrf.mxu0
    %v1094 = vadd.f32 0.0, %v1093
    %v1095 = vpop.f32.mrf.mxu0
    %1096 = vmatprep.mubr.bf16.mxu0 %v765
    %1097 = vmatmul.mubr.bf16.gmra.mxu0 %v764
    %v1098 = vpop.f32.mrf.mxu0
    %v1099 = vadd.f32 0.0, %v1098
    %v1100 = vpop.f32.mrf.mxu0
    %v1101 = vpop.f32.mrf.mxu0
    %v1102 = vadd.f32 0.0, %v1101
    %v1103 = vpop.f32.mrf.mxu0
    %1104 = vmatprep.mubr.bf16.mxu0 %v769
    %1105 = vmatmul.mubr.bf16.gmra.mxu0 %v768
    %v1106 = vpop.f32.mrf.mxu0
    %v1107 = vadd.f32 0.0, %v1106
    %v1108 = vpop.f32.mrf.mxu0
    %v1109 = vpop.f32.mrf.mxu0
    %v1110 = vadd.f32 0.0, %v1109
    %v1111 = vpop.f32.mrf.mxu0
    %1112 = vmatprep.mubr.bf16.mxu0 %v773
    %1113 = vmatmul.mubr.bf16.gmra.mxu0 %v772
    %v1114 = vpop.f32.mrf.mxu0
    %v1115 = vadd.f32 0.0, %v1114
    %v1116 = vpop.f32.mrf.mxu0
    %v1117 = vpop.f32.mrf.mxu0
    %v1118 = vpop.f32.mrf.mxu0
    %1119 = vdwg.mxu0
    %1120 = vmatprep.subr.bf16.mxu0 0
    %1121 = vmatpush1.bf16.msra.mxu0 %v991
    %1122 = vmatprep.subr.bf16.mxu0 0
    %1123 = vmatpush1.bf16.msra.mxu0 %v990
    %1124 = vmatprep.subr.bf16.mxu0 0
    %1125 = vmatpush1.bf16.msra.mxu0 %v989
    %1126 = vmatprep.subr.bf16.mxu0 0
    %1127 = vmatpush1.bf16.msra.mxu0 %v988
    %1128 = vmatprep.subr.bf16.mxu0 0
    %1129 = vmatpush1.bf16.msra.mxu0 %v987
    %1130 = vmatprep.subr.bf16.mxu0 0
    %1131 = vmatpush1.bf16.msra.mxu0 %v986
    %1132 = vmatprep.subr.bf16.mxu0 0
    %1133 = vmatpush1.bf16.msra.mxu0 %v985
    %1134 = vmatprep.subr.bf16.mxu0 0
    %1135 = vmatpush1.bf16.msra.mxu0 %v984
    %1136 = vmatprep.subr.bf16.mxu0 0
    %1137 = vmatpush2.bf16.msra.mxu0 %v999
    %1138 = vmatprep.subr.bf16.mxu0 0
    %1139 = vmatpush2.bf16.msra.mxu0 %v998
    %1140 = vmatprep.subr.bf16.mxu0 0
    %1141 = vmatpush2.bf16.msra.mxu0 %v997
    %1142 = vmatprep.subr.bf16.mxu0 0
    %1143 = vmatpush2.bf16.msra.mxu0 %v996
    %1144 = vmatprep.subr.bf16.mxu0 0
    %1145 = vmatpush2.bf16.msra.mxu0 %v995
    %1146 = vmatprep.subr.bf16.mxu0 0
    %1147 = vmatpush2.bf16.msra.mxu0 %v994
    %1148 = vmatprep.subr.bf16.mxu0 0
    %1149 = vmatpush2.bf16.msra.mxu0 %v993
    %1150 = vmatprep.subr.bf16.mxu0 0
    %1151 = vmatpush2.bf16.msra.mxu0 %v992
    %1152 = vmatprep.mubr.bf16.mxu0 %v751
    %1153 = vmatmul.mubr.bf16.gmra.mxu0 %v750
    %v1154 = vpop.f32.mrf.mxu0
    %v1155 = vadd.f32 %v1067, %v1154
    %v1156 = vpop.f32.mrf.mxu0
    %v1157 = vpop.f32.mrf.mxu0
    %v1158 = vadd.f32 %v1070, %v1157
    %v1159 = vpop.f32.mrf.mxu0
    %1160 = vmatprep.mubr.bf16.mxu0 %v755
    %1161 = vmatmul.mubr.bf16.gmra.mxu0 %v754
    %v1162 = vpop.f32.mrf.mxu0
    %v1163 = vadd.f32 %v1075, %v1162
    %v1164 = vpop.f32.mrf.mxu0
    %v1165 = vpop.f32.mrf.mxu0
    %v1166 = vadd.f32 %v1078, %v1165
    %v1167 = vpop.f32.mrf.mxu0
    %1168 = vmatprep.mubr.bf16.mxu0 %v759
    %1169 = vmatmul.mubr.bf16.gmra.mxu0 %v758
    %v1170 = vpop.f32.mrf.mxu0
    %v1171 = vadd.f32 %v1083, %v1170
    %v1172 = vpop.f32.mrf.mxu0
    %v1173 = vpop.f32.mrf.mxu0
    %v1174 = vadd.f32 %v1086, %v1173
    %v1175 = vpop.f32.mrf.mxu0
    %1176 = vmatprep.mubr.bf16.mxu0 %v763
    %1177 = vmatmul.mubr.bf16.gmra.mxu0 %v762
    %v1178 = vpop.f32.mrf.mxu0
    %v1179 = vadd.f32 %v1091, %v1178
    %v1180 = vpop.f32.mrf.mxu0
    %v1181 = vpop.f32.mrf.mxu0
    %v1182 = vadd.f32 %v1094, %v1181
    %v1183 = vpop.f32.mrf.mxu0
    %1184 = vmatprep.mubr.bf16.mxu0 %v767
    %1185 = vmatmul.mubr.bf16.gmra.mxu0 %v766
    %v1186 = vpop.f32.mrf.mxu0
    %v1187 = vadd.f32 %v1099, %v1186
    %v1188 = vpop.f32.mrf.mxu0
    %v1189 = vpop.f32.mrf.mxu0
    %v1190 = vadd.f32 %v1102, %v1189
    %v1191 = vpop.f32.mrf.mxu0
    %1192 = vmatprep.mubr.bf16.mxu0 %v771
    %1193 = vmatmul.mubr.bf16.gmra.mxu0 %v770
    %v1194 = vpop.f32.mrf.mxu0
    %v1195 = vadd.f32 %v1107, %v1194
    %v1196 = vpop.f32.mrf.mxu0
    %v1197 = vpop.f32.mrf.mxu0
    %v1198 = vadd.f32 %v1110, %v1197
    %v1199 = vpop.f32.mrf.mxu0
    %1200 = vmatprep.mubr.bf16.mxu0 %v775
    %1201 = vmatmul.mubr.bf16.gmra.mxu0 %v774
    %v1202 = vpop.f32.mrf.mxu0
    %v1203 = vadd.f32 %v1115, %v1202
    %v1204 = vpop.f32.mrf.mxu0
    %v1205 = vpop.f32.mrf.mxu0
    %v1206 = vpop.f32.mrf.mxu0
    %1207 = vdwg.mxu0
    %v1208 = vadd.f32 %v1155, %v1158
    %v1209 = vadd.f32 %v1208, %v1163
    %v1210 = vadd.f32 %v1209, %v1166
    %v1211 = vadd.f32 %v1210, %v1171
    %v1212 = vadd.f32 %v1211, %v1174
    %v1213 = vadd.f32 %v1212, %v1179
    %v1214 = vadd.f32 %v1213, %v1182
    %v1215 = vadd.f32 %v1214, %v1187
    %v1216 = vadd.f32 %v1215, %v1190
    %v1217 = vadd.f32 %v1216, %v1195
    %v1218 = vadd.f32 %v1217, %v1198
    %v1219 = vsel %vm373, %v1203, 0.0
    %v1220 = vadd.f32 %v1218, %v1219
    %v1221 = vrot.slane %v1220, 4
    %v1222 = vadd.f32 %v1220, %v1221
    %v1223 = vrot.slane %v1222, 2
    %v1224 = vadd.f32 %v1222, %v1223
    %v1225 = vrot.slane %v1224, 1
    %v1226 = vadd.f32 %v1224, %v1225
    %v1227 = vmul.f32 %v1155, %v1155
    %v1228 = vmul.f32 %v1158, %v1158
    %v1229 = vmul.f32 %v1163, %v1163
    %v1230 = vmul.f32 %v1166, %v1166
    %v1231 = vmul.f32 %v1171, %v1171
    %v1232 = vmul.f32 %v1174, %v1174
    %v1233 = vmul.f32 %v1179, %v1179
    %v1234 = vmul.f32 %v1182, %v1182
    %v1235 = vmul.f32 %v1187, %v1187
    %v1236 = vmul.f32 %v1190, %v1190
    %v1237 = vmul.f32 %v1195, %v1195
    %v1238 = vmul.f32 %v1198, %v1198
    %v1239 = vmul.f32 %v1203, %v1203
    %v1240 = vadd.f32 %v1227, %v1228
    %v1241 = vadd.f32 %v1240, %v1229
    %v1242 = vadd.f32 %v1241, %v1230
    %v1243 = vadd.f32 %v1242, %v1231
    %v1244 = vadd.f32 %v1243, %v1232
    %v1245 = vadd.f32 %v1244, %v1233
    %v1246 = vadd.f32 %v1245, %v1234
    %v1247 = vadd.f32 %v1246, %v1235
    %v1248 = vadd.f32 %v1247, %v1236
    %v1249 = vadd.f32 %v1248, %v1237
    %v1250 = vadd.f32 %v1249, %v1238
    %v1251 = vsel %vm373, %v1239, 0.0
    %v1252 = vadd.f32 %v1250, %v1251
    %v1253 = vrot.slane %v1252, 4
    %v1254 = vadd.f32 %v1252, %v1253
    %v1255 = vrot.slane %v1254, 2
    %v1256 = vadd.f32 %v1254, %v1255
    %v1257 = vrot.slane %v1256, 1
    %v1258 = vadd.f32 %v1256, %v1257
    %v1259 = vmul.f32 %v1226, 0.010204081
    %v1260 = vmul.f32 %v1258, 0.010204081
    %v1261 = vmul.f32 %v1259, %v1259
    %v1262 = vsub.f32 %v1260, %v1261
    %v1263 = vld [vmem:[%s5] sm:$0x1]
    %v1264 = vadd.f32 %v1262, 1e-05
    %v1265 = vrsqrt.pop %v1264
    %v1266 = vmul.f32 %v1263, %v1265
    %v1267 = vld [vmem:[%s6] sm:$0x1]
    %v1268 = vmul.f32 %v1259, %v1266
    %v1269 = vsub.f32 %v1267, %v1268
    %v1271 = vlaneseq
    %v1272 = vshrl.u32 %v1271, 7
    %v1273 = vsub.s32 0, %v1272
    %v1274 = vrot.slane %v1266, %v1273
    %v1276 = vmul.f32 %v1155, %v1274
    %v1277 = vmul.f32 %v1158, %v1274
    %v1278 = vmul.f32 %v1163, %v1274
    %v1279 = vmul.f32 %v1166, %v1274
    %v1280 = vmul.f32 %v1171, %v1274
    %v1281 = vmul.f32 %v1174, %v1274
    %v1282 = vmul.f32 %v1179, %v1274
    %v1283 = vmul.f32 %v1182, %v1274
    %v1284 = vmul.f32 %v1187, %v1274
    %v1285 = vmul.f32 %v1190, %v1274
    %v1286 = vmul.f32 %v1195, %v1274
    %v1287 = vmul.f32 %v1198, %v1274
    %v1288 = vmul.f32 %v1203, %v1274
    %v1290 = vlaneseq
    %v1291 = vshrl.u32 %v1290, 7
    %v1292 = vsub.s32 0, %v1291
    %v1293 = vrot.slane %v1269, %v1292
    %v1295 = vadd.f32 %v1276, %v1293
    %v1296 = vadd.f32 %v1277, %v1293
    %v1297 = vadd.f32 %v1278, %v1293
    %v1298 = vadd.f32 %v1279, %v1293
    %v1299 = vadd.f32 %v1280, %v1293
    %v1300 = vadd.f32 %v1281, %v1293
    %v1301 = vadd.f32 %v1282, %v1293
    %v1302 = vadd.f32 %v1283, %v1293
    %v1303 = vadd.f32 %v1284, %v1293
    %v1304 = vadd.f32 %v1285, %v1293
    %v1305 = vadd.f32 %v1286, %v1293
    %v1306 = vadd.f32 %v1287, %v1293
    %v1307 = vadd.f32 %v1288, %v1293
    %v1308 = vmax.f32 %v1295, 0.0
    %v1309 = vmax.f32 %v1296, 0.0
    %v1310 = vmax.f32 %v1297, 0.0
    %v1311 = vmax.f32 %v1298, 0.0
    %v1312 = vmax.f32 %v1299, 0.0
    %v1313 = vmax.f32 %v1300, 0.0
    %v1314 = vmax.f32 %v1301, 0.0
    %v1315 = vmax.f32 %v1302, 0.0
    %v1316 = vmax.f32 %v1303, 0.0
    %v1317 = vmax.f32 %v1304, 0.0
    %v1318 = vmax.f32 %v1305, 0.0
    %v1319 = vmax.f32 %v1306, 0.0
    %v1320 = vmax.f32 %v1307, 0.0
    %v1321 = vpack.c.bf16 %v1309, %v1308
    %v1322 = vpack.c.bf16 %v1311, %v1310
    %v1323 = vpack.c.bf16 %v1313, %v1312
    %v1324 = vpack.c.bf16 %v1315, %v1314
    %v1325 = vpack.c.bf16 %v1317, %v1316
    %v1326 = vpack.c.bf16 %v1319, %v1318
    %v1327 = vpack.c.bf16 %v1320, %v1320
    %v1335 = vunpack.c.l.b16 %v1321
    %v1336 = vunpack.c.h.b16 %v1321
    %v1337 = vunpack.c.l.b16 %v1322
    %v1338 = vunpack.c.h.b16 %v1322
    %v1339 = vunpack.c.l.b16 %v1323
    %v1340 = vunpack.c.h.b16 %v1323
    %v1341 = vunpack.c.l.b16 %v1324
    %v1342 = vunpack.c.h.b16 %v1324
    %v1343 = vunpack.c.l.b16 %v1325
    %v1344 = vunpack.c.h.b16 %v1325
    %v1345 = vunpack.c.l.b16 %v1326
    %v1346 = vunpack.c.h.b16 %v1326
    %v1347 = vunpack.c.l.b16 %v1327
    %v1348 = vpack.c.b16 %v1335, %v1335
    %v1349 = vpack.c.b16 %v1336, %v1336
    %v1350 = vpack.c.b16 %v1337, %v1337
    %v1351 = vpack.c.b16 %v1338, %v1338
    %v1352 = vpack.c.b16 %v1339, %v1339
    %v1353 = vpack.c.b16 %v1340, %v1340
    %v1354 = vpack.c.b16 %v1341, %v1341
    %v1355 = vpack.c.b16 %v1342, %v1342
    %v1356 = vpack.c.b16 %v1343, %v1343
    %v1357 = vpack.c.b16 %v1344, %v1344
    %v1358 = vpack.c.b16 %v1345, %v1345
    %v1359 = vpack.c.b16 %v1346, %v1346
    %v1360 = vpack.c.b16 %v1347, %v1347
    %1374 = vst [vmem:[#allocation2] sm:$0xf] %v1348
    %1375 = vst [vmem:[#allocation2 + $0x4] sm:$0xf] %v1349
    %1376 = vst [vmem:[#allocation2 + $0x8] sm:$0xf] %v1350
    %1377 = vst [vmem:[#allocation2 + $0xc] sm:$0xf] %v1351
    %1378 = vst [vmem:[#allocation2 + $0x10] sm:$0xf] %v1352
    %1379 = vst [vmem:[#allocation2 + $0x14] sm:$0xf] %v1353
    %1380 = vst [vmem:[#allocation2 + $0x18] sm:$0xf] %v1354
    %1381 = vst [vmem:[#allocation2 + $0x1c] sm:$0xf] %v1355
    %1382 = vst [vmem:[#allocation2 + $0x20] sm:$0xf] %v1356
    %1383 = vst [vmem:[#allocation2 + $0x24] sm:$0xf] %v1357
    %1384 = vst [vmem:[#allocation2 + $0x28] sm:$0xf] %v1358
    %1385 = vst [vmem:[#allocation2 + $0x2c] sm:$0xf] %v1359
    %1386 = vst [vmem:[#allocation2 + $0x30] sm:$0x1] %v1360
    %v1387 = vld [vmem:[#allocation2] sm:$0x1]
    %v1388 = vld [vmem:[%s7] sm:$0xf]
    %v1389 = vld [vmem:[%s7 + $0x4] sm:$0xf]
    %v1390 = vld [vmem:[%s7 + $0x8] sm:$0xf]
    %v1391 = vld [vmem:[%s7 + $0xc] sm:$0xf]
    %v1392 = vld [vmem:[%s7 + $0x10] sm:$0xf]
    %v1393 = vld [vmem:[%s7 + $0x14] sm:$0xf]
    %v1394 = vld [vmem:[%s7 + $0x18] sm:$0xf]
    %v1395 = vld [vmem:[%s7 + $0x1c] sm:$0xf]
    %v1396 = vld [vmem:[#allocation2] sm:$0x2]
    %s1397 = scalar_lea.vmem %s7, 32
    %v1398 = vld [vmem:[%s1397] sm:$0xf]
    %v1399 = vld [vmem:[%s1397 + $0x4] sm:$0xf]
    %v1400 = vld [vmem:[%s1397 + $0x8] sm:$0xf]
    %v1401 = vld [vmem:[%s1397 + $0xc] sm:$0xf]
    %v1402 = vld [vmem:[%s1397 + $0x10] sm:$0xf]
    %v1403 = vld [vmem:[%s1397 + $0x14] sm:$0xf]
    %v1404 = vld [vmem:[%s1397 + $0x18] sm:$0xf]
    %v1405 = vld [vmem:[%s1397 + $0x1c] sm:$0xf]
    %v1407 = vunpack.c.l.b16 %v1396
    %v1408 = vpack.c.b16 %v1407, %v1407
    %v1409 = vrot.slane %v1408, 1
    %v1418 = vunpack.c.l.b16 %v1398
    %v1419 = vunpack.c.l.b16 %v1399
    %v1420 = vunpack.c.l.b16 %v1400
    %v1421 = vunpack.c.l.b16 %v1401
    %v1422 = vunpack.c.l.b16 %v1402
    %v1423 = vunpack.c.l.b16 %v1403
    %v1424 = vunpack.c.l.b16 %v1404
    %v1425 = vunpack.c.l.b16 %v1405
    %v1426 = vpack.c.b16 %v1419, %v1418
    %v1427 = vpack.c.b16 %v1421, %v1420
    %v1428 = vpack.c.b16 %v1423, %v1422
    %v1429 = vpack.c.b16 %v1425, %v1424
    %vm1434 = vcmask 523264
    %v1436 = vsel %vm1434, %v1409, 0
    %1438 = vmatprep.subr.bf16.mxu0 0
    %1439 = vmatpush1.bf16.msra.mxu0 0
    %1440 = vmatprep.subr.bf16.mxu0 0
    %1441 = vmatpush1.bf16.msra.mxu0 0
    %1442 = vmatprep.subr.bf16.mxu0 0
    %1443 = vmatpush1.bf16.msra.mxu0 0
    %1444 = vmatprep.subr.bf16.mxu0 0
    %1445 = vmatpush1.bf16.msra.mxu0 0
    %1446 = vmatprep.subr.bf16.mxu0 0
    %1447 = vmatpush1.bf16.msra.mxu0 %v1429
    %1448 = vmatprep.subr.bf16.mxu0 0
    %1449 = vmatpush1.bf16.msra.mxu0 %v1428
    %1450 = vmatprep.subr.bf16.mxu0 0
    %1451 = vmatpush1.bf16.msra.mxu0 %v1427
    %1452 = vmatprep.subr.bf16.mxu0 0
    %1453 = vmatpush1.bf16.msra.mxu0 %v1426
    %1454 = vmatprep.subr.bf16.mxu0 0
    %1455 = vmatpush2.bf16.msra.mxu0 0
    %1456 = vmatprep.subr.bf16.mxu0 0
    %1457 = vmatpush2.bf16.msra.mxu0 0
    %1458 = vmatprep.subr.bf16.mxu0 0
    %1459 = vmatpush2.bf16.msra.mxu0 0
    %1460 = vmatprep.subr.bf16.mxu0 0
    %1461 = vmatpush2.bf16.msra.mxu0 0
    %1462 = vmatprep.subr.bf16.mxu0 0
    %1463 = vmatpush2.bf16.msra.mxu0 0
    %1464 = vmatprep.subr.bf16.mxu0 0
    %1465 = vmatpush2.bf16.msra.mxu0 0
    %1466 = vmatprep.subr.bf16.mxu0 0
    %1467 = vmatpush2.bf16.msra.mxu0 0
    %1468 = vmatprep.subr.bf16.mxu0 0
    %1469 = vmatpush2.bf16.msra.mxu0 0
    %1470 = vmatprep.mubr.bf16.mxu0 0
    %1471 = vmatmul.mubr.bf16.gmra.mxu0 %v1436
    %v1472 = vpop.f32.mrf.mxu0
    %v1473 = vadd.f32 0.0, %v1472
    %v1474 = vpop.f32.mrf.mxu0
    %v1475 = vpop.f32.mrf.mxu0
    %v1476 = vpop.f32.mrf.mxu0
    %1477 = vdwg.mxu0
    %v1486 = vunpack.c.l.b16 %v1388
    %v1487 = vunpack.c.l.b16 %v1389
    %v1488 = vunpack.c.l.b16 %v1390
    %v1489 = vunpack.c.l.b16 %v1391
    %v1490 = vunpack.c.l.b16 %v1392
    %v1491 = vunpack.c.l.b16 %v1393
    %v1492 = vunpack.c.l.b16 %v1394
    %v1493 = vunpack.c.l.b16 %v1395
    %v1494 = vpack.c.b16 %v1487, %v1486
    %v1495 = vpack.c.b16 %v1489, %v1488
    %v1496 = vpack.c.b16 %v1491, %v1490
    %v1497 = vpack.c.b16 %v1493, %v1492
    %v1503 = vsel %vm1434, %v1387, 0
    %1505 = vmatprep.subr.bf16.mxu0 0
    %1506 = vmatpush1.bf16.msra.mxu0 0
    %1507 = vmatprep.subr.bf16.mxu0 0
    %1508 = vmatpush1.bf16.msra.mxu0 0
    %1509 = vmatprep.subr.bf16.mxu0 0
    %1510 = vmatpush1.bf16.msra.mxu0 0
    %1511 = vmatprep.subr.bf16.mxu0 0
    %1512 = vmatpush1.bf16.msra.mxu0 0
    %1513 = vmatprep.subr.bf16.mxu0 0
    %1514 = vmatpush1.bf16.msra.mxu0 %v1497
    %1515 = vmatprep.subr.bf16.mxu0 0
    %1516 = vmatpush1.bf16.msra.mxu0 %v1496
    %1517 = vmatprep.subr.bf16.mxu0 0
    %1518 = vmatpush1.bf16.msra.mxu0 %v1495
    %1519 = vmatprep.subr.bf16.mxu0 0
    %1520 = vmatpush1.bf16.msra.mxu0 %v1494
    %1521 = vmatprep.subr.bf16.mxu0 0
    %1522 = vmatpush2.bf16.msra.mxu0 0
    %1523 = vmatprep.subr.bf16.mxu0 0
    %1524 = vmatpush2.bf16.msra.mxu0 0
    %1525 = vmatprep.subr.bf16.mxu0 0
    %1526 = vmatpush2.bf16.msra.mxu0 0
    %1527 = vmatprep.subr.bf16.mxu0 0
    %1528 = vmatpush2.bf16.msra.mxu0 0
    %1529 = vmatprep.subr.bf16.mxu0 0
    %1530 = vmatpush2.bf16.msra.mxu0 0
    %1531 = vmatprep.subr.bf16.mxu0 0
    %1532 = vmatpush2.bf16.msra.mxu0 0
    %1533 = vmatprep.subr.bf16.mxu0 0
    %1534 = vmatpush2.bf16.msra.mxu0 0
    %1535 = vmatprep.subr.bf16.mxu0 0
    %1536 = vmatpush2.bf16.msra.mxu0 0
    %1537 = vmatprep.mubr.bf16.mxu0 0
    %1538 = vmatmul.mubr.bf16.gmra.mxu0 %v1503
    %v1539 = vpop.f32.mrf.mxu0
    %v1540 = vadd.f32 %v1473, %v1539
    %v1541 = vpop.f32.mrf.mxu0
    %v1542 = vpop.f32.mrf.mxu0
    %v1543 = vpop.f32.mrf.mxu0
    %1544 = vdwg.mxu0
    %v1545 = vld [vmem:[#allocation2] sm:$0x4]
    %s1546 = scalar_lea.vmem %s7, 64
    %v1547 = vld [vmem:[%s1546] sm:$0xf]
    %v1548 = vld [vmem:[%s1546 + $0x4] sm:$0xf]
    %v1549 = vld [vmem:[%s1546 + $0x8] sm:$0xf]
    %v1550 = vld [vmem:[%s1546 + $0xc] sm:$0xf]
    %v1551 = vld [vmem:[%s1546 + $0x10] sm:$0xf]
    %v1552 = vld [vmem:[%s1546 + $0x14] sm:$0xf]
    %v1553 = vld [vmem:[%s1546 + $0x18] sm:$0xf]
    %v1554 = vld [vmem:[%s1546 + $0x1c] sm:$0xf]
    %v1556 = vunpack.c.l.b16 %v1545
    %v1557 = vpack.c.b16 %v1556, %v1556
    %v1558 = vrot.slane %v1557, 2
    %v1567 = vunpack.c.l.b16 %v1547
    %v1568 = vunpack.c.l.b16 %v1548
    %v1569 = vunpack.c.l.b16 %v1549
    %v1570 = vunpack.c.l.b16 %v1550
    %v1571 = vunpack.c.l.b16 %v1551
    %v1572 = vunpack.c.l.b16 %v1552
    %v1573 = vunpack.c.l.b16 %v1553
    %v1574 = vunpack.c.l.b16 %v1554
    %v1575 = vpack.c.b16 %v1568, %v1567
    %v1576 = vpack.c.b16 %v1570, %v1569
    %v1577 = vpack.c.b16 %v1572, %v1571
    %v1578 = vpack.c.b16 %v1574, %v1573
    %v1584 = vsel %vm1434, %v1558, 0
    %1586 = vmatprep.subr.bf16.mxu0 0
    %1587 = vmatpush1.bf16.msra.mxu0 0
    %1588 = vmatprep.subr.bf16.mxu0 0
    %1589 = vmatpush1.bf16.msra.mxu0 0
    %1590 = vmatprep.subr.bf16.mxu0 0
    %1591 = vmatpush1.bf16.msra.mxu0 0
    %1592 = vmatprep.subr.bf16.mxu0 0
    %1593 = vmatpush1.bf16.msra.mxu0 0
    %1594 = vmatprep.subr.bf16.mxu0 0
    %1595 = vmatpush1.bf16.msra.mxu0 %v1578
    %1596 = vmatprep.subr.bf16.mxu0 0
    %1597 = vmatpush1.bf16.msra.mxu0 %v1577
    %1598 = vmatprep.subr.bf16.mxu0 0
    %1599 = vmatpush1.bf16.msra.mxu0 %v1576
    %1600 = vmatprep.subr.bf16.mxu0 0
    %1601 = vmatpush1.bf16.msra.mxu0 %v1575
    %1602 = vmatprep.subr.bf16.mxu0 0
    %1603 = vmatpush2.bf16.msra.mxu0 0
    %1604 = vmatprep.subr.bf16.mxu0 0
    %1605 = vmatpush2.bf16.msra.mxu0 0
    %1606 = vmatprep.subr.bf16.mxu0 0
    %1607 = vmatpush2.bf16.msra.mxu0 0
    %1608 = vmatprep.subr.bf16.mxu0 0
    %1609 = vmatpush2.bf16.msra.mxu0 0
    %1610 = vmatprep.subr.bf16.mxu0 0
    %1611 = vmatpush2.bf16.msra.mxu0 0
    %1612 = vmatprep.subr.bf16.mxu0 0
    %1613 = vmatpush2.bf16.msra.mxu0 0
    %1614 = vmatprep.subr.bf16.mxu0 0
    %1615 = vmatpush2.bf16.msra.mxu0 0
    %1616 = vmatprep.subr.bf16.mxu0 0
    %1617 = vmatpush2.bf16.msra.mxu0 0
    %1618 = vmatprep.mubr.bf16.mxu0 0
    %1619 = vmatmul.mubr.bf16.gmra.mxu0 %v1584
    %v1620 = vpop.f32.mrf.mxu0
    %v1621 = vadd.f32 0.0, %v1620
    %v1622 = vpop.f32.mrf.mxu0
    %v1623 = vpop.f32.mrf.mxu0
    %v1624 = vpop.f32.mrf.mxu0
    %1625 = vdwg.mxu0
    %v1626 = vadd.f32 %v1540, %v1621
    %v1627 = vld [vmem:[#allocation2] sm:$0x8]
    %s1628 = scalar_lea.vmem %s7, 96
    %v1629 = vld [vmem:[%s1628] sm:$0xf]
    %v1630 = vld [vmem:[%s1628 + $0x4] sm:$0xf]
    %v1631 = vld [vmem:[%s1628 + $0x8] sm:$0xf]
    %v1632 = vld [vmem:[%s1628 + $0xc] sm:$0xf]
    %v1633 = vld [vmem:[%s1628 + $0x10] sm:$0xf]
    %v1634 = vld [vmem:[%s1628 + $0x14] sm:$0xf]
    %v1635 = vld [vmem:[%s1628 + $0x18] sm:$0xf]
    %v1636 = vld [vmem:[%s1628 + $0x1c] sm:$0xf]
    %v1638 = vunpack.c.l.b16 %v1627
    %v1639 = vpack.c.b16 %v1638, %v1638
    %v1640 = vrot.slane %v1639, 3
    %v1649 = vunpack.c.l.b16 %v1629
    %v1650 = vunpack.c.l.b16 %v1630
    %v1651 = vunpack.c.l.b16 %v1631
    %v1652 = vunpack.c.l.b16 %v1632
    %v1653 = vunpack.c.l.b16 %v1633
    %v1654 = vunpack.c.l.b16 %v1634
    %v1655 = vunpack.c.l.b16 %v1635
    %v1656 = vunpack.c.l.b16 %v1636
    %v1657 = vpack.c.b16 %v1650, %v1649
    %v1658 = vpack.c.b16 %v1652, %v1651
    %v1659 = vpack.c.b16 %v1654, %v1653
    %v1660 = vpack.c.b16 %v1656, %v1655
    %v1666 = vsel %vm1434, %v1640, 0
    %1668 = vmatprep.subr.bf16.mxu0 0
    %1669 = vmatpush1.bf16.msra.mxu0 0
    %1670 = vmatprep.subr.bf16.mxu0 0
    %1671 = vmatpush1.bf16.msra.mxu0 0
    %1672 = vmatprep.subr.bf16.mxu0 0
    %1673 = vmatpush1.bf16.msra.mxu0 0
    %1674 = vmatprep.subr.bf16.mxu0 0
    %1675 = vmatpush1.bf16.msra.mxu0 0
    %1676 = vmatprep.subr.bf16.mxu0 0
    %1677 = vmatpush1.bf16.msra.mxu0 %v1660
    %1678 = vmatprep.subr.bf16.mxu0 0
    %1679 = vmatpush1.bf16.msra.mxu0 %v1659
    %1680 = vmatprep.subr.bf16.mxu0 0
    %1681 = vmatpush1.bf16.msra.mxu0 %v1658
    %1682 = vmatprep.subr.bf16.mxu0 0
    %1683 = vmatpush1.bf16.msra.mxu0 %v1657
    %1684 = vmatprep.subr.bf16.mxu0 0
    %1685 = vmatpush2.bf16.msra.mxu0 0
    %1686 = vmatprep.subr.bf16.mxu0 0
    %1687 = vmatpush2.bf16.msra.mxu0 0
    %1688 = vmatprep.subr.bf16.mxu0 0
    %1689 = vmatpush2.bf16.msra.mxu0 0
    %1690 = vmatprep.subr.bf16.mxu0 0
    %1691 = vmatpush2.bf16.msra.mxu0 0
    %1692 = vmatprep.subr.bf16.mxu0 0
    %1693 = vmatpush2.bf16.msra.mxu0 0
    %1694 = vmatprep.subr.bf16.mxu0 0
    %1695 = vmatpush2.bf16.msra.mxu0 0
    %1696 = vmatprep.subr.bf16.mxu0 0
    %1697 = vmatpush2.bf16.msra.mxu0 0
    %1698 = vmatprep.subr.bf16.mxu0 0
    %1699 = vmatpush2.bf16.msra.mxu0 0
    %1700 = vmatprep.mubr.bf16.mxu0 0
    %1701 = vmatmul.mubr.bf16.gmra.mxu0 %v1666
    %v1702 = vpop.f32.mrf.mxu0
    %v1703 = vadd.f32 0.0, %v1702
    %v1704 = vpop.f32.mrf.mxu0
    %v1705 = vpop.f32.mrf.mxu0
    %v1706 = vpop.f32.mrf.mxu0
    %1707 = vdwg.mxu0
    %v1708 = vadd.f32 %v1626, %v1703
    %v1709 = vld [vmem:[#allocation2 + $0x4] sm:$0x1]
    %s1710 = scalar_lea.vmem %s7, 128
    %v1711 = vld [vmem:[%s1710] sm:$0xf]
    %v1712 = vld [vmem:[%s1710 + $0x4] sm:$0xf]
    %v1713 = vld [vmem:[%s1710 + $0x8] sm:$0xf]
    %v1714 = vld [vmem:[%s1710 + $0xc] sm:$0xf]
    %v1715 = vld [vmem:[%s1710 + $0x10] sm:$0xf]
    %v1716 = vld [vmem:[%s1710 + $0x14] sm:$0xf]
    %v1717 = vld [vmem:[%s1710 + $0x18] sm:$0xf]
    %v1718 = vld [vmem:[%s1710 + $0x1c] sm:$0xf]
    %v1727 = vunpack.c.l.b16 %v1711
    %v1728 = vunpack.c.l.b16 %v1712
    %v1729 = vunpack.c.l.b16 %v1713
    %v1730 = vunpack.c.l.b16 %v1714
    %v1731 = vunpack.c.l.b16 %v1715
    %v1732 = vunpack.c.l.b16 %v1716
    %v1733 = vunpack.c.l.b16 %v1717
    %v1734 = vunpack.c.l.b16 %v1718
    %v1735 = vpack.c.b16 %v1728, %v1727
    %v1736 = vpack.c.b16 %v1730, %v1729
    %v1737 = vpack.c.b16 %v1732, %v1731
    %v1738 = vpack.c.b16 %v1734, %v1733
    %v1744 = vsel %vm1434, %v1709, 0
    %1746 = vmatprep.subr.bf16.mxu0 0
    %1747 = vmatpush1.bf16.msra.mxu0 0
    %1748 = vmatprep.subr.bf16.mxu0 0
    %1749 = vmatpush1.bf16.msra.mxu0 0
    %1750 = vmatprep.subr.bf16.mxu0 0
    %1751 = vmatpush1.bf16.msra.mxu0 0
    %1752 = vmatprep.subr.bf16.mxu0 0
    %1753 = vmatpush1.bf16.msra.mxu0 0
    %1754 = vmatprep.subr.bf16.mxu0 0
    %1755 = vmatpush1.bf16.msra.mxu0 %v1738
    %1756 = vmatprep.subr.bf16.mxu0 0
    %1757 = vmatpush1.bf16.msra.mxu0 %v1737
    %1758 = vmatprep.subr.bf16.mxu0 0
    %1759 = vmatpush1.bf16.msra.mxu0 %v1736
    %1760 = vmatprep.subr.bf16.mxu0 0
    %1761 = vmatpush1.bf16.msra.mxu0 %v1735
    %1762 = vmatprep.subr.bf16.mxu0 0
    %1763 = vmatpush2.bf16.msra.mxu0 0
    %1764 = vmatprep.subr.bf16.mxu0 0
    %1765 = vmatpush2.bf16.msra.mxu0 0
    %1766 = vmatprep.subr.bf16.mxu0 0
    %1767 = vmatpush2.bf16.msra.mxu0 0
    %1768 = vmatprep.subr.bf16.mxu0 0
    %1769 = vmatpush2.bf16.msra.mxu0 0
    %1770 = vmatprep.subr.bf16.mxu0 0
    %1771 = vmatpush2.bf16.msra.mxu0 0
    %1772 = vmatprep.subr.bf16.mxu0 0
    %1773 = vmatpush2.bf16.msra.mxu0 0
    %1774 = vmatprep.subr.bf16.mxu0 0
    %1775 = vmatpush2.bf16.msra.mxu0 0
    %1776 = vmatprep.subr.bf16.mxu0 0
    %1777 = vmatpush2.bf16.msra.mxu0 0
    %1778 = vmatprep.mubr.bf16.mxu0 0
    %1779 = vmatmul.mubr.bf16.gmra.mxu0 %v1744
    %v1780 = vpop.f32.mrf.mxu0
    %v1781 = vadd.f32 0.0, %v1780
    %v1782 = vpop.f32.mrf.mxu0
    %v1783 = vpop.f32.mrf.mxu0
    %v1784 = vpop.f32.mrf.mxu0
    %1785 = vdwg.mxu0
    %v1786 = vadd.f32 %v1708, %v1781
    %v1787 = vld [vmem:[#allocation2 + $0x4] sm:$0x2]
    %s1788 = scalar_lea.vmem %s7, 160
    %v1789 = vld [vmem:[%s1788] sm:$0xf]
    %v1790 = vld [vmem:[%s1788 + $0x4] sm:$0xf]
    %v1791 = vld [vmem:[%s1788 + $0x8] sm:$0xf]
    %v1792 = vld [vmem:[%s1788 + $0xc] sm:$0xf]
    %v1793 = vld [vmem:[%s1788 + $0x10] sm:$0xf]
    %v1794 = vld [vmem:[%s1788 + $0x14] sm:$0xf]
    %v1795 = vld [vmem:[%s1788 + $0x18] sm:$0xf]
    %v1796 = vld [vmem:[%s1788 + $0x1c] sm:$0xf]
    %v1798 = vunpack.c.l.b16 %v1787
    %v1799 = vpack.c.b16 %v1798, %v1798
    %v1800 = vrot.slane %v1799, 1
    %v1809 = vunpack.c.l.b16 %v1789
    %v1810 = vunpack.c.l.b16 %v1790
    %v1811 = vunpack.c.l.b16 %v1791
    %v1812 = vunpack.c.l.b16 %v1792
    %v1813 = vunpack.c.l.b16 %v1793
    %v1814 = vunpack.c.l.b16 %v1794
    %v1815 = vunpack.c.l.b16 %v1795
    %v1816 = vunpack.c.l.b16 %v1796
    %v1817 = vpack.c.b16 %v1810, %v1809
    %v1818 = vpack.c.b16 %v1812, %v1811
    %v1819 = vpack.c.b16 %v1814, %v1813
    %v1820 = vpack.c.b16 %v1816, %v1815
    %v1826 = vsel %vm1434, %v1800, 0
    %1828 = vmatprep.subr.bf16.mxu0 0
    %1829 = vmatpush1.bf16.msra.mxu0 0
    %1830 = vmatprep.subr.bf16.mxu0 0
    %1831 = vmatpush1.bf16.msra.mxu0 0
    %1832 = vmatprep.subr.bf16.mxu0 0
    %1833 = vmatpush1.bf16.msra.mxu0 0
    %1834 = vmatprep.subr.bf16.mxu0 0
    %1835 = vmatpush1.bf16.msra.mxu0 0
    %1836 = vmatprep.subr.bf16.mxu0 0
    %1837 = vmatpush1.bf16.msra.mxu0 %v1820
    %1838 = vmatprep.subr.bf16.mxu0 0
    %1839 = vmatpush1.bf16.msra.mxu0 %v1819
    %1840 = vmatprep.subr.bf16.mxu0 0
    %1841 = vmatpush1.bf16.msra.mxu0 %v1818
    %1842 = vmatprep.subr.bf16.mxu0 0
    %1843 = vmatpush1.bf16.msra.mxu0 %v1817
    %1844 = vmatprep.subr.bf16.mxu0 0
    %1845 = vmatpush2.bf16.msra.mxu0 0
    %1846 = vmatprep.subr.bf16.mxu0 0
    %1847 = vmatpush2.bf16.msra.mxu0 0
    %1848 = vmatprep.subr.bf16.mxu0 0
    %1849 = vmatpush2.bf16.msra.mxu0 0
    %1850 = vmatprep.subr.bf16.mxu0 0
    %1851 = vmatpush2.bf16.msra.mxu0 0
    %1852 = vmatprep.subr.bf16.mxu0 0
    %1853 = vmatpush2.bf16.msra.mxu0 0
    %1854 = vmatprep.subr.bf16.mxu0 0
    %1855 = vmatpush2.bf16.msra.mxu0 0
    %1856 = vmatprep.subr.bf16.mxu0 0
    %1857 = vmatpush2.bf16.msra.mxu0 0
    %1858 = vmatprep.subr.bf16.mxu0 0
    %1859 = vmatpush2.bf16.msra.mxu0 0
    %1860 = vmatprep.mubr.bf16.mxu0 0
    %1861 = vmatmul.mubr.bf16.gmra.mxu0 %v1826
    %v1862 = vpop.f32.mrf.mxu0
    %v1863 = vadd.f32 0.0, %v1862
    %v1864 = vpop.f32.mrf.mxu0
    %v1865 = vpop.f32.mrf.mxu0
    %v1866 = vpop.f32.mrf.mxu0
    %1867 = vdwg.mxu0
    %v1868 = vadd.f32 %v1786, %v1863
    %v1869 = vld [vmem:[#allocation2 + $0x4] sm:$0x4]
    %s1870 = scalar_lea.vmem %s7, 192
    %v1871 = vld [vmem:[%s1870] sm:$0xf]
    %v1872 = vld [vmem:[%s1870 + $0x4] sm:$0xf]
    %v1873 = vld [vmem:[%s1870 + $0x8] sm:$0xf]
    %v1874 = vld [vmem:[%s1870 + $0xc] sm:$0xf]
    %v1875 = vld [vmem:[%s1870 + $0x10] sm:$0xf]
    %v1876 = vld [vmem:[%s1870 + $0x14] sm:$0xf]
    %v1877 = vld [vmem:[%s1870 + $0x18] sm:$0xf]
    %v1878 = vld [vmem:[%s1870 + $0x1c] sm:$0xf]
    %v1880 = vunpack.c.l.b16 %v1869
    %v1881 = vpack.c.b16 %v1880, %v1880
    %v1882 = vrot.slane %v1881, 2
    %v1891 = vunpack.c.l.b16 %v1871
    %v1892 = vunpack.c.l.b16 %v1872
    %v1893 = vunpack.c.l.b16 %v1873
    %v1894 = vunpack.c.l.b16 %v1874
    %v1895 = vunpack.c.l.b16 %v1875
    %v1896 = vunpack.c.l.b16 %v1876
    %v1897 = vunpack.c.l.b16 %v1877
    %v1898 = vunpack.c.l.b16 %v1878
    %v1899 = vpack.c.b16 %v1892, %v1891
    %v1900 = vpack.c.b16 %v1894, %v1893
    %v1901 = vpack.c.b16 %v1896, %v1895
    %v1902 = vpack.c.b16 %v1898, %v1897
    %v1908 = vsel %vm1434, %v1882, 0
    %1910 = vmatprep.subr.bf16.mxu0 0
    %1911 = vmatpush1.bf16.msra.mxu0 0
    %1912 = vmatprep.subr.bf16.mxu0 0
    %1913 = vmatpush1.bf16.msra.mxu0 0
    %1914 = vmatprep.subr.bf16.mxu0 0
    %1915 = vmatpush1.bf16.msra.mxu0 0
    %1916 = vmatprep.subr.bf16.mxu0 0
    %1917 = vmatpush1.bf16.msra.mxu0 0
    %1918 = vmatprep.subr.bf16.mxu0 0
    %1919 = vmatpush1.bf16.msra.mxu0 %v1902
    %1920 = vmatprep.subr.bf16.mxu0 0
    %1921 = vmatpush1.bf16.msra.mxu0 %v1901
    %1922 = vmatprep.subr.bf16.mxu0 0
    %1923 = vmatpush1.bf16.msra.mxu0 %v1900
    %1924 = vmatprep.subr.bf16.mxu0 0
    %1925 = vmatpush1.bf16.msra.mxu0 %v1899
    %1926 = vmatprep.subr.bf16.mxu0 0
    %1927 = vmatpush2.bf16.msra.mxu0 0
    %1928 = vmatprep.subr.bf16.mxu0 0
    %1929 = vmatpush2.bf16.msra.mxu0 0
    %1930 = vmatprep.subr.bf16.mxu0 0
    %1931 = vmatpush2.bf16.msra.mxu0 0
    %1932 = vmatprep.subr.bf16.mxu0 0
    %1933 = vmatpush2.bf16.msra.mxu0 0
    %1934 = vmatprep.subr.bf16.mxu0 0
    %1935 = vmatpush2.bf16.msra.mxu0 0
    %1936 = vmatprep.subr.bf16.mxu0 0
    %1937 = vmatpush2.bf16.msra.mxu0 0
    %1938 = vmatprep.subr.bf16.mxu0 0
    %1939 = vmatpush2.bf16.msra.mxu0 0
    %1940 = vmatprep.subr.bf16.mxu0 0
    %1941 = vmatpush2.bf16.msra.mxu0 0
    %1942 = vmatprep.mubr.bf16.mxu0 0
    %1943 = vmatmul.mubr.bf16.gmra.mxu0 %v1908
    %v1944 = vpop.f32.mrf.mxu0
    %v1945 = vadd.f32 0.0, %v1944
    %v1946 = vpop.f32.mrf.mxu0
    %v1947 = vpop.f32.mrf.mxu0
    %v1948 = vpop.f32.mrf.mxu0
    %1949 = vdwg.mxu0
    %v1950 = vadd.f32 %v1868, %v1945
    %v1951 = vld [vmem:[#allocation2 + $0x4] sm:$0x8]
    %s1952 = scalar_lea.vmem %s7, 224
    %v1953 = vld [vmem:[%s1952] sm:$0xf]
    %v1954 = vld [vmem:[%s1952 + $0x4] sm:$0xf]
    %v1955 = vld [vmem:[%s1952 + $0x8] sm:$0xf]
    %v1956 = vld [vmem:[%s1952 + $0xc] sm:$0xf]
    %v1957 = vld [vmem:[%s1952 + $0x10] sm:$0xf]
    %v1958 = vld [vmem:[%s1952 + $0x14] sm:$0xf]
    %v1959 = vld [vmem:[%s1952 + $0x18] sm:$0xf]
    %v1960 = vld [vmem:[%s1952 + $0x1c] sm:$0xf]
    %v1962 = vunpack.c.l.b16 %v1951
    %v1963 = vpack.c.b16 %v1962, %v1962
    %v1964 = vrot.slane %v1963, 3
    %v1973 = vunpack.c.l.b16 %v1953
    %v1974 = vunpack.c.l.b16 %v1954
    %v1975 = vunpack.c.l.b16 %v1955
    %v1976 = vunpack.c.l.b16 %v1956
    %v1977 = vunpack.c.l.b16 %v1957
    %v1978 = vunpack.c.l.b16 %v1958
    %v1979 = vunpack.c.l.b16 %v1959
    %v1980 = vunpack.c.l.b16 %v1960
    %v1981 = vpack.c.b16 %v1974, %v1973
    %v1982 = vpack.c.b16 %v1976, %v1975
    %v1983 = vpack.c.b16 %v1978, %v1977
    %v1984 = vpack.c.b16 %v1980, %v1979
    %v1990 = vsel %vm1434, %v1964, 0
    %1992 = vmatprep.subr.bf16.mxu0 0
    %1993 = vmatpush1.bf16.msra.mxu0 0
    %1994 = vmatprep.subr.bf16.mxu0 0
    %1995 = vmatpush1.bf16.msra.mxu0 0
    %1996 = vmatprep.subr.bf16.mxu0 0
    %1997 = vmatpush1.bf16.msra.mxu0 0
    %1998 = vmatprep.subr.bf16.mxu0 0
    %1999 = vmatpush1.bf16.msra.mxu0 0
    %2000 = vmatprep.subr.bf16.mxu0 0
    %2001 = vmatpush1.bf16.msra.mxu0 %v1984
    %2002 = vmatprep.subr.bf16.mxu0 0
    %2003 = vmatpush1.bf16.msra.mxu0 %v1983
    %2004 = vmatprep.subr.bf16.mxu0 0
    %2005 = vmatpush1.bf16.msra.mxu0 %v1982
    %2006 = vmatprep.subr.bf16.mxu0 0
    %2007 = vmatpush1.bf16.msra.mxu0 %v1981
    %2008 = vmatprep.subr.bf16.mxu0 0
    %2009 = vmatpush2.bf16.msra.mxu0 0
    %2010 = vmatprep.subr.bf16.mxu0 0
    %2011 = vmatpush2.bf16.msra.mxu0 0
    %2012 = vmatprep.subr.bf16.mxu0 0
    %2013 = vmatpush2.bf16.msra.mxu0 0
    %2014 = vmatprep.subr.bf16.mxu0 0
    %2015 = vmatpush2.bf16.msra.mxu0 0
    %2016 = vmatprep.subr.bf16.mxu0 0
    %2017 = vmatpush2.bf16.msra.mxu0 0
    %2018 = vmatprep.subr.bf16.mxu0 0
    %2019 = vmatpush2.bf16.msra.mxu0 0
    %2020 = vmatprep.subr.bf16.mxu0 0
    %2021 = vmatpush2.bf16.msra.mxu0 0
    %2022 = vmatprep.subr.bf16.mxu0 0
    %2023 = vmatpush2.bf16.msra.mxu0 0
    %2024 = vmatprep.mubr.bf16.mxu0 0
    %2025 = vmatmul.mubr.bf16.gmra.mxu0 %v1990
    %v2026 = vpop.f32.mrf.mxu0
    %v2027 = vadd.f32 0.0, %v2026
    %v2028 = vpop.f32.mrf.mxu0
    %v2029 = vpop.f32.mrf.mxu0
    %v2030 = vpop.f32.mrf.mxu0
    %2031 = vdwg.mxu0
    %v2032 = vadd.f32 %v1950, %v2027
    %v2033 = vld [vmem:[#allocation2 + $0x8] sm:$0x1]
    %s2034 = scalar_lea.vmem %s7, 256
    %v2035 = vld [vmem:[%s2034] sm:$0xf]
    %v2036 = vld [vmem:[%s2034 + $0x4] sm:$0xf]
    %v2037 = vld [vmem:[%s2034 + $0x8] sm:$0xf]
    %v2038 = vld [vmem:[%s2034 + $0xc] sm:$0xf]
    %v2039 = vld [vmem:[%s2034 + $0x10] sm:$0xf]
    %v2040 = vld [vmem:[%s2034 + $0x14] sm:$0xf]
    %v2041 = vld [vmem:[%s2034 + $0x18] sm:$0xf]
    %v2042 = vld [vmem:[%s2034 + $0x1c] sm:$0xf]
    %v2051 = vunpack.c.l.b16 %v2035
    %v2052 = vunpack.c.l.b16 %v2036
    %v2053 = vunpack.c.l.b16 %v2037
    %v2054 = vunpack.c.l.b16 %v2038
    %v2055 = vunpack.c.l.b16 %v2039
    %v2056 = vunpack.c.l.b16 %v2040
    %v2057 = vunpack.c.l.b16 %v2041
    %v2058 = vunpack.c.l.b16 %v2042
    %v2059 = vpack.c.b16 %v2052, %v2051
    %v2060 = vpack.c.b16 %v2054, %v2053
    %v2061 = vpack.c.b16 %v2056, %v2055
    %v2062 = vpack.c.b16 %v2058, %v2057
    %v2068 = vsel %vm1434, %v2033, 0
    %2070 = vmatprep.subr.bf16.mxu0 0
    %2071 = vmatpush1.bf16.msra.mxu0 0
    %2072 = vmatprep.subr.bf16.mxu0 0
    %2073 = vmatpush1.bf16.msra.mxu0 0
    %2074 = vmatprep.subr.bf16.mxu0 0
    %2075 = vmatpush1.bf16.msra.mxu0 0
    %2076 = vmatprep.subr.bf16.mxu0 0
    %2077 = vmatpush1.bf16.msra.mxu0 0
    %2078 = vmatprep.subr.bf16.mxu0 0
    %2079 = vmatpush1.bf16.msra.mxu0 %v2062
    %2080 = vmatprep.subr.bf16.mxu0 0
    %2081 = vmatpush1.bf16.msra.mxu0 %v2061
    %2082 = vmatprep.subr.bf16.mxu0 0
    %2083 = vmatpush1.bf16.msra.mxu0 %v2060
    %2084 = vmatprep.subr.bf16.mxu0 0
    %2085 = vmatpush1.bf16.msra.mxu0 %v2059
    %2086 = vmatprep.subr.bf16.mxu0 0
    %2087 = vmatpush2.bf16.msra.mxu0 0
    %2088 = vmatprep.subr.bf16.mxu0 0
    %2089 = vmatpush2.bf16.msra.mxu0 0
    %2090 = vmatprep.subr.bf16.mxu0 0
    %2091 = vmatpush2.bf16.msra.mxu0 0
    %2092 = vmatprep.subr.bf16.mxu0 0
    %2093 = vmatpush2.bf16.msra.mxu0 0
    %2094 = vmatprep.subr.bf16.mxu0 0
    %2095 = vmatpush2.bf16.msra.mxu0 0
    %2096 = vmatprep.subr.bf16.mxu0 0
    %2097 = vmatpush2.bf16.msra.mxu0 0
    %2098 = vmatprep.subr.bf16.mxu0 0
    %2099 = vmatpush2.bf16.msra.mxu0 0
    %2100 = vmatprep.subr.bf16.mxu0 0
    %2101 = vmatpush2.bf16.msra.mxu0 0
    %2102 = vmatprep.mubr.bf16.mxu0 0
    %2103 = vmatmul.mubr.bf16.gmra.mxu0 %v2068
    %v2104 = vpop.f32.mrf.mxu0
    %v2105 = vadd.f32 0.0, %v2104
    %v2106 = vpop.f32.mrf.mxu0
    %v2107 = vpop.f32.mrf.mxu0
    %v2108 = vpop.f32.mrf.mxu0
    %2109 = vdwg.mxu0
    %v2110 = vadd.f32 %v2032, %v2105
    %v2111 = vld [vmem:[#allocation2 + $0x8] sm:$0x2]
    %s2112 = scalar_lea.vmem %s7, 288
    %v2113 = vld [vmem:[%s2112] sm:$0xf]
    %v2114 = vld [vmem:[%s2112 + $0x4] sm:$0xf]
    %v2115 = vld [vmem:[%s2112 + $0x8] sm:$0xf]
    %v2116 = vld [vmem:[%s2112 + $0xc] sm:$0xf]
    %v2117 = vld [vmem:[%s2112 + $0x10] sm:$0xf]
    %v2118 = vld [vmem:[%s2112 + $0x14] sm:$0xf]
    %v2119 = vld [vmem:[%s2112 + $0x18] sm:$0xf]
    %v2120 = vld [vmem:[%s2112 + $0x1c] sm:$0xf]
    %v2122 = vunpack.c.l.b16 %v2111
    %v2123 = vpack.c.b16 %v2122, %v2122
    %v2124 = vrot.slane %v2123, 1
    %v2133 = vunpack.c.l.b16 %v2113
    %v2134 = vunpack.c.l.b16 %v2114
    %v2135 = vunpack.c.l.b16 %v2115
    %v2136 = vunpack.c.l.b16 %v2116
    %v2137 = vunpack.c.l.b16 %v2117
    %v2138 = vunpack.c.l.b16 %v2118
    %v2139 = vunpack.c.l.b16 %v2119
    %v2140 = vunpack.c.l.b16 %v2120
    %v2141 = vpack.c.b16 %v2134, %v2133
    %v2142 = vpack.c.b16 %v2136, %v2135
    %v2143 = vpack.c.b16 %v2138, %v2137
    %v2144 = vpack.c.b16 %v2140, %v2139
    %v2150 = vsel %vm1434, %v2124, 0
    %2152 = vmatprep.subr.bf16.mxu0 0
    %2153 = vmatpush1.bf16.msra.mxu0 0
    %2154 = vmatprep.subr.bf16.mxu0 0
    %2155 = vmatpush1.bf16.msra.mxu0 0
    %2156 = vmatprep.subr.bf16.mxu0 0
    %2157 = vmatpush1.bf16.msra.mxu0 0
    %2158 = vmatprep.subr.bf16.mxu0 0
    %2159 = vmatpush1.bf16.msra.mxu0 0
    %2160 = vmatprep.subr.bf16.mxu0 0
    %2161 = vmatpush1.bf16.msra.mxu0 %v2144
    %2162 = vmatprep.subr.bf16.mxu0 0
    %2163 = vmatpush1.bf16.msra.mxu0 %v2143
    %2164 = vmatprep.subr.bf16.mxu0 0
    %2165 = vmatpush1.bf16.msra.mxu0 %v2142
    %2166 = vmatprep.subr.bf16.mxu0 0
    %2167 = vmatpush1.bf16.msra.mxu0 %v2141
    %2168 = vmatprep.subr.bf16.mxu0 0
    %2169 = vmatpush2.bf16.msra.mxu0 0
    %2170 = vmatprep.subr.bf16.mxu0 0
    %2171 = vmatpush2.bf16.msra.mxu0 0
    %2172 = vmatprep.subr.bf16.mxu0 0
    %2173 = vmatpush2.bf16.msra.mxu0 0
    %2174 = vmatprep.subr.bf16.mxu0 0
    %2175 = vmatpush2.bf16.msra.mxu0 0
    %2176 = vmatprep.subr.bf16.mxu0 0
    %2177 = vmatpush2.bf16.msra.mxu0 0
    %2178 = vmatprep.subr.bf16.mxu0 0
    %2179 = vmatpush2.bf16.msra.mxu0 0
    %2180 = vmatprep.subr.bf16.mxu0 0
    %2181 = vmatpush2.bf16.msra.mxu0 0
    %2182 = vmatprep.subr.bf16.mxu0 0
    %2183 = vmatpush2.bf16.msra.mxu0 0
    %2184 = vmatprep.mubr.bf16.mxu0 0
    %2185 = vmatmul.mubr.bf16.gmra.mxu0 %v2150
    %v2186 = vpop.f32.mrf.mxu0
    %v2187 = vadd.f32 0.0, %v2186
    %v2188 = vpop.f32.mrf.mxu0
    %v2189 = vpop.f32.mrf.mxu0
    %v2190 = vpop.f32.mrf.mxu0
    %2191 = vdwg.mxu0
    %v2192 = vadd.f32 %v2110, %v2187
    %v2193 = vld [vmem:[#allocation2 + $0x8] sm:$0x4]
    %s2194 = scalar_lea.vmem %s7, 320
    %v2195 = vld [vmem:[%s2194] sm:$0xf]
    %v2196 = vld [vmem:[%s2194 + $0x4] sm:$0xf]
    %v2197 = vld [vmem:[%s2194 + $0x8] sm:$0xf]
    %v2198 = vld [vmem:[%s2194 + $0xc] sm:$0xf]
    %v2199 = vld [vmem:[%s2194 + $0x10] sm:$0xf]
    %v2200 = vld [vmem:[%s2194 + $0x14] sm:$0xf]
    %v2201 = vld [vmem:[%s2194 + $0x18] sm:$0xf]
    %v2202 = vld [vmem:[%s2194 + $0x1c] sm:$0xf]
    %v2204 = vunpack.c.l.b16 %v2193
    %v2205 = vpack.c.b16 %v2204, %v2204
    %v2206 = vrot.slane %v2205, 2
    %v2215 = vunpack.c.l.b16 %v2195
    %v2216 = vunpack.c.l.b16 %v2196
    %v2217 = vunpack.c.l.b16 %v2197
    %v2218 = vunpack.c.l.b16 %v2198
    %v2219 = vunpack.c.l.b16 %v2199
    %v2220 = vunpack.c.l.b16 %v2200
    %v2221 = vunpack.c.l.b16 %v2201
    %v2222 = vunpack.c.l.b16 %v2202
    %v2223 = vpack.c.b16 %v2216, %v2215
    %v2224 = vpack.c.b16 %v2218, %v2217
    %v2225 = vpack.c.b16 %v2220, %v2219
    %v2226 = vpack.c.b16 %v2222, %v2221
    %v2232 = vsel %vm1434, %v2206, 0
    %2234 = vmatprep.subr.bf16.mxu0 0
    %2235 = vmatpush1.bf16.msra.mxu0 0
    %2236 = vmatprep.subr.bf16.mxu0 0
    %2237 = vmatpush1.bf16.msra.mxu0 0
    %2238 = vmatprep.subr.bf16.mxu0 0
    %2239 = vmatpush1.bf16.msra.mxu0 0
    %2240 = vmatprep.subr.bf16.mxu0 0
    %2241 = vmatpush1.bf16.msra.mxu0 0
    %2242 = vmatprep.subr.bf16.mxu0 0
    %2243 = vmatpush1.bf16.msra.mxu0 %v2226
    %2244 = vmatprep.subr.bf16.mxu0 0
    %2245 = vmatpush1.bf16.msra.mxu0 %v2225
    %2246 = vmatprep.subr.bf16.mxu0 0
    %2247 = vmatpush1.bf16.msra.mxu0 %v2224
    %2248 = vmatprep.subr.bf16.mxu0 0
    %2249 = vmatpush1.bf16.msra.mxu0 %v2223
    %2250 = vmatprep.subr.bf16.mxu0 0
    %2251 = vmatpush2.bf16.msra.mxu0 0
    %2252 = vmatprep.subr.bf16.mxu0 0
    %2253 = vmatpush2.bf16.msra.mxu0 0
    %2254 = vmatprep.subr.bf16.mxu0 0
    %2255 = vmatpush2.bf16.msra.mxu0 0
    %2256 = vmatprep.subr.bf16.mxu0 0
    %2257 = vmatpush2.bf16.msra.mxu0 0
    %2258 = vmatprep.subr.bf16.mxu0 0
    %2259 = vmatpush2.bf16.msra.mxu0 0
    %2260 = vmatprep.subr.bf16.mxu0 0
    %2261 = vmatpush2.bf16.msra.mxu0 0
    %2262 = vmatprep.subr.bf16.mxu0 0
    %2263 = vmatpush2.bf16.msra.mxu0 0
    %2264 = vmatprep.subr.bf16.mxu0 0
    %2265 = vmatpush2.bf16.msra.mxu0 0
    %2266 = vmatprep.mubr.bf16.mxu0 0
    %2267 = vmatmul.mubr.bf16.gmra.mxu0 %v2232
    %v2268 = vpop.f32.mrf.mxu0
    %v2269 = vadd.f32 0.0, %v2268
    %v2270 = vpop.f32.mrf.mxu0
    %v2271 = vpop.f32.mrf.mxu0
    %v2272 = vpop.f32.mrf.mxu0
    %2273 = vdwg.mxu0
    %v2274 = vadd.f32 %v2192, %v2269
    %v2275 = vld [vmem:[#allocation2 + $0x8] sm:$0x8]
    %s2276 = scalar_lea.vmem %s7, 352
    %v2277 = vld [vmem:[%s2276] sm:$0xf]
    %v2278 = vld [vmem:[%s2276 + $0x4] sm:$0xf]
    %v2279 = vld [vmem:[%s2276 + $0x8] sm:$0xf]
    %v2280 = vld [vmem:[%s2276 + $0xc] sm:$0xf]
    %v2281 = vld [vmem:[%s2276 + $0x10] sm:$0xf]
    %v2282 = vld [vmem:[%s2276 + $0x14] sm:$0xf]
    %v2283 = vld [vmem:[%s2276 + $0x18] sm:$0xf]
    %v2284 = vld [vmem:[%s2276 + $0x1c] sm:$0xf]
    %v2286 = vunpack.c.l.b16 %v2275
    %v2287 = vpack.c.b16 %v2286, %v2286
    %v2288 = vrot.slane %v2287, 3
    %v2297 = vunpack.c.l.b16 %v2277
    %v2298 = vunpack.c.l.b16 %v2278
    %v2299 = vunpack.c.l.b16 %v2279
    %v2300 = vunpack.c.l.b16 %v2280
    %v2301 = vunpack.c.l.b16 %v2281
    %v2302 = vunpack.c.l.b16 %v2282
    %v2303 = vunpack.c.l.b16 %v2283
    %v2304 = vunpack.c.l.b16 %v2284
    %v2305 = vpack.c.b16 %v2298, %v2297
    %v2306 = vpack.c.b16 %v2300, %v2299
    %v2307 = vpack.c.b16 %v2302, %v2301
    %v2308 = vpack.c.b16 %v2304, %v2303
    %v2314 = vsel %vm1434, %v2288, 0
    %2316 = vmatprep.subr.bf16.mxu0 0
    %2317 = vmatpush1.bf16.msra.mxu0 0
    %2318 = vmatprep.subr.bf16.mxu0 0
    %2319 = vmatpush1.bf16.msra.mxu0 0
    %2320 = vmatprep.subr.bf16.mxu0 0
    %2321 = vmatpush1.bf16.msra.mxu0 0
    %2322 = vmatprep.subr.bf16.mxu0 0
    %2323 = vmatpush1.bf16.msra.mxu0 0
    %2324 = vmatprep.subr.bf16.mxu0 0
    %2325 = vmatpush1.bf16.msra.mxu0 %v2308
    %2326 = vmatprep.subr.bf16.mxu0 0
    %2327 = vmatpush1.bf16.msra.mxu0 %v2307
    %2328 = vmatprep.subr.bf16.mxu0 0
    %2329 = vmatpush1.bf16.msra.mxu0 %v2306
    %2330 = vmatprep.subr.bf16.mxu0 0
    %2331 = vmatpush1.bf16.msra.mxu0 %v2305
    %2332 = vmatprep.subr.bf16.mxu0 0
    %2333 = vmatpush2.bf16.msra.mxu0 0
    %2334 = vmatprep.subr.bf16.mxu0 0
    %2335 = vmatpush2.bf16.msra.mxu0 0
    %2336 = vmatprep.subr.bf16.mxu0 0
    %2337 = vmatpush2.bf16.msra.mxu0 0
    %2338 = vmatprep.subr.bf16.mxu0 0
    %2339 = vmatpush2.bf16.msra.mxu0 0
    %2340 = vmatprep.subr.bf16.mxu0 0
    %2341 = vmatpush2.bf16.msra.mxu0 0
    %2342 = vmatprep.subr.bf16.mxu0 0
    %2343 = vmatpush2.bf16.msra.mxu0 0
    %2344 = vmatprep.subr.bf16.mxu0 0
    %2345 = vmatpush2.bf16.msra.mxu0 0
    %2346 = vmatprep.subr.bf16.mxu0 0
    %2347 = vmatpush2.bf16.msra.mxu0 0
    %2348 = vmatprep.mubr.bf16.mxu0 0
    %2349 = vmatmul.mubr.bf16.gmra.mxu0 %v2314
    %v2350 = vpop.f32.mrf.mxu0
    %v2351 = vadd.f32 0.0, %v2350
    %v2352 = vpop.f32.mrf.mxu0
    %v2353 = vpop.f32.mrf.mxu0
    %v2354 = vpop.f32.mrf.mxu0
    %2355 = vdwg.mxu0
    %v2356 = vadd.f32 %v2274, %v2351
    %v2357 = vld [vmem:[#allocation2 + $0xc] sm:$0x1]
    %s2358 = scalar_lea.vmem %s7, 384
    %v2359 = vld [vmem:[%s2358] sm:$0xf]
    %v2360 = vld [vmem:[%s2358 + $0x4] sm:$0xf]
    %v2361 = vld [vmem:[%s2358 + $0x8] sm:$0xf]
    %v2362 = vld [vmem:[%s2358 + $0xc] sm:$0xf]
    %v2363 = vld [vmem:[%s2358 + $0x10] sm:$0xf]
    %v2364 = vld [vmem:[%s2358 + $0x14] sm:$0xf]
    %v2365 = vld [vmem:[%s2358 + $0x18] sm:$0xf]
    %v2366 = vld [vmem:[%s2358 + $0x1c] sm:$0xf]
    %v2375 = vunpack.c.l.b16 %v2359
    %v2376 = vunpack.c.l.b16 %v2360
    %v2377 = vunpack.c.l.b16 %v2361
    %v2378 = vunpack.c.l.b16 %v2362
    %v2379 = vunpack.c.l.b16 %v2363
    %v2380 = vunpack.c.l.b16 %v2364
    %v2381 = vunpack.c.l.b16 %v2365
    %v2382 = vunpack.c.l.b16 %v2366
    %v2383 = vpack.c.b16 %v2376, %v2375
    %v2384 = vpack.c.b16 %v2378, %v2377
    %v2385 = vpack.c.b16 %v2380, %v2379
    %v2386 = vpack.c.b16 %v2382, %v2381
    %v2392 = vsel %vm1434, %v2357, 0
    %2394 = vmatprep.subr.bf16.mxu0 0
    %2395 = vmatpush1.bf16.msra.mxu0 0
    %2396 = vmatprep.subr.bf16.mxu0 0
    %2397 = vmatpush1.bf16.msra.mxu0 0
    %2398 = vmatprep.subr.bf16.mxu0 0
    %2399 = vmatpush1.bf16.msra.mxu0 0
    %2400 = vmatprep.subr.bf16.mxu0 0
    %2401 = vmatpush1.bf16.msra.mxu0 0
    %2402 = vmatprep.subr.bf16.mxu0 0
    %2403 = vmatpush1.bf16.msra.mxu0 %v2386
    %2404 = vmatprep.subr.bf16.mxu0 0
    %2405 = vmatpush1.bf16.msra.mxu0 %v2385
    %2406 = vmatprep.subr.bf16.mxu0 0
    %2407 = vmatpush1.bf16.msra.mxu0 %v2384
    %2408 = vmatprep.subr.bf16.mxu0 0
    %2409 = vmatpush1.bf16.msra.mxu0 %v2383
    %2410 = vmatprep.subr.bf16.mxu0 0
    %2411 = vmatpush2.bf16.msra.mxu0 0
    %2412 = vmatprep.subr.bf16.mxu0 0
    %2413 = vmatpush2.bf16.msra.mxu0 0
    %2414 = vmatprep.subr.bf16.mxu0 0
    %2415 = vmatpush2.bf16.msra.mxu0 0
    %2416 = vmatprep.subr.bf16.mxu0 0
    %2417 = vmatpush2.bf16.msra.mxu0 0
    %2418 = vmatprep.subr.bf16.mxu0 0
    %2419 = vmatpush2.bf16.msra.mxu0 0
    %2420 = vmatprep.subr.bf16.mxu0 0
    %2421 = vmatpush2.bf16.msra.mxu0 0
    %2422 = vmatprep.subr.bf16.mxu0 0
    %2423 = vmatpush2.bf16.msra.mxu0 0
    %2424 = vmatprep.subr.bf16.mxu0 0
    %2425 = vmatpush2.bf16.msra.mxu0 0
    %2426 = vmatprep.mubr.bf16.mxu0 0
    %2427 = vmatmul.mubr.bf16.gmra.mxu0 %v2392
    %v2428 = vpop.f32.mrf.mxu0
    %v2429 = vadd.f32 0.0, %v2428
    %v2430 = vpop.f32.mrf.mxu0
    %v2431 = vpop.f32.mrf.mxu0
    %v2432 = vpop.f32.mrf.mxu0
    %2433 = vdwg.mxu0
    %v2434 = vadd.f32 %v2356, %v2429
    %v2435 = vld [vmem:[#allocation2 + $0xc] sm:$0x2]
    %s2436 = scalar_lea.vmem %s7, 416
    %v2437 = vld [vmem:[%s2436] sm:$0xf]
    %v2438 = vld [vmem:[%s2436 + $0x4] sm:$0xf]
    %v2439 = vld [vmem:[%s2436 + $0x8] sm:$0xf]
    %v2440 = vld [vmem:[%s2436 + $0xc] sm:$0xf]
    %v2441 = vld [vmem:[%s2436 + $0x10] sm:$0xf]
    %v2442 = vld [vmem:[%s2436 + $0x14] sm:$0xf]
    %v2443 = vld [vmem:[%s2436 + $0x18] sm:$0xf]
    %v2444 = vld [vmem:[%s2436 + $0x1c] sm:$0xf]
    %v2446 = vunpack.c.l.b16 %v2435
    %v2447 = vpack.c.b16 %v2446, %v2446
    %v2448 = vrot.slane %v2447, 1
    %v2457 = vunpack.c.l.b16 %v2437
    %v2458 = vunpack.c.l.b16 %v2438
    %v2459 = vunpack.c.l.b16 %v2439
    %v2460 = vunpack.c.l.b16 %v2440
    %v2461 = vunpack.c.l.b16 %v2441
    %v2462 = vunpack.c.l.b16 %v2442
    %v2463 = vunpack.c.l.b16 %v2443
    %v2464 = vunpack.c.l.b16 %v2444
    %v2465 = vpack.c.b16 %v2458, %v2457
    %v2466 = vpack.c.b16 %v2460, %v2459
    %v2467 = vpack.c.b16 %v2462, %v2461
    %v2468 = vpack.c.b16 %v2464, %v2463
    %v2474 = vsel %vm1434, %v2448, 0
    %2476 = vmatprep.subr.bf16.mxu0 0
    %2477 = vmatpush1.bf16.msra.mxu0 0
    %2478 = vmatprep.subr.bf16.mxu0 0
    %2479 = vmatpush1.bf16.msra.mxu0 0
    %2480 = vmatprep.subr.bf16.mxu0 0
    %2481 = vmatpush1.bf16.msra.mxu0 0
    %2482 = vmatprep.subr.bf16.mxu0 0
    %2483 = vmatpush1.bf16.msra.mxu0 0
    %2484 = vmatprep.subr.bf16.mxu0 0
    %2485 = vmatpush1.bf16.msra.mxu0 %v2468
    %2486 = vmatprep.subr.bf16.mxu0 0
    %2487 = vmatpush1.bf16.msra.mxu0 %v2467
    %2488 = vmatprep.subr.bf16.mxu0 0
    %2489 = vmatpush1.bf16.msra.mxu0 %v2466
    %2490 = vmatprep.subr.bf16.mxu0 0
    %2491 = vmatpush1.bf16.msra.mxu0 %v2465
    %2492 = vmatprep.subr.bf16.mxu0 0
    %2493 = vmatpush2.bf16.msra.mxu0 0
    %2494 = vmatprep.subr.bf16.mxu0 0
    %2495 = vmatpush2.bf16.msra.mxu0 0
    %2496 = vmatprep.subr.bf16.mxu0 0
    %2497 = vmatpush2.bf16.msra.mxu0 0
    %2498 = vmatprep.subr.bf16.mxu0 0
    %2499 = vmatpush2.bf16.msra.mxu0 0
    %2500 = vmatprep.subr.bf16.mxu0 0
    %2501 = vmatpush2.bf16.msra.mxu0 0
    %2502 = vmatprep.subr.bf16.mxu0 0
    %2503 = vmatpush2.bf16.msra.mxu0 0
    %2504 = vmatprep.subr.bf16.mxu0 0
    %2505 = vmatpush2.bf16.msra.mxu0 0
    %2506 = vmatprep.subr.bf16.mxu0 0
    %2507 = vmatpush2.bf16.msra.mxu0 0
    %2508 = vmatprep.mubr.bf16.mxu0 0
    %2509 = vmatmul.mubr.bf16.gmra.mxu0 %v2474
    %v2510 = vpop.f32.mrf.mxu0
    %v2511 = vadd.f32 0.0, %v2510
    %v2512 = vpop.f32.mrf.mxu0
    %v2513 = vpop.f32.mrf.mxu0
    %v2514 = vpop.f32.mrf.mxu0
    %2515 = vdwg.mxu0
    %v2516 = vadd.f32 %v2434, %v2511
    %v2517 = vld [vmem:[#allocation2 + $0xc] sm:$0x4]
    %s2518 = scalar_lea.vmem %s7, 448
    %v2519 = vld [vmem:[%s2518] sm:$0xf]
    %v2520 = vld [vmem:[%s2518 + $0x4] sm:$0xf]
    %v2521 = vld [vmem:[%s2518 + $0x8] sm:$0xf]
    %v2522 = vld [vmem:[%s2518 + $0xc] sm:$0xf]
    %v2523 = vld [vmem:[%s2518 + $0x10] sm:$0xf]
    %v2524 = vld [vmem:[%s2518 + $0x14] sm:$0xf]
    %v2525 = vld [vmem:[%s2518 + $0x18] sm:$0xf]
    %v2526 = vld [vmem:[%s2518 + $0x1c] sm:$0xf]
    %v2528 = vunpack.c.l.b16 %v2517
    %v2529 = vpack.c.b16 %v2528, %v2528
    %v2530 = vrot.slane %v2529, 2
    %v2539 = vunpack.c.l.b16 %v2519
    %v2540 = vunpack.c.l.b16 %v2520
    %v2541 = vunpack.c.l.b16 %v2521
    %v2542 = vunpack.c.l.b16 %v2522
    %v2543 = vunpack.c.l.b16 %v2523
    %v2544 = vunpack.c.l.b16 %v2524
    %v2545 = vunpack.c.l.b16 %v2525
    %v2546 = vunpack.c.l.b16 %v2526
    %v2547 = vpack.c.b16 %v2540, %v2539
    %v2548 = vpack.c.b16 %v2542, %v2541
    %v2549 = vpack.c.b16 %v2544, %v2543
    %v2550 = vpack.c.b16 %v2546, %v2545
    %v2556 = vsel %vm1434, %v2530, 0
    %2558 = vmatprep.subr.bf16.mxu0 0
    %2559 = vmatpush1.bf16.msra.mxu0 0
    %2560 = vmatprep.subr.bf16.mxu0 0
    %2561 = vmatpush1.bf16.msra.mxu0 0
    %2562 = vmatprep.subr.bf16.mxu0 0
    %2563 = vmatpush1.bf16.msra.mxu0 0
    %2564 = vmatprep.subr.bf16.mxu0 0
    %2565 = vmatpush1.bf16.msra.mxu0 0
    %2566 = vmatprep.subr.bf16.mxu0 0
    %2567 = vmatpush1.bf16.msra.mxu0 %v2550
    %2568 = vmatprep.subr.bf16.mxu0 0
    %2569 = vmatpush1.bf16.msra.mxu0 %v2549
    %2570 = vmatprep.subr.bf16.mxu0 0
    %2571 = vmatpush1.bf16.msra.mxu0 %v2548
    %2572 = vmatprep.subr.bf16.mxu0 0
    %2573 = vmatpush1.bf16.msra.mxu0 %v2547
    %2574 = vmatprep.subr.bf16.mxu0 0
    %2575 = vmatpush2.bf16.msra.mxu0 0
    %2576 = vmatprep.subr.bf16.mxu0 0
    %2577 = vmatpush2.bf16.msra.mxu0 0
    %2578 = vmatprep.subr.bf16.mxu0 0
    %2579 = vmatpush2.bf16.msra.mxu0 0
    %2580 = vmatprep.subr.bf16.mxu0 0
    %2581 = vmatpush2.bf16.msra.mxu0 0
    %2582 = vmatprep.subr.bf16.mxu0 0
    %2583 = vmatpush2.bf16.msra.mxu0 0
    %2584 = vmatprep.subr.bf16.mxu0 0
    %2585 = vmatpush2.bf16.msra.mxu0 0
    %2586 = vmatprep.subr.bf16.mxu0 0
    %2587 = vmatpush2.bf16.msra.mxu0 0
    %2588 = vmatprep.subr.bf16.mxu0 0
    %2589 = vmatpush2.bf16.msra.mxu0 0
    %2590 = vmatprep.mubr.bf16.mxu0 0
    %2591 = vmatmul.mubr.bf16.gmra.mxu0 %v2556
    %v2592 = vpop.f32.mrf.mxu0
    %v2593 = vadd.f32 0.0, %v2592
    %v2594 = vpop.f32.mrf.mxu0
    %v2595 = vpop.f32.mrf.mxu0
    %v2596 = vpop.f32.mrf.mxu0
    %2597 = vdwg.mxu0
    %v2598 = vadd.f32 %v2516, %v2593
    %v2599 = vld [vmem:[#allocation2 + $0xc] sm:$0x8]
    %s2600 = scalar_lea.vmem %s7, 480
    %v2601 = vld [vmem:[%s2600] sm:$0xf]
    %v2602 = vld [vmem:[%s2600 + $0x4] sm:$0xf]
    %v2603 = vld [vmem:[%s2600 + $0x8] sm:$0xf]
    %v2604 = vld [vmem:[%s2600 + $0xc] sm:$0xf]
    %v2605 = vld [vmem:[%s2600 + $0x10] sm:$0xf]
    %v2606 = vld [vmem:[%s2600 + $0x14] sm:$0xf]
    %v2607 = vld [vmem:[%s2600 + $0x18] sm:$0xf]
    %v2608 = vld [vmem:[%s2600 + $0x1c] sm:$0xf]
    %v2610 = vunpack.c.l.b16 %v2599
    %v2611 = vpack.c.b16 %v2610, %v2610
    %v2612 = vrot.slane %v2611, 3
    %v2621 = vunpack.c.l.b16 %v2601
    %v2622 = vunpack.c.l.b16 %v2602
    %v2623 = vunpack.c.l.b16 %v2603
    %v2624 = vunpack.c.l.b16 %v2604
    %v2625 = vunpack.c.l.b16 %v2605
    %v2626 = vunpack.c.l.b16 %v2606
    %v2627 = vunpack.c.l.b16 %v2607
    %v2628 = vunpack.c.l.b16 %v2608
    %v2629 = vpack.c.b16 %v2622, %v2621
    %v2630 = vpack.c.b16 %v2624, %v2623
    %v2631 = vpack.c.b16 %v2626, %v2625
    %v2632 = vpack.c.b16 %v2628, %v2627
    %v2638 = vsel %vm1434, %v2612, 0
    %2640 = vmatprep.subr.bf16.mxu0 0
    %2641 = vmatpush1.bf16.msra.mxu0 0
    %2642 = vmatprep.subr.bf16.mxu0 0
    %2643 = vmatpush1.bf16.msra.mxu0 0
    %2644 = vmatprep.subr.bf16.mxu0 0
    %2645 = vmatpush1.bf16.msra.mxu0 0
    %2646 = vmatprep.subr.bf16.mxu0 0
    %2647 = vmatpush1.bf16.msra.mxu0 0
    %2648 = vmatprep.subr.bf16.mxu0 0
    %2649 = vmatpush1.bf16.msra.mxu0 %v2632
    %2650 = vmatprep.subr.bf16.mxu0 0
    %2651 = vmatpush1.bf16.msra.mxu0 %v2631
    %2652 = vmatprep.subr.bf16.mxu0 0
    %2653 = vmatpush1.bf16.msra.mxu0 %v2630
    %2654 = vmatprep.subr.bf16.mxu0 0
    %2655 = vmatpush1.bf16.msra.mxu0 %v2629
    %2656 = vmatprep.subr.bf16.mxu0 0
    %2657 = vmatpush2.bf16.msra.mxu0 0
    %2658 = vmatprep.subr.bf16.mxu0 0
    %2659 = vmatpush2.bf16.msra.mxu0 0
    %2660 = vmatprep.subr.bf16.mxu0 0
    %2661 = vmatpush2.bf16.msra.mxu0 0
    %2662 = vmatprep.subr.bf16.mxu0 0
    %2663 = vmatpush2.bf16.msra.mxu0 0
    %2664 = vmatprep.subr.bf16.mxu0 0
    %2665 = vmatpush2.bf16.msra.mxu0 0
    %2666 = vmatprep.subr.bf16.mxu0 0
    %2667 = vmatpush2.bf16.msra.mxu0 0
    %2668 = vmatprep.subr.bf16.mxu0 0
    %2669 = vmatpush2.bf16.msra.mxu0 0
    %2670 = vmatprep.subr.bf16.mxu0 0
    %2671 = vmatpush2.bf16.msra.mxu0 0
    %2672 = vmatprep.mubr.bf16.mxu0 0
    %2673 = vmatmul.mubr.bf16.gmra.mxu0 %v2638
    %v2674 = vpop.f32.mrf.mxu0
    %v2675 = vadd.f32 0.0, %v2674
    %v2676 = vpop.f32.mrf.mxu0
    %v2677 = vpop.f32.mrf.mxu0
    %v2678 = vpop.f32.mrf.mxu0
    %2679 = vdwg.mxu0
    %v2680 = vadd.f32 %v2598, %v2675
    %v2681 = vld [vmem:[#allocation2 + $0x10] sm:$0x1]
    %s2682 = scalar_lea.vmem %s7, 512
    %v2683 = vld [vmem:[%s2682] sm:$0xf]
    %v2684 = vld [vmem:[%s2682 + $0x4] sm:$0xf]
    %v2685 = vld [vmem:[%s2682 + $0x8] sm:$0xf]
    %v2686 = vld [vmem:[%s2682 + $0xc] sm:$0xf]
    %v2687 = vld [vmem:[%s2682 + $0x10] sm:$0xf]
    %v2688 = vld [vmem:[%s2682 + $0x14] sm:$0xf]
    %v2689 = vld [vmem:[%s2682 + $0x18] sm:$0xf]
    %v2690 = vld [vmem:[%s2682 + $0x1c] sm:$0xf]
    %v2699 = vunpack.c.l.b16 %v2683
    %v2700 = vunpack.c.l.b16 %v2684
    %v2701 = vunpack.c.l.b16 %v2685
    %v2702 = vunpack.c.l.b16 %v2686
    %v2703 = vunpack.c.l.b16 %v2687
    %v2704 = vunpack.c.l.b16 %v2688
    %v2705 = vunpack.c.l.b16 %v2689
    %v2706 = vunpack.c.l.b16 %v2690
    %v2707 = vpack.c.b16 %v2700, %v2699
    %v2708 = vpack.c.b16 %v2702, %v2701
    %v2709 = vpack.c.b16 %v2704, %v2703
    %v2710 = vpack.c.b16 %v2706, %v2705
    %v2716 = vsel %vm1434, %v2681, 0
    %2718 = vmatprep.subr.bf16.mxu0 0
    %2719 = vmatpush1.bf16.msra.mxu0 0
    %2720 = vmatprep.subr.bf16.mxu0 0
    %2721 = vmatpush1.bf16.msra.mxu0 0
    %2722 = vmatprep.subr.bf16.mxu0 0
    %2723 = vmatpush1.bf16.msra.mxu0 0
    %2724 = vmatprep.subr.bf16.mxu0 0
    %2725 = vmatpush1.bf16.msra.mxu0 0
    %2726 = vmatprep.subr.bf16.mxu0 0
    %2727 = vmatpush1.bf16.msra.mxu0 %v2710
    %2728 = vmatprep.subr.bf16.mxu0 0
    %2729 = vmatpush1.bf16.msra.mxu0 %v2709
    %2730 = vmatprep.subr.bf16.mxu0 0
    %2731 = vmatpush1.bf16.msra.mxu0 %v2708
    %2732 = vmatprep.subr.bf16.mxu0 0
    %2733 = vmatpush1.bf16.msra.mxu0 %v2707
    %2734 = vmatprep.subr.bf16.mxu0 0
    %2735 = vmatpush2.bf16.msra.mxu0 0
    %2736 = vmatprep.subr.bf16.mxu0 0
    %2737 = vmatpush2.bf16.msra.mxu0 0
    %2738 = vmatprep.subr.bf16.mxu0 0
    %2739 = vmatpush2.bf16.msra.mxu0 0
    %2740 = vmatprep.subr.bf16.mxu0 0
    %2741 = vmatpush2.bf16.msra.mxu0 0
    %2742 = vmatprep.subr.bf16.mxu0 0
    %2743 = vmatpush2.bf16.msra.mxu0 0
    %2744 = vmatprep.subr.bf16.mxu0 0
    %2745 = vmatpush2.bf16.msra.mxu0 0
    %2746 = vmatprep.subr.bf16.mxu0 0
    %2747 = vmatpush2.bf16.msra.mxu0 0
    %2748 = vmatprep.subr.bf16.mxu0 0
    %2749 = vmatpush2.bf16.msra.mxu0 0
    %2750 = vmatprep.mubr.bf16.mxu0 0
    %2751 = vmatmul.mubr.bf16.gmra.mxu0 %v2716
    %v2752 = vpop.f32.mrf.mxu0
    %v2753 = vadd.f32 0.0, %v2752
    %v2754 = vpop.f32.mrf.mxu0
    %v2755 = vpop.f32.mrf.mxu0
    %v2756 = vpop.f32.mrf.mxu0
    %2757 = vdwg.mxu0
    %v2758 = vadd.f32 %v2680, %v2753
    %v2759 = vld [vmem:[#allocation2 + $0x10] sm:$0x2]
    %s2760 = scalar_lea.vmem %s7, 544
    %v2761 = vld [vmem:[%s2760] sm:$0xf]
    %v2762 = vld [vmem:[%s2760 + $0x4] sm:$0xf]
    %v2763 = vld [vmem:[%s2760 + $0x8] sm:$0xf]
    %v2764 = vld [vmem:[%s2760 + $0xc] sm:$0xf]
    %v2765 = vld [vmem:[%s2760 + $0x10] sm:$0xf]
    %v2766 = vld [vmem:[%s2760 + $0x14] sm:$0xf]
    %v2767 = vld [vmem:[%s2760 + $0x18] sm:$0xf]
    %v2768 = vld [vmem:[%s2760 + $0x1c] sm:$0xf]
    %v2770 = vunpack.c.l.b16 %v2759
    %v2771 = vpack.c.b16 %v2770, %v2770
    %v2772 = vrot.slane %v2771, 1
    %v2781 = vunpack.c.l.b16 %v2761
    %v2782 = vunpack.c.l.b16 %v2762
    %v2783 = vunpack.c.l.b16 %v2763
    %v2784 = vunpack.c.l.b16 %v2764
    %v2785 = vunpack.c.l.b16 %v2765
    %v2786 = vunpack.c.l.b16 %v2766
    %v2787 = vunpack.c.l.b16 %v2767
    %v2788 = vunpack.c.l.b16 %v2768
    %v2789 = vpack.c.b16 %v2782, %v2781
    %v2790 = vpack.c.b16 %v2784, %v2783
    %v2791 = vpack.c.b16 %v2786, %v2785
    %v2792 = vpack.c.b16 %v2788, %v2787
    %v2798 = vsel %vm1434, %v2772, 0
    %2800 = vmatprep.subr.bf16.mxu0 0
    %2801 = vmatpush1.bf16.msra.mxu0 0
    %2802 = vmatprep.subr.bf16.mxu0 0
    %2803 = vmatpush1.bf16.msra.mxu0 0
    %2804 = vmatprep.subr.bf16.mxu0 0
    %2805 = vmatpush1.bf16.msra.mxu0 0
    %2806 = vmatprep.subr.bf16.mxu0 0
    %2807 = vmatpush1.bf16.msra.mxu0 0
    %2808 = vmatprep.subr.bf16.mxu0 0
    %2809 = vmatpush1.bf16.msra.mxu0 %v2792
    %2810 = vmatprep.subr.bf16.mxu0 0
    %2811 = vmatpush1.bf16.msra.mxu0 %v2791
    %2812 = vmatprep.subr.bf16.mxu0 0
    %2813 = vmatpush1.bf16.msra.mxu0 %v2790
    %2814 = vmatprep.subr.bf16.mxu0 0
    %2815 = vmatpush1.bf16.msra.mxu0 %v2789
    %2816 = vmatprep.subr.bf16.mxu0 0
    %2817 = vmatpush2.bf16.msra.mxu0 0
    %2818 = vmatprep.subr.bf16.mxu0 0
    %2819 = vmatpush2.bf16.msra.mxu0 0
    %2820 = vmatprep.subr.bf16.mxu0 0
    %2821 = vmatpush2.bf16.msra.mxu0 0
    %2822 = vmatprep.subr.bf16.mxu0 0
    %2823 = vmatpush2.bf16.msra.mxu0 0
    %2824 = vmatprep.subr.bf16.mxu0 0
    %2825 = vmatpush2.bf16.msra.mxu0 0
    %2826 = vmatprep.subr.bf16.mxu0 0
    %2827 = vmatpush2.bf16.msra.mxu0 0
    %2828 = vmatprep.subr.bf16.mxu0 0
    %2829 = vmatpush2.bf16.msra.mxu0 0
    %2830 = vmatprep.subr.bf16.mxu0 0
    %2831 = vmatpush2.bf16.msra.mxu0 0
    %2832 = vmatprep.mubr.bf16.mxu0 0
    %2833 = vmatmul.mubr.bf16.gmra.mxu0 %v2798
    %v2834 = vpop.f32.mrf.mxu0
    %v2835 = vadd.f32 0.0, %v2834
    %v2836 = vpop.f32.mrf.mxu0
    %v2837 = vpop.f32.mrf.mxu0
    %v2838 = vpop.f32.mrf.mxu0
    %2839 = vdwg.mxu0
    %v2840 = vadd.f32 %v2758, %v2835
    %v2841 = vld [vmem:[#allocation2 + $0x10] sm:$0x4]
    %s2842 = scalar_lea.vmem %s7, 576
    %v2843 = vld [vmem:[%s2842] sm:$0xf]
    %v2844 = vld [vmem:[%s2842 + $0x4] sm:$0xf]
    %v2845 = vld [vmem:[%s2842 + $0x8] sm:$0xf]
    %v2846 = vld [vmem:[%s2842 + $0xc] sm:$0xf]
    %v2847 = vld [vmem:[%s2842 + $0x10] sm:$0xf]
    %v2848 = vld [vmem:[%s2842 + $0x14] sm:$0xf]
    %v2849 = vld [vmem:[%s2842 + $0x18] sm:$0xf]
    %v2850 = vld [vmem:[%s2842 + $0x1c] sm:$0xf]
    %v2852 = vunpack.c.l.b16 %v2841
    %v2853 = vpack.c.b16 %v2852, %v2852
    %v2854 = vrot.slane %v2853, 2
    %v2863 = vunpack.c.l.b16 %v2843
    %v2864 = vunpack.c.l.b16 %v2844
    %v2865 = vunpack.c.l.b16 %v2845
    %v2866 = vunpack.c.l.b16 %v2846
    %v2867 = vunpack.c.l.b16 %v2847
    %v2868 = vunpack.c.l.b16 %v2848
    %v2869 = vunpack.c.l.b16 %v2849
    %v2870 = vunpack.c.l.b16 %v2850
    %v2871 = vpack.c.b16 %v2864, %v2863
    %v2872 = vpack.c.b16 %v2866, %v2865
    %v2873 = vpack.c.b16 %v2868, %v2867
    %v2874 = vpack.c.b16 %v2870, %v2869
    %v2880 = vsel %vm1434, %v2854, 0
    %2882 = vmatprep.subr.bf16.mxu0 0
    %2883 = vmatpush1.bf16.msra.mxu0 0
    %2884 = vmatprep.subr.bf16.mxu0 0
    %2885 = vmatpush1.bf16.msra.mxu0 0
    %2886 = vmatprep.subr.bf16.mxu0 0
    %2887 = vmatpush1.bf16.msra.mxu0 0
    %2888 = vmatprep.subr.bf16.mxu0 0
    %2889 = vmatpush1.bf16.msra.mxu0 0
    %2890 = vmatprep.subr.bf16.mxu0 0
    %2891 = vmatpush1.bf16.msra.mxu0 %v2874
    %2892 = vmatprep.subr.bf16.mxu0 0
    %2893 = vmatpush1.bf16.msra.mxu0 %v2873
    %2894 = vmatprep.subr.bf16.mxu0 0
    %2895 = vmatpush1.bf16.msra.mxu0 %v2872
    %2896 = vmatprep.subr.bf16.mxu0 0
    %2897 = vmatpush1.bf16.msra.mxu0 %v2871
    %2898 = vmatprep.subr.bf16.mxu0 0
    %2899 = vmatpush2.bf16.msra.mxu0 0
    %2900 = vmatprep.subr.bf16.mxu0 0
    %2901 = vmatpush2.bf16.msra.mxu0 0
    %2902 = vmatprep.subr.bf16.mxu0 0
    %2903 = vmatpush2.bf16.msra.mxu0 0
    %2904 = vmatprep.subr.bf16.mxu0 0
    %2905 = vmatpush2.bf16.msra.mxu0 0
    %2906 = vmatprep.subr.bf16.mxu0 0
    %2907 = vmatpush2.bf16.msra.mxu0 0
    %2908 = vmatprep.subr.bf16.mxu0 0
    %2909 = vmatpush2.bf16.msra.mxu0 0
    %2910 = vmatprep.subr.bf16.mxu0 0
    %2911 = vmatpush2.bf16.msra.mxu0 0
    %2912 = vmatprep.subr.bf16.mxu0 0
    %2913 = vmatpush2.bf16.msra.mxu0 0
    %2914 = vmatprep.mubr.bf16.mxu0 0
    %2915 = vmatmul.mubr.bf16.gmra.mxu0 %v2880
    %v2916 = vpop.f32.mrf.mxu0
    %v2917 = vadd.f32 0.0, %v2916
    %v2918 = vpop.f32.mrf.mxu0
    %v2919 = vpop.f32.mrf.mxu0
    %v2920 = vpop.f32.mrf.mxu0
    %2921 = vdwg.mxu0
    %v2922 = vadd.f32 %v2840, %v2917
    %v2923 = vld [vmem:[#allocation2 + $0x10] sm:$0x8]
    %s2924 = scalar_lea.vmem %s7, 608
    %v2925 = vld [vmem:[%s2924] sm:$0xf]
    %v2926 = vld [vmem:[%s2924 + $0x4] sm:$0xf]
    %v2927 = vld [vmem:[%s2924 + $0x8] sm:$0xf]
    %v2928 = vld [vmem:[%s2924 + $0xc] sm:$0xf]
    %v2929 = vld [vmem:[%s2924 + $0x10] sm:$0xf]
    %v2930 = vld [vmem:[%s2924 + $0x14] sm:$0xf]
    %v2931 = vld [vmem:[%s2924 + $0x18] sm:$0xf]
    %v2932 = vld [vmem:[%s2924 + $0x1c] sm:$0xf]
    %v2934 = vunpack.c.l.b16 %v2923
    %v2935 = vpack.c.b16 %v2934, %v2934
    %v2936 = vrot.slane %v2935, 3
    %v2945 = vunpack.c.l.b16 %v2925
    %v2946 = vunpack.c.l.b16 %v2926
    %v2947 = vunpack.c.l.b16 %v2927
    %v2948 = vunpack.c.l.b16 %v2928
    %v2949 = vunpack.c.l.b16 %v2929
    %v2950 = vunpack.c.l.b16 %v2930
    %v2951 = vunpack.c.l.b16 %v2931
    %v2952 = vunpack.c.l.b16 %v2932
    %v2953 = vpack.c.b16 %v2946, %v2945
    %v2954 = vpack.c.b16 %v2948, %v2947
    %v2955 = vpack.c.b16 %v2950, %v2949
    %v2956 = vpack.c.b16 %v2952, %v2951
    %v2962 = vsel %vm1434, %v2936, 0
    %2964 = vmatprep.subr.bf16.mxu0 0
    %2965 = vmatpush1.bf16.msra.mxu0 0
    %2966 = vmatprep.subr.bf16.mxu0 0
    %2967 = vmatpush1.bf16.msra.mxu0 0
    %2968 = vmatprep.subr.bf16.mxu0 0
    %2969 = vmatpush1.bf16.msra.mxu0 0
    %2970 = vmatprep.subr.bf16.mxu0 0
    %2971 = vmatpush1.bf16.msra.mxu0 0
    %2972 = vmatprep.subr.bf16.mxu0 0
    %2973 = vmatpush1.bf16.msra.mxu0 %v2956
    %2974 = vmatprep.subr.bf16.mxu0 0
    %2975 = vmatpush1.bf16.msra.mxu0 %v2955
    %2976 = vmatprep.subr.bf16.mxu0 0
    %2977 = vmatpush1.bf16.msra.mxu0 %v2954
    %2978 = vmatprep.subr.bf16.mxu0 0
    %2979 = vmatpush1.bf16.msra.mxu0 %v2953
    %2980 = vmatprep.subr.bf16.mxu0 0
    %2981 = vmatpush2.bf16.msra.mxu0 0
    %2982 = vmatprep.subr.bf16.mxu0 0
    %2983 = vmatpush2.bf16.msra.mxu0 0
    %2984 = vmatprep.subr.bf16.mxu0 0
    %2985 = vmatpush2.bf16.msra.mxu0 0
    %2986 = vmatprep.subr.bf16.mxu0 0
    %2987 = vmatpush2.bf16.msra.mxu0 0
    %2988 = vmatprep.subr.bf16.mxu0 0
    %2989 = vmatpush2.bf16.msra.mxu0 0
    %2990 = vmatprep.subr.bf16.mxu0 0
    %2991 = vmatpush2.bf16.msra.mxu0 0
    %2992 = vmatprep.subr.bf16.mxu0 0
    %2993 = vmatpush2.bf16.msra.mxu0 0
    %2994 = vmatprep.subr.bf16.mxu0 0
    %2995 = vmatpush2.bf16.msra.mxu0 0
    %2996 = vmatprep.mubr.bf16.mxu0 0
    %2997 = vmatmul.mubr.bf16.gmra.mxu0 %v2962
    %v2998 = vpop.f32.mrf.mxu0
    %v2999 = vadd.f32 0.0, %v2998
    %v3000 = vpop.f32.mrf.mxu0
    %v3001 = vpop.f32.mrf.mxu0
    %v3002 = vpop.f32.mrf.mxu0
    %3003 = vdwg.mxu0
    %v3004 = vadd.f32 %v2922, %v2999
    %v3005 = vld [vmem:[#allocation2 + $0x14] sm:$0x1]
    %s3006 = scalar_lea.vmem %s7, 640
    %v3007 = vld [vmem:[%s3006] sm:$0xf]
    %v3008 = vld [vmem:[%s3006 + $0x4] sm:$0xf]
    %v3009 = vld [vmem:[%s3006 + $0x8] sm:$0xf]
    %v3010 = vld [vmem:[%s3006 + $0xc] sm:$0xf]
    %v3011 = vld [vmem:[%s3006 + $0x10] sm:$0xf]
    %v3012 = vld [vmem:[%s3006 + $0x14] sm:$0xf]
    %v3013 = vld [vmem:[%s3006 + $0x18] sm:$0xf]
    %v3014 = vld [vmem:[%s3006 + $0x1c] sm:$0xf]
    %v3023 = vunpack.c.l.b16 %v3007
    %v3024 = vunpack.c.l.b16 %v3008
    %v3025 = vunpack.c.l.b16 %v3009
    %v3026 = vunpack.c.l.b16 %v3010
    %v3027 = vunpack.c.l.b16 %v3011
    %v3028 = vunpack.c.l.b16 %v3012
    %v3029 = vunpack.c.l.b16 %v3013
    %v3030 = vunpack.c.l.b16 %v3014
    %v3031 = vpack.c.b16 %v3024, %v3023
    %v3032 = vpack.c.b16 %v3026, %v3025
    %v3033 = vpack.c.b16 %v3028, %v3027
    %v3034 = vpack.c.b16 %v3030, %v3029
    %v3040 = vsel %vm1434, %v3005, 0
    %3042 = vmatprep.subr.bf16.mxu0 0
    %3043 = vmatpush1.bf16.msra.mxu0 0
    %3044 = vmatprep.subr.bf16.mxu0 0
    %3045 = vmatpush1.bf16.msra.mxu0 0
    %3046 = vmatprep.subr.bf16.mxu0 0
    %3047 = vmatpush1.bf16.msra.mxu0 0
    %3048 = vmatprep.subr.bf16.mxu0 0
    %3049 = vmatpush1.bf16.msra.mxu0 0
    %3050 = vmatprep.subr.bf16.mxu0 0
    %3051 = vmatpush1.bf16.msra.mxu0 %v3034
    %3052 = vmatprep.subr.bf16.mxu0 0
    %3053 = vmatpush1.bf16.msra.mxu0 %v3033
    %3054 = vmatprep.subr.bf16.mxu0 0
    %3055 = vmatpush1.bf16.msra.mxu0 %v3032
    %3056 = vmatprep.subr.bf16.mxu0 0
    %3057 = vmatpush1.bf16.msra.mxu0 %v3031
    %3058 = vmatprep.subr.bf16.mxu0 0
    %3059 = vmatpush2.bf16.msra.mxu0 0
    %3060 = vmatprep.subr.bf16.mxu0 0
    %3061 = vmatpush2.bf16.msra.mxu0 0
    %3062 = vmatprep.subr.bf16.mxu0 0
    %3063 = vmatpush2.bf16.msra.mxu0 0
    %3064 = vmatprep.subr.bf16.mxu0 0
    %3065 = vmatpush2.bf16.msra.mxu0 0
    %3066 = vmatprep.subr.bf16.mxu0 0
    %3067 = vmatpush2.bf16.msra.mxu0 0
    %3068 = vmatprep.subr.bf16.mxu0 0
    %3069 = vmatpush2.bf16.msra.mxu0 0
    %3070 = vmatprep.subr.bf16.mxu0 0
    %3071 = vmatpush2.bf16.msra.mxu0 0
    %3072 = vmatprep.subr.bf16.mxu0 0
    %3073 = vmatpush2.bf16.msra.mxu0 0
    %3074 = vmatprep.mubr.bf16.mxu0 0
    %3075 = vmatmul.mubr.bf16.gmra.mxu0 %v3040
    %v3076 = vpop.f32.mrf.mxu0
    %v3077 = vadd.f32 0.0, %v3076
    %v3078 = vpop.f32.mrf.mxu0
    %v3079 = vpop.f32.mrf.mxu0
    %v3080 = vpop.f32.mrf.mxu0
    %3081 = vdwg.mxu0
    %v3082 = vadd.f32 %v3004, %v3077
    %v3083 = vld [vmem:[#allocation2 + $0x14] sm:$0x2]
    %s3084 = scalar_lea.vmem %s7, 672
    %v3085 = vld [vmem:[%s3084] sm:$0xf]
    %v3086 = vld [vmem:[%s3084 + $0x4] sm:$0xf]
    %v3087 = vld [vmem:[%s3084 + $0x8] sm:$0xf]
    %v3088 = vld [vmem:[%s3084 + $0xc] sm:$0xf]
    %v3089 = vld [vmem:[%s3084 + $0x10] sm:$0xf]
    %v3090 = vld [vmem:[%s3084 + $0x14] sm:$0xf]
    %v3091 = vld [vmem:[%s3084 + $0x18] sm:$0xf]
    %v3092 = vld [vmem:[%s3084 + $0x1c] sm:$0xf]
    %v3094 = vunpack.c.l.b16 %v3083
    %v3095 = vpack.c.b16 %v3094, %v3094
    %v3096 = vrot.slane %v3095, 1
    %v3105 = vunpack.c.l.b16 %v3085
    %v3106 = vunpack.c.l.b16 %v3086
    %v3107 = vunpack.c.l.b16 %v3087
    %v3108 = vunpack.c.l.b16 %v3088
    %v3109 = vunpack.c.l.b16 %v3089
    %v3110 = vunpack.c.l.b16 %v3090
    %v3111 = vunpack.c.l.b16 %v3091
    %v3112 = vunpack.c.l.b16 %v3092
    %v3113 = vpack.c.b16 %v3106, %v3105
    %v3114 = vpack.c.b16 %v3108, %v3107
    %v3115 = vpack.c.b16 %v3110, %v3109
    %v3116 = vpack.c.b16 %v3112, %v3111
    %v3122 = vsel %vm1434, %v3096, 0
    %3124 = vmatprep.subr.bf16.mxu0 0
    %3125 = vmatpush1.bf16.msra.mxu0 0
    %3126 = vmatprep.subr.bf16.mxu0 0
    %3127 = vmatpush1.bf16.msra.mxu0 0
    %3128 = vmatprep.subr.bf16.mxu0 0
    %3129 = vmatpush1.bf16.msra.mxu0 0
    %3130 = vmatprep.subr.bf16.mxu0 0
    %3131 = vmatpush1.bf16.msra.mxu0 0
    %3132 = vmatprep.subr.bf16.mxu0 0
    %3133 = vmatpush1.bf16.msra.mxu0 %v3116
    %3134 = vmatprep.subr.bf16.mxu0 0
    %3135 = vmatpush1.bf16.msra.mxu0 %v3115
    %3136 = vmatprep.subr.bf16.mxu0 0
    %3137 = vmatpush1.bf16.msra.mxu0 %v3114
    %3138 = vmatprep.subr.bf16.mxu0 0
    %3139 = vmatpush1.bf16.msra.mxu0 %v3113
    %3140 = vmatprep.subr.bf16.mxu0 0
    %3141 = vmatpush2.bf16.msra.mxu0 0
    %3142 = vmatprep.subr.bf16.mxu0 0
    %3143 = vmatpush2.bf16.msra.mxu0 0
    %3144 = vmatprep.subr.bf16.mxu0 0
    %3145 = vmatpush2.bf16.msra.mxu0 0
    %3146 = vmatprep.subr.bf16.mxu0 0
    %3147 = vmatpush2.bf16.msra.mxu0 0
    %3148 = vmatprep.subr.bf16.mxu0 0
    %3149 = vmatpush2.bf16.msra.mxu0 0
    %3150 = vmatprep.subr.bf16.mxu0 0
    %3151 = vmatpush2.bf16.msra.mxu0 0
    %3152 = vmatprep.subr.bf16.mxu0 0
    %3153 = vmatpush2.bf16.msra.mxu0 0
    %3154 = vmatprep.subr.bf16.mxu0 0
    %3155 = vmatpush2.bf16.msra.mxu0 0
    %3156 = vmatprep.mubr.bf16.mxu0 0
    %3157 = vmatmul.mubr.bf16.gmra.mxu0 %v3122
    %v3158 = vpop.f32.mrf.mxu0
    %v3159 = vadd.f32 0.0, %v3158
    %v3160 = vpop.f32.mrf.mxu0
    %v3161 = vpop.f32.mrf.mxu0
    %v3162 = vpop.f32.mrf.mxu0
    %3163 = vdwg.mxu0
    %v3164 = vadd.f32 %v3082, %v3159
    %v3165 = vld [vmem:[#allocation2 + $0x14] sm:$0x4]
    %s3166 = scalar_lea.vmem %s7, 704
    %v3167 = vld [vmem:[%s3166] sm:$0xf]
    %v3168 = vld [vmem:[%s3166 + $0x4] sm:$0xf]
    %v3169 = vld [vmem:[%s3166 + $0x8] sm:$0xf]
    %v3170 = vld [vmem:[%s3166 + $0xc] sm:$0xf]
    %v3171 = vld [vmem:[%s3166 + $0x10] sm:$0xf]
    %v3172 = vld [vmem:[%s3166 + $0x14] sm:$0xf]
    %v3173 = vld [vmem:[%s3166 + $0x18] sm:$0xf]
    %v3174 = vld [vmem:[%s3166 + $0x1c] sm:$0xf]
    %v3176 = vunpack.c.l.b16 %v3165
    %v3177 = vpack.c.b16 %v3176, %v3176
    %v3178 = vrot.slane %v3177, 2
    %v3187 = vunpack.c.l.b16 %v3167
    %v3188 = vunpack.c.l.b16 %v3168
    %v3189 = vunpack.c.l.b16 %v3169
    %v3190 = vunpack.c.l.b16 %v3170
    %v3191 = vunpack.c.l.b16 %v3171
    %v3192 = vunpack.c.l.b16 %v3172
    %v3193 = vunpack.c.l.b16 %v3173
    %v3194 = vunpack.c.l.b16 %v3174
    %v3195 = vpack.c.b16 %v3188, %v3187
    %v3196 = vpack.c.b16 %v3190, %v3189
    %v3197 = vpack.c.b16 %v3192, %v3191
    %v3198 = vpack.c.b16 %v3194, %v3193
    %v3204 = vsel %vm1434, %v3178, 0
    %3206 = vmatprep.subr.bf16.mxu0 0
    %3207 = vmatpush1.bf16.msra.mxu0 0
    %3208 = vmatprep.subr.bf16.mxu0 0
    %3209 = vmatpush1.bf16.msra.mxu0 0
    %3210 = vmatprep.subr.bf16.mxu0 0
    %3211 = vmatpush1.bf16.msra.mxu0 0
    %3212 = vmatprep.subr.bf16.mxu0 0
    %3213 = vmatpush1.bf16.msra.mxu0 0
    %3214 = vmatprep.subr.bf16.mxu0 0
    %3215 = vmatpush1.bf16.msra.mxu0 %v3198
    %3216 = vmatprep.subr.bf16.mxu0 0
    %3217 = vmatpush1.bf16.msra.mxu0 %v3197
    %3218 = vmatprep.subr.bf16.mxu0 0
    %3219 = vmatpush1.bf16.msra.mxu0 %v3196
    %3220 = vmatprep.subr.bf16.mxu0 0
    %3221 = vmatpush1.bf16.msra.mxu0 %v3195
    %3222 = vmatprep.subr.bf16.mxu0 0
    %3223 = vmatpush2.bf16.msra.mxu0 0
    %3224 = vmatprep.subr.bf16.mxu0 0
    %3225 = vmatpush2.bf16.msra.mxu0 0
    %3226 = vmatprep.subr.bf16.mxu0 0
    %3227 = vmatpush2.bf16.msra.mxu0 0
    %3228 = vmatprep.subr.bf16.mxu0 0
    %3229 = vmatpush2.bf16.msra.mxu0 0
    %3230 = vmatprep.subr.bf16.mxu0 0
    %3231 = vmatpush2.bf16.msra.mxu0 0
    %3232 = vmatprep.subr.bf16.mxu0 0
    %3233 = vmatpush2.bf16.msra.mxu0 0
    %3234 = vmatprep.subr.bf16.mxu0 0
    %3235 = vmatpush2.bf16.msra.mxu0 0
    %3236 = vmatprep.subr.bf16.mxu0 0
    %3237 = vmatpush2.bf16.msra.mxu0 0
    %3238 = vmatprep.mubr.bf16.mxu0 0
    %3239 = vmatmul.mubr.bf16.gmra.mxu0 %v3204
    %v3240 = vpop.f32.mrf.mxu0
    %v3241 = vadd.f32 0.0, %v3240
    %v3242 = vpop.f32.mrf.mxu0
    %v3243 = vpop.f32.mrf.mxu0
    %v3244 = vpop.f32.mrf.mxu0
    %3245 = vdwg.mxu0
    %v3246 = vadd.f32 %v3164, %v3241
    %v3247 = vld [vmem:[#allocation2 + $0x14] sm:$0x8]
    %s3248 = scalar_lea.vmem %s7, 736
    %v3249 = vld [vmem:[%s3248] sm:$0xf]
    %v3250 = vld [vmem:[%s3248 + $0x4] sm:$0xf]
    %v3251 = vld [vmem:[%s3248 + $0x8] sm:$0xf]
    %v3252 = vld [vmem:[%s3248 + $0xc] sm:$0xf]
    %v3253 = vld [vmem:[%s3248 + $0x10] sm:$0xf]
    %v3254 = vld [vmem:[%s3248 + $0x14] sm:$0xf]
    %v3255 = vld [vmem:[%s3248 + $0x18] sm:$0xf]
    %v3256 = vld [vmem:[%s3248 + $0x1c] sm:$0xf]
    %v3258 = vunpack.c.l.b16 %v3247
    %v3259 = vpack.c.b16 %v3258, %v3258
    %v3260 = vrot.slane %v3259, 3
    %v3269 = vunpack.c.l.b16 %v3249
    %v3270 = vunpack.c.l.b16 %v3250
    %v3271 = vunpack.c.l.b16 %v3251
    %v3272 = vunpack.c.l.b16 %v3252
    %v3273 = vunpack.c.l.b16 %v3253
    %v3274 = vunpack.c.l.b16 %v3254
    %v3275 = vunpack.c.l.b16 %v3255
    %v3276 = vunpack.c.l.b16 %v3256
    %v3277 = vpack.c.b16 %v3270, %v3269
    %v3278 = vpack.c.b16 %v3272, %v3271
    %v3279 = vpack.c.b16 %v3274, %v3273
    %v3280 = vpack.c.b16 %v3276, %v3275
    %v3286 = vsel %vm1434, %v3260, 0
    %3288 = vmatprep.subr.bf16.mxu0 0
    %3289 = vmatpush1.bf16.msra.mxu0 0
    %3290 = vmatprep.subr.bf16.mxu0 0
    %3291 = vmatpush1.bf16.msra.mxu0 0
    %3292 = vmatprep.subr.bf16.mxu0 0
    %3293 = vmatpush1.bf16.msra.mxu0 0
    %3294 = vmatprep.subr.bf16.mxu0 0
    %3295 = vmatpush1.bf16.msra.mxu0 0
    %3296 = vmatprep.subr.bf16.mxu0 0
    %3297 = vmatpush1.bf16.msra.mxu0 %v3280
    %3298 = vmatprep.subr.bf16.mxu0 0
    %3299 = vmatpush1.bf16.msra.mxu0 %v3279
    %3300 = vmatprep.subr.bf16.mxu0 0
    %3301 = vmatpush1.bf16.msra.mxu0 %v3278
    %3302 = vmatprep.subr.bf16.mxu0 0
    %3303 = vmatpush1.bf16.msra.mxu0 %v3277
    %3304 = vmatprep.subr.bf16.mxu0 0
    %3305 = vmatpush2.bf16.msra.mxu0 0
    %3306 = vmatprep.subr.bf16.mxu0 0
    %3307 = vmatpush2.bf16.msra.mxu0 0
    %3308 = vmatprep.subr.bf16.mxu0 0
    %3309 = vmatpush2.bf16.msra.mxu0 0
    %3310 = vmatprep.subr.bf16.mxu0 0
    %3311 = vmatpush2.bf16.msra.mxu0 0
    %3312 = vmatprep.subr.bf16.mxu0 0
    %3313 = vmatpush2.bf16.msra.mxu0 0
    %3314 = vmatprep.subr.bf16.mxu0 0
    %3315 = vmatpush2.bf16.msra.mxu0 0
    %3316 = vmatprep.subr.bf16.mxu0 0
    %3317 = vmatpush2.bf16.msra.mxu0 0
    %3318 = vmatprep.subr.bf16.mxu0 0
    %3319 = vmatpush2.bf16.msra.mxu0 0
    %3320 = vmatprep.mubr.bf16.mxu0 0
    %3321 = vmatmul.mubr.bf16.gmra.mxu0 %v3286
    %v3322 = vpop.f32.mrf.mxu0
    %v3323 = vadd.f32 0.0, %v3322
    %v3324 = vpop.f32.mrf.mxu0
    %v3325 = vpop.f32.mrf.mxu0
    %v3326 = vpop.f32.mrf.mxu0
    %3327 = vdwg.mxu0
    %v3328 = vadd.f32 %v3246, %v3323
    %v3329 = vld [vmem:[#allocation2 + $0x18] sm:$0x1]
    %s3330 = scalar_lea.vmem %s7, 768
    %v3331 = vld [vmem:[%s3330] sm:$0xf]
    %v3332 = vld [vmem:[%s3330 + $0x4] sm:$0xf]
    %v3333 = vld [vmem:[%s3330 + $0x8] sm:$0xf]
    %v3334 = vld [vmem:[%s3330 + $0xc] sm:$0xf]
    %v3335 = vld [vmem:[%s3330 + $0x10] sm:$0xf]
    %v3336 = vld [vmem:[%s3330 + $0x14] sm:$0xf]
    %v3337 = vld [vmem:[%s3330 + $0x18] sm:$0xf]
    %v3338 = vld [vmem:[%s3330 + $0x1c] sm:$0xf]
    %v3347 = vunpack.c.l.b16 %v3331
    %v3348 = vunpack.c.l.b16 %v3332
    %v3349 = vunpack.c.l.b16 %v3333
    %v3350 = vunpack.c.l.b16 %v3334
    %v3351 = vunpack.c.l.b16 %v3335
    %v3352 = vunpack.c.l.b16 %v3336
    %v3353 = vunpack.c.l.b16 %v3337
    %v3354 = vunpack.c.l.b16 %v3338
    %v3355 = vpack.c.b16 %v3348, %v3347
    %v3356 = vpack.c.b16 %v3350, %v3349
    %v3357 = vpack.c.b16 %v3352, %v3351
    %v3358 = vpack.c.b16 %v3354, %v3353
    %v3364 = vsel %vm1434, %v3329, 0
    %3366 = vmatprep.subr.bf16.mxu0 0
    %3367 = vmatpush1.bf16.msra.mxu0 0
    %3368 = vmatprep.subr.bf16.mxu0 0
    %3369 = vmatpush1.bf16.msra.mxu0 0
    %3370 = vmatprep.subr.bf16.mxu0 0
    %3371 = vmatpush1.bf16.msra.mxu0 0
    %3372 = vmatprep.subr.bf16.mxu0 0
    %3373 = vmatpush1.bf16.msra.mxu0 0
    %3374 = vmatprep.subr.bf16.mxu0 0
    %3375 = vmatpush1.bf16.msra.mxu0 %v3358
    %3376 = vmatprep.subr.bf16.mxu0 0
    %3377 = vmatpush1.bf16.msra.mxu0 %v3357
    %3378 = vmatprep.subr.bf16.mxu0 0
    %3379 = vmatpush1.bf16.msra.mxu0 %v3356
    %3380 = vmatprep.subr.bf16.mxu0 0
    %3381 = vmatpush1.bf16.msra.mxu0 %v3355
    %3382 = vmatprep.subr.bf16.mxu0 0
    %3383 = vmatpush2.bf16.msra.mxu0 0
    %3384 = vmatprep.subr.bf16.mxu0 0
    %3385 = vmatpush2.bf16.msra.mxu0 0
    %3386 = vmatprep.subr.bf16.mxu0 0
    %3387 = vmatpush2.bf16.msra.mxu0 0
    %3388 = vmatprep.subr.bf16.mxu0 0
    %3389 = vmatpush2.bf16.msra.mxu0 0
    %3390 = vmatprep.subr.bf16.mxu0 0
    %3391 = vmatpush2.bf16.msra.mxu0 0
    %3392 = vmatprep.subr.bf16.mxu0 0
    %3393 = vmatpush2.bf16.msra.mxu0 0
    %3394 = vmatprep.subr.bf16.mxu0 0
    %3395 = vmatpush2.bf16.msra.mxu0 0
    %3396 = vmatprep.subr.bf16.mxu0 0
    %3397 = vmatpush2.bf16.msra.mxu0 0
    %3398 = vmatprep.mubr.bf16.mxu0 0
    %3399 = vmatmul.mubr.bf16.gmra.mxu0 %v3364
    %v3400 = vpop.f32.mrf.mxu0
    %v3401 = vadd.f32 0.0, %v3400
    %v3402 = vpop.f32.mrf.mxu0
    %v3403 = vpop.f32.mrf.mxu0
    %v3404 = vpop.f32.mrf.mxu0
    %3405 = vdwg.mxu0
    %v3406 = vadd.f32 %v3328, %v3401
    %v3407 = vld [vmem:[#allocation2 + $0x18] sm:$0x2]
    %s3408 = scalar_lea.vmem %s7, 800
    %v3409 = vld [vmem:[%s3408] sm:$0xf]
    %v3410 = vld [vmem:[%s3408 + $0x4] sm:$0xf]
    %v3411 = vld [vmem:[%s3408 + $0x8] sm:$0xf]
    %v3412 = vld [vmem:[%s3408 + $0xc] sm:$0xf]
    %v3413 = vld [vmem:[%s3408 + $0x10] sm:$0xf]
    %v3414 = vld [vmem:[%s3408 + $0x14] sm:$0xf]
    %v3415 = vld [vmem:[%s3408 + $0x18] sm:$0xf]
    %v3416 = vld [vmem:[%s3408 + $0x1c] sm:$0xf]
    %v3418 = vunpack.c.l.b16 %v3407
    %v3419 = vpack.c.b16 %v3418, %v3418
    %v3420 = vrot.slane %v3419, 1
    %v3429 = vunpack.c.l.b16 %v3409
    %v3430 = vunpack.c.l.b16 %v3410
    %v3431 = vunpack.c.l.b16 %v3411
    %v3432 = vunpack.c.l.b16 %v3412
    %v3433 = vunpack.c.l.b16 %v3413
    %v3434 = vunpack.c.l.b16 %v3414
    %v3435 = vunpack.c.l.b16 %v3415
    %v3436 = vunpack.c.l.b16 %v3416
    %v3437 = vpack.c.b16 %v3430, %v3429
    %v3438 = vpack.c.b16 %v3432, %v3431
    %v3439 = vpack.c.b16 %v3434, %v3433
    %v3440 = vpack.c.b16 %v3436, %v3435
    %v3446 = vsel %vm1434, %v3420, 0
    %3448 = vmatprep.subr.bf16.mxu0 0
    %3449 = vmatpush1.bf16.msra.mxu0 0
    %3450 = vmatprep.subr.bf16.mxu0 0
    %3451 = vmatpush1.bf16.msra.mxu0 0
    %3452 = vmatprep.subr.bf16.mxu0 0
    %3453 = vmatpush1.bf16.msra.mxu0 0
    %3454 = vmatprep.subr.bf16.mxu0 0
    %3455 = vmatpush1.bf16.msra.mxu0 0
    %3456 = vmatprep.subr.bf16.mxu0 0
    %3457 = vmatpush1.bf16.msra.mxu0 %v3440
    %3458 = vmatprep.subr.bf16.mxu0 0
    %3459 = vmatpush1.bf16.msra.mxu0 %v3439
    %3460 = vmatprep.subr.bf16.mxu0 0
    %3461 = vmatpush1.bf16.msra.mxu0 %v3438
    %3462 = vmatprep.subr.bf16.mxu0 0
    %3463 = vmatpush1.bf16.msra.mxu0 %v3437
    %3464 = vmatprep.subr.bf16.mxu0 0
    %3465 = vmatpush2.bf16.msra.mxu0 0
    %3466 = vmatprep.subr.bf16.mxu0 0
    %3467 = vmatpush2.bf16.msra.mxu0 0
    %3468 = vmatprep.subr.bf16.mxu0 0
    %3469 = vmatpush2.bf16.msra.mxu0 0
    %3470 = vmatprep.subr.bf16.mxu0 0
    %3471 = vmatpush2.bf16.msra.mxu0 0
    %3472 = vmatprep.subr.bf16.mxu0 0
    %3473 = vmatpush2.bf16.msra.mxu0 0
    %3474 = vmatprep.subr.bf16.mxu0 0
    %3475 = vmatpush2.bf16.msra.mxu0 0
    %3476 = vmatprep.subr.bf16.mxu0 0
    %3477 = vmatpush2.bf16.msra.mxu0 0
    %3478 = vmatprep.subr.bf16.mxu0 0
    %3479 = vmatpush2.bf16.msra.mxu0 0
    %3480 = vmatprep.mubr.bf16.mxu0 0
    %3481 = vmatmul.mubr.bf16.gmra.mxu0 %v3446
    %v3482 = vpop.f32.mrf.mxu0
    %v3483 = vadd.f32 0.0, %v3482
    %v3484 = vpop.f32.mrf.mxu0
    %v3485 = vpop.f32.mrf.mxu0
    %v3486 = vpop.f32.mrf.mxu0
    %3487 = vdwg.mxu0
    %v3488 = vadd.f32 %v3406, %v3483
    %v3489 = vld [vmem:[#allocation2 + $0x18] sm:$0x4]
    %s3490 = scalar_lea.vmem %s7, 832
    %v3491 = vld [vmem:[%s3490] sm:$0xf]
    %v3492 = vld [vmem:[%s3490 + $0x4] sm:$0xf]
    %v3493 = vld [vmem:[%s3490 + $0x8] sm:$0xf]
    %v3494 = vld [vmem:[%s3490 + $0xc] sm:$0xf]
    %v3495 = vld [vmem:[%s3490 + $0x10] sm:$0xf]
    %v3496 = vld [vmem:[%s3490 + $0x14] sm:$0xf]
    %v3497 = vld [vmem:[%s3490 + $0x18] sm:$0xf]
    %v3498 = vld [vmem:[%s3490 + $0x1c] sm:$0xf]
    %v3500 = vunpack.c.l.b16 %v3489
    %v3501 = vpack.c.b16 %v3500, %v3500
    %v3502 = vrot.slane %v3501, 2
    %v3511 = vunpack.c.l.b16 %v3491
    %v3512 = vunpack.c.l.b16 %v3492
    %v3513 = vunpack.c.l.b16 %v3493
    %v3514 = vunpack.c.l.b16 %v3494
    %v3515 = vunpack.c.l.b16 %v3495
    %v3516 = vunpack.c.l.b16 %v3496
    %v3517 = vunpack.c.l.b16 %v3497
    %v3518 = vunpack.c.l.b16 %v3498
    %v3519 = vpack.c.b16 %v3512, %v3511
    %v3520 = vpack.c.b16 %v3514, %v3513
    %v3521 = vpack.c.b16 %v3516, %v3515
    %v3522 = vpack.c.b16 %v3518, %v3517
    %v3528 = vsel %vm1434, %v3502, 0
    %3530 = vmatprep.subr.bf16.mxu0 0
    %3531 = vmatpush1.bf16.msra.mxu0 0
    %3532 = vmatprep.subr.bf16.mxu0 0
    %3533 = vmatpush1.bf16.msra.mxu0 0
    %3534 = vmatprep.subr.bf16.mxu0 0
    %3535 = vmatpush1.bf16.msra.mxu0 0
    %3536 = vmatprep.subr.bf16.mxu0 0
    %3537 = vmatpush1.bf16.msra.mxu0 0
    %3538 = vmatprep.subr.bf16.mxu0 0
    %3539 = vmatpush1.bf16.msra.mxu0 %v3522
    %3540 = vmatprep.subr.bf16.mxu0 0
    %3541 = vmatpush1.bf16.msra.mxu0 %v3521
    %3542 = vmatprep.subr.bf16.mxu0 0
    %3543 = vmatpush1.bf16.msra.mxu0 %v3520
    %3544 = vmatprep.subr.bf16.mxu0 0
    %3545 = vmatpush1.bf16.msra.mxu0 %v3519
    %3546 = vmatprep.subr.bf16.mxu0 0
    %3547 = vmatpush2.bf16.msra.mxu0 0
    %3548 = vmatprep.subr.bf16.mxu0 0
    %3549 = vmatpush2.bf16.msra.mxu0 0
    %3550 = vmatprep.subr.bf16.mxu0 0
    %3551 = vmatpush2.bf16.msra.mxu0 0
    %3552 = vmatprep.subr.bf16.mxu0 0
    %3553 = vmatpush2.bf16.msra.mxu0 0
    %3554 = vmatprep.subr.bf16.mxu0 0
    %3555 = vmatpush2.bf16.msra.mxu0 0
    %3556 = vmatprep.subr.bf16.mxu0 0
    %3557 = vmatpush2.bf16.msra.mxu0 0
    %3558 = vmatprep.subr.bf16.mxu0 0
    %3559 = vmatpush2.bf16.msra.mxu0 0
    %3560 = vmatprep.subr.bf16.mxu0 0
    %3561 = vmatpush2.bf16.msra.mxu0 0
    %3562 = vmatprep.mubr.bf16.mxu0 0
    %3563 = vmatmul.mubr.bf16.gmra.mxu0 %v3528
    %v3564 = vpop.f32.mrf.mxu0
    %v3565 = vadd.f32 0.0, %v3564
    %v3566 = vpop.f32.mrf.mxu0
    %v3567 = vpop.f32.mrf.mxu0
    %v3568 = vpop.f32.mrf.mxu0
    %3569 = vdwg.mxu0
    %v3570 = vadd.f32 %v3488, %v3565
    %v3571 = vld [vmem:[#allocation2 + $0x18] sm:$0x8]
    %s3572 = scalar_lea.vmem %s7, 864
    %v3573 = vld [vmem:[%s3572] sm:$0xf]
    %v3574 = vld [vmem:[%s3572 + $0x4] sm:$0xf]
    %v3575 = vld [vmem:[%s3572 + $0x8] sm:$0xf]
    %v3576 = vld [vmem:[%s3572 + $0xc] sm:$0xf]
    %v3577 = vld [vmem:[%s3572 + $0x10] sm:$0xf]
    %v3578 = vld [vmem:[%s3572 + $0x14] sm:$0xf]
    %v3579 = vld [vmem:[%s3572 + $0x18] sm:$0xf]
    %v3580 = vld [vmem:[%s3572 + $0x1c] sm:$0xf]
    %v3582 = vunpack.c.l.b16 %v3571
    %v3583 = vpack.c.b16 %v3582, %v3582
    %v3584 = vrot.slane %v3583, 3
    %v3593 = vunpack.c.l.b16 %v3573
    %v3594 = vunpack.c.l.b16 %v3574
    %v3595 = vunpack.c.l.b16 %v3575
    %v3596 = vunpack.c.l.b16 %v3576
    %v3597 = vunpack.c.l.b16 %v3577
    %v3598 = vunpack.c.l.b16 %v3578
    %v3599 = vunpack.c.l.b16 %v3579
    %v3600 = vunpack.c.l.b16 %v3580
    %v3601 = vpack.c.b16 %v3594, %v3593
    %v3602 = vpack.c.b16 %v3596, %v3595
    %v3603 = vpack.c.b16 %v3598, %v3597
    %v3604 = vpack.c.b16 %v3600, %v3599
    %v3610 = vsel %vm1434, %v3584, 0
    %3612 = vmatprep.subr.bf16.mxu0 0
    %3613 = vmatpush1.bf16.msra.mxu0 0
    %3614 = vmatprep.subr.bf16.mxu0 0
    %3615 = vmatpush1.bf16.msra.mxu0 0
    %3616 = vmatprep.subr.bf16.mxu0 0
    %3617 = vmatpush1.bf16.msra.mxu0 0
    %3618 = vmatprep.subr.bf16.mxu0 0
    %3619 = vmatpush1.bf16.msra.mxu0 0
    %3620 = vmatprep.subr.bf16.mxu0 0
    %3621 = vmatpush1.bf16.msra.mxu0 %v3604
    %3622 = vmatprep.subr.bf16.mxu0 0
    %3623 = vmatpush1.bf16.msra.mxu0 %v3603
    %3624 = vmatprep.subr.bf16.mxu0 0
    %3625 = vmatpush1.bf16.msra.mxu0 %v3602
    %3626 = vmatprep.subr.bf16.mxu0 0
    %3627 = vmatpush1.bf16.msra.mxu0 %v3601
    %3628 = vmatprep.subr.bf16.mxu0 0
    %3629 = vmatpush2.bf16.msra.mxu0 0
    %3630 = vmatprep.subr.bf16.mxu0 0
    %3631 = vmatpush2.bf16.msra.mxu0 0
    %3632 = vmatprep.subr.bf16.mxu0 0
    %3633 = vmatpush2.bf16.msra.mxu0 0
    %3634 = vmatprep.subr.bf16.mxu0 0
    %3635 = vmatpush2.bf16.msra.mxu0 0
    %3636 = vmatprep.subr.bf16.mxu0 0
    %3637 = vmatpush2.bf16.msra.mxu0 0
    %3638 = vmatprep.subr.bf16.mxu0 0
    %3639 = vmatpush2.bf16.msra.mxu0 0
    %3640 = vmatprep.subr.bf16.mxu0 0
    %3641 = vmatpush2.bf16.msra.mxu0 0
    %3642 = vmatprep.subr.bf16.mxu0 0
    %3643 = vmatpush2.bf16.msra.mxu0 0
    %3644 = vmatprep.mubr.bf16.mxu0 0
    %3645 = vmatmul.mubr.bf16.gmra.mxu0 %v3610
    %v3646 = vpop.f32.mrf.mxu0
    %v3647 = vadd.f32 0.0, %v3646
    %v3648 = vpop.f32.mrf.mxu0
    %v3649 = vpop.f32.mrf.mxu0
    %v3650 = vpop.f32.mrf.mxu0
    %3651 = vdwg.mxu0
    %v3652 = vadd.f32 %v3570, %v3647
    %v3653 = vld [vmem:[#allocation2 + $0x1c] sm:$0x1]
    %s3654 = scalar_lea.vmem %s7, 896
    %v3655 = vld [vmem:[%s3654] sm:$0xf]
    %v3656 = vld [vmem:[%s3654 + $0x4] sm:$0xf]
    %v3657 = vld [vmem:[%s3654 + $0x8] sm:$0xf]
    %v3658 = vld [vmem:[%s3654 + $0xc] sm:$0xf]
    %v3659 = vld [vmem:[%s3654 + $0x10] sm:$0xf]
    %v3660 = vld [vmem:[%s3654 + $0x14] sm:$0xf]
    %v3661 = vld [vmem:[%s3654 + $0x18] sm:$0xf]
    %v3662 = vld [vmem:[%s3654 + $0x1c] sm:$0xf]
    %v3671 = vunpack.c.l.b16 %v3655
    %v3672 = vunpack.c.l.b16 %v3656
    %v3673 = vunpack.c.l.b16 %v3657
    %v3674 = vunpack.c.l.b16 %v3658
    %v3675 = vunpack.c.l.b16 %v3659
    %v3676 = vunpack.c.l.b16 %v3660
    %v3677 = vunpack.c.l.b16 %v3661
    %v3678 = vunpack.c.l.b16 %v3662
    %v3679 = vpack.c.b16 %v3672, %v3671
    %v3680 = vpack.c.b16 %v3674, %v3673
    %v3681 = vpack.c.b16 %v3676, %v3675
    %v3682 = vpack.c.b16 %v3678, %v3677
    %v3688 = vsel %vm1434, %v3653, 0
    %3690 = vmatprep.subr.bf16.mxu0 0
    %3691 = vmatpush1.bf16.msra.mxu0 0
    %3692 = vmatprep.subr.bf16.mxu0 0
    %3693 = vmatpush1.bf16.msra.mxu0 0
    %3694 = vmatprep.subr.bf16.mxu0 0
    %3695 = vmatpush1.bf16.msra.mxu0 0
    %3696 = vmatprep.subr.bf16.mxu0 0
    %3697 = vmatpush1.bf16.msra.mxu0 0
    %3698 = vmatprep.subr.bf16.mxu0 0
    %3699 = vmatpush1.bf16.msra.mxu0 %v3682
    %3700 = vmatprep.subr.bf16.mxu0 0
    %3701 = vmatpush1.bf16.msra.mxu0 %v3681
    %3702 = vmatprep.subr.bf16.mxu0 0
    %3703 = vmatpush1.bf16.msra.mxu0 %v3680
    %3704 = vmatprep.subr.bf16.mxu0 0
    %3705 = vmatpush1.bf16.msra.mxu0 %v3679
    %3706 = vmatprep.subr.bf16.mxu0 0
    %3707 = vmatpush2.bf16.msra.mxu0 0
    %3708 = vmatprep.subr.bf16.mxu0 0
    %3709 = vmatpush2.bf16.msra.mxu0 0
    %3710 = vmatprep.subr.bf16.mxu0 0
    %3711 = vmatpush2.bf16.msra.mxu0 0
    %3712 = vmatprep.subr.bf16.mxu0 0
    %3713 = vmatpush2.bf16.msra.mxu0 0
    %3714 = vmatprep.subr.bf16.mxu0 0
    %3715 = vmatpush2.bf16.msra.mxu0 0
    %3716 = vmatprep.subr.bf16.mxu0 0
    %3717 = vmatpush2.bf16.msra.mxu0 0
    %3718 = vmatprep.subr.bf16.mxu0 0
    %3719 = vmatpush2.bf16.msra.mxu0 0
    %3720 = vmatprep.subr.bf16.mxu0 0
    %3721 = vmatpush2.bf16.msra.mxu0 0
    %3722 = vmatprep.mubr.bf16.mxu0 0
    %3723 = vmatmul.mubr.bf16.gmra.mxu0 %v3688
    %v3724 = vpop.f32.mrf.mxu0
    %v3725 = vadd.f32 0.0, %v3724
    %v3726 = vpop.f32.mrf.mxu0
    %v3727 = vpop.f32.mrf.mxu0
    %v3728 = vpop.f32.mrf.mxu0
    %3729 = vdwg.mxu0
    %v3730 = vadd.f32 %v3652, %v3725
    %v3731 = vld [vmem:[#allocation2 + $0x1c] sm:$0x2]
    %s3732 = scalar_lea.vmem %s7, 928
    %v3733 = vld [vmem:[%s3732] sm:$0xf]
    %v3734 = vld [vmem:[%s3732 + $0x4] sm:$0xf]
    %v3735 = vld [vmem:[%s3732 + $0x8] sm:$0xf]
    %v3736 = vld [vmem:[%s3732 + $0xc] sm:$0xf]
    %v3737 = vld [vmem:[%s3732 + $0x10] sm:$0xf]
    %v3738 = vld [vmem:[%s3732 + $0x14] sm:$0xf]
    %v3739 = vld [vmem:[%s3732 + $0x18] sm:$0xf]
    %v3740 = vld [vmem:[%s3732 + $0x1c] sm:$0xf]
    %v3742 = vunpack.c.l.b16 %v3731
    %v3743 = vpack.c.b16 %v3742, %v3742
    %v3744 = vrot.slane %v3743, 1
    %v3753 = vunpack.c.l.b16 %v3733
    %v3754 = vunpack.c.l.b16 %v3734
    %v3755 = vunpack.c.l.b16 %v3735
    %v3756 = vunpack.c.l.b16 %v3736
    %v3757 = vunpack.c.l.b16 %v3737
    %v3758 = vunpack.c.l.b16 %v3738
    %v3759 = vunpack.c.l.b16 %v3739
    %v3760 = vunpack.c.l.b16 %v3740
    %v3761 = vpack.c.b16 %v3754, %v3753
    %v3762 = vpack.c.b16 %v3756, %v3755
    %v3763 = vpack.c.b16 %v3758, %v3757
    %v3764 = vpack.c.b16 %v3760, %v3759
    %v3770 = vsel %vm1434, %v3744, 0
    %3772 = vmatprep.subr.bf16.mxu0 0
    %3773 = vmatpush1.bf16.msra.mxu0 0
    %3774 = vmatprep.subr.bf16.mxu0 0
    %3775 = vmatpush1.bf16.msra.mxu0 0
    %3776 = vmatprep.subr.bf16.mxu0 0
    %3777 = vmatpush1.bf16.msra.mxu0 0
    %3778 = vmatprep.subr.bf16.mxu0 0
    %3779 = vmatpush1.bf16.msra.mxu0 0
    %3780 = vmatprep.subr.bf16.mxu0 0
    %3781 = vmatpush1.bf16.msra.mxu0 %v3764
    %3782 = vmatprep.subr.bf16.mxu0 0
    %3783 = vmatpush1.bf16.msra.mxu0 %v3763
    %3784 = vmatprep.subr.bf16.mxu0 0
    %3785 = vmatpush1.bf16.msra.mxu0 %v3762
    %3786 = vmatprep.subr.bf16.mxu0 0
    %3787 = vmatpush1.bf16.msra.mxu0 %v3761
    %3788 = vmatprep.subr.bf16.mxu0 0
    %3789 = vmatpush2.bf16.msra.mxu0 0
    %3790 = vmatprep.subr.bf16.mxu0 0
    %3791 = vmatpush2.bf16.msra.mxu0 0
    %3792 = vmatprep.subr.bf16.mxu0 0
    %3793 = vmatpush2.bf16.msra.mxu0 0
    %3794 = vmatprep.subr.bf16.mxu0 0
    %3795 = vmatpush2.bf16.msra.mxu0 0
    %3796 = vmatprep.subr.bf16.mxu0 0
    %3797 = vmatpush2.bf16.msra.mxu0 0
    %3798 = vmatprep.subr.bf16.mxu0 0
    %3799 = vmatpush2.bf16.msra.mxu0 0
    %3800 = vmatprep.subr.bf16.mxu0 0
    %3801 = vmatpush2.bf16.msra.mxu0 0
    %3802 = vmatprep.subr.bf16.mxu0 0
    %3803 = vmatpush2.bf16.msra.mxu0 0
    %3804 = vmatprep.mubr.bf16.mxu0 0
    %3805 = vmatmul.mubr.bf16.gmra.mxu0 %v3770
    %v3806 = vpop.f32.mrf.mxu0
    %v3807 = vadd.f32 0.0, %v3806
    %v3808 = vpop.f32.mrf.mxu0
    %v3809 = vpop.f32.mrf.mxu0
    %v3810 = vpop.f32.mrf.mxu0
    %3811 = vdwg.mxu0
    %v3812 = vadd.f32 %v3730, %v3807
    %v3813 = vld [vmem:[#allocation2 + $0x1c] sm:$0x4]
    %s3814 = scalar_lea.vmem %s7, 960
    %v3815 = vld [vmem:[%s3814] sm:$0xf]
    %v3816 = vld [vmem:[%s3814 + $0x4] sm:$0xf]
    %v3817 = vld [vmem:[%s3814 + $0x8] sm:$0xf]
    %v3818 = vld [vmem:[%s3814 + $0xc] sm:$0xf]
    %v3819 = vld [vmem:[%s3814 + $0x10] sm:$0xf]
    %v3820 = vld [vmem:[%s3814 + $0x14] sm:$0xf]
    %v3821 = vld [vmem:[%s3814 + $0x18] sm:$0xf]
    %v3822 = vld [vmem:[%s3814 + $0x1c] sm:$0xf]
    %v3824 = vunpack.c.l.b16 %v3813
    %v3825 = vpack.c.b16 %v3824, %v3824
    %v3826 = vrot.slane %v3825, 2
    %v3835 = vunpack.c.l.b16 %v3815
    %v3836 = vunpack.c.l.b16 %v3816
    %v3837 = vunpack.c.l.b16 %v3817
    %v3838 = vunpack.c.l.b16 %v3818
    %v3839 = vunpack.c.l.b16 %v3819
    %v3840 = vunpack.c.l.b16 %v3820
    %v3841 = vunpack.c.l.b16 %v3821
    %v3842 = vunpack.c.l.b16 %v3822
    %v3843 = vpack.c.b16 %v3836, %v3835
    %v3844 = vpack.c.b16 %v3838, %v3837
    %v3845 = vpack.c.b16 %v3840, %v3839
    %v3846 = vpack.c.b16 %v3842, %v3841
    %v3852 = vsel %vm1434, %v3826, 0
    %3854 = vmatprep.subr.bf16.mxu0 0
    %3855 = vmatpush1.bf16.msra.mxu0 0
    %3856 = vmatprep.subr.bf16.mxu0 0
    %3857 = vmatpush1.bf16.msra.mxu0 0
    %3858 = vmatprep.subr.bf16.mxu0 0
    %3859 = vmatpush1.bf16.msra.mxu0 0
    %3860 = vmatprep.subr.bf16.mxu0 0
    %3861 = vmatpush1.bf16.msra.mxu0 0
    %3862 = vmatprep.subr.bf16.mxu0 0
    %3863 = vmatpush1.bf16.msra.mxu0 %v3846
    %3864 = vmatprep.subr.bf16.mxu0 0
    %3865 = vmatpush1.bf16.msra.mxu0 %v3845
    %3866 = vmatprep.subr.bf16.mxu0 0
    %3867 = vmatpush1.bf16.msra.mxu0 %v3844
    %3868 = vmatprep.subr.bf16.mxu0 0
    %3869 = vmatpush1.bf16.msra.mxu0 %v3843
    %3870 = vmatprep.subr.bf16.mxu0 0
    %3871 = vmatpush2.bf16.msra.mxu0 0
    %3872 = vmatprep.subr.bf16.mxu0 0
    %3873 = vmatpush2.bf16.msra.mxu0 0
    %3874 = vmatprep.subr.bf16.mxu0 0
    %3875 = vmatpush2.bf16.msra.mxu0 0
    %3876 = vmatprep.subr.bf16.mxu0 0
    %3877 = vmatpush2.bf16.msra.mxu0 0
    %3878 = vmatprep.subr.bf16.mxu0 0
    %3879 = vmatpush2.bf16.msra.mxu0 0
    %3880 = vmatprep.subr.bf16.mxu0 0
    %3881 = vmatpush2.bf16.msra.mxu0 0
    %3882 = vmatprep.subr.bf16.mxu0 0
    %3883 = vmatpush2.bf16.msra.mxu0 0
    %3884 = vmatprep.subr.bf16.mxu0 0
    %3885 = vmatpush2.bf16.msra.mxu0 0
    %3886 = vmatprep.mubr.bf16.mxu0 0
    %3887 = vmatmul.mubr.bf16.gmra.mxu0 %v3852
    %v3888 = vpop.f32.mrf.mxu0
    %v3889 = vadd.f32 0.0, %v3888
    %v3890 = vpop.f32.mrf.mxu0
    %v3891 = vpop.f32.mrf.mxu0
    %v3892 = vpop.f32.mrf.mxu0
    %3893 = vdwg.mxu0
    %v3894 = vadd.f32 %v3812, %v3889
    %v3895 = vld [vmem:[#allocation2 + $0x1c] sm:$0x8]
    %s3896 = scalar_lea.vmem %s7, 992
    %v3897 = vld [vmem:[%s3896] sm:$0xf]
    %v3898 = vld [vmem:[%s3896 + $0x4] sm:$0xf]
    %v3899 = vld [vmem:[%s3896 + $0x8] sm:$0xf]
    %v3900 = vld [vmem:[%s3896 + $0xc] sm:$0xf]
    %v3901 = vld [vmem:[%s3896 + $0x10] sm:$0xf]
    %v3902 = vld [vmem:[%s3896 + $0x14] sm:$0xf]
    %v3903 = vld [vmem:[%s3896 + $0x18] sm:$0xf]
    %v3904 = vld [vmem:[%s3896 + $0x1c] sm:$0xf]
    %v3906 = vunpack.c.l.b16 %v3895
    %v3907 = vpack.c.b16 %v3906, %v3906
    %v3908 = vrot.slane %v3907, 3
    %v3917 = vunpack.c.l.b16 %v3897
    %v3918 = vunpack.c.l.b16 %v3898
    %v3919 = vunpack.c.l.b16 %v3899
    %v3920 = vunpack.c.l.b16 %v3900
    %v3921 = vunpack.c.l.b16 %v3901
    %v3922 = vunpack.c.l.b16 %v3902
    %v3923 = vunpack.c.l.b16 %v3903
    %v3924 = vunpack.c.l.b16 %v3904
    %v3925 = vpack.c.b16 %v3918, %v3917
    %v3926 = vpack.c.b16 %v3920, %v3919
    %v3927 = vpack.c.b16 %v3922, %v3921
    %v3928 = vpack.c.b16 %v3924, %v3923
    %v3934 = vsel %vm1434, %v3908, 0
    %3936 = vmatprep.subr.bf16.mxu0 0
    %3937 = vmatpush1.bf16.msra.mxu0 0
    %3938 = vmatprep.subr.bf16.mxu0 0
    %3939 = vmatpush1.bf16.msra.mxu0 0
    %3940 = vmatprep.subr.bf16.mxu0 0
    %3941 = vmatpush1.bf16.msra.mxu0 0
    %3942 = vmatprep.subr.bf16.mxu0 0
    %3943 = vmatpush1.bf16.msra.mxu0 0
    %3944 = vmatprep.subr.bf16.mxu0 0
    %3945 = vmatpush1.bf16.msra.mxu0 %v3928
    %3946 = vmatprep.subr.bf16.mxu0 0
    %3947 = vmatpush1.bf16.msra.mxu0 %v3927
    %3948 = vmatprep.subr.bf16.mxu0 0
    %3949 = vmatpush1.bf16.msra.mxu0 %v3926
    %3950 = vmatprep.subr.bf16.mxu0 0
    %3951 = vmatpush1.bf16.msra.mxu0 %v3925
    %3952 = vmatprep.subr.bf16.mxu0 0
    %3953 = vmatpush2.bf16.msra.mxu0 0
    %3954 = vmatprep.subr.bf16.mxu0 0
    %3955 = vmatpush2.bf16.msra.mxu0 0
    %3956 = vmatprep.subr.bf16.mxu0 0
    %3957 = vmatpush2.bf16.msra.mxu0 0
    %3958 = vmatprep.subr.bf16.mxu0 0
    %3959 = vmatpush2.bf16.msra.mxu0 0
    %3960 = vmatprep.subr.bf16.mxu0 0
    %3961 = vmatpush2.bf16.msra.mxu0 0
    %3962 = vmatprep.subr.bf16.mxu0 0
    %3963 = vmatpush2.bf16.msra.mxu0 0
    %3964 = vmatprep.subr.bf16.mxu0 0
    %3965 = vmatpush2.bf16.msra.mxu0 0
    %3966 = vmatprep.subr.bf16.mxu0 0
    %3967 = vmatpush2.bf16.msra.mxu0 0
    %3968 = vmatprep.mubr.bf16.mxu0 0
    %3969 = vmatmul.mubr.bf16.gmra.mxu0 %v3934
    %v3970 = vpop.f32.mrf.mxu0
    %v3971 = vadd.f32 0.0, %v3970
    %v3972 = vpop.f32.mrf.mxu0
    %v3973 = vpop.f32.mrf.mxu0
    %v3974 = vpop.f32.mrf.mxu0
    %3975 = vdwg.mxu0
    %v3976 = vadd.f32 %v3894, %v3971
    %v3977 = vld [vmem:[#allocation2 + $0x20] sm:$0x1]
    %s3978 = scalar_lea.vmem %s7, 1024
    %v3979 = vld [vmem:[%s3978] sm:$0xf]
    %v3980 = vld [vmem:[%s3978 + $0x4] sm:$0xf]
    %v3981 = vld [vmem:[%s3978 + $0x8] sm:$0xf]
    %v3982 = vld [vmem:[%s3978 + $0xc] sm:$0xf]
    %v3983 = vld [vmem:[%s3978 + $0x10] sm:$0xf]
    %v3984 = vld [vmem:[%s3978 + $0x14] sm:$0xf]
    %v3985 = vld [vmem:[%s3978 + $0x18] sm:$0xf]
    %v3986 = vld [vmem:[%s3978 + $0x1c] sm:$0xf]
    %v3995 = vunpack.c.l.b16 %v3979
    %v3996 = vunpack.c.l.b16 %v3980
    %v3997 = vunpack.c.l.b16 %v3981
    %v3998 = vunpack.c.l.b16 %v3982
    %v3999 = vunpack.c.l.b16 %v3983
    %v4000 = vunpack.c.l.b16 %v3984
    %v4001 = vunpack.c.l.b16 %v3985
    %v4002 = vunpack.c.l.b16 %v3986
    %v4003 = vpack.c.b16 %v3996, %v3995
    %v4004 = vpack.c.b16 %v3998, %v3997
    %v4005 = vpack.c.b16 %v4000, %v3999
    %v4006 = vpack.c.b16 %v4002, %v4001
    %v4012 = vsel %vm1434, %v3977, 0
    %4014 = vmatprep.subr.bf16.mxu0 0
    %4015 = vmatpush1.bf16.msra.mxu0 0
    %4016 = vmatprep.subr.bf16.mxu0 0
    %4017 = vmatpush1.bf16.msra.mxu0 0
    %4018 = vmatprep.subr.bf16.mxu0 0
    %4019 = vmatpush1.bf16.msra.mxu0 0
    %4020 = vmatprep.subr.bf16.mxu0 0
    %4021 = vmatpush1.bf16.msra.mxu0 0
    %4022 = vmatprep.subr.bf16.mxu0 0
    %4023 = vmatpush1.bf16.msra.mxu0 %v4006
    %4024 = vmatprep.subr.bf16.mxu0 0
    %4025 = vmatpush1.bf16.msra.mxu0 %v4005
    %4026 = vmatprep.subr.bf16.mxu0 0
    %4027 = vmatpush1.bf16.msra.mxu0 %v4004
    %4028 = vmatprep.subr.bf16.mxu0 0
    %4029 = vmatpush1.bf16.msra.mxu0 %v4003
    %4030 = vmatprep.subr.bf16.mxu0 0
    %4031 = vmatpush2.bf16.msra.mxu0 0
    %4032 = vmatprep.subr.bf16.mxu0 0
    %4033 = vmatpush2.bf16.msra.mxu0 0
    %4034 = vmatprep.subr.bf16.mxu0 0
    %4035 = vmatpush2.bf16.msra.mxu0 0
    %4036 = vmatprep.subr.bf16.mxu0 0
    %4037 = vmatpush2.bf16.msra.mxu0 0
    %4038 = vmatprep.subr.bf16.mxu0 0
    %4039 = vmatpush2.bf16.msra.mxu0 0
    %4040 = vmatprep.subr.bf16.mxu0 0
    %4041 = vmatpush2.bf16.msra.mxu0 0
    %4042 = vmatprep.subr.bf16.mxu0 0
    %4043 = vmatpush2.bf16.msra.mxu0 0
    %4044 = vmatprep.subr.bf16.mxu0 0
    %4045 = vmatpush2.bf16.msra.mxu0 0
    %4046 = vmatprep.mubr.bf16.mxu0 0
    %4047 = vmatmul.mubr.bf16.gmra.mxu0 %v4012
    %v4048 = vpop.f32.mrf.mxu0
    %v4049 = vadd.f32 0.0, %v4048
    %v4050 = vpop.f32.mrf.mxu0
    %v4051 = vpop.f32.mrf.mxu0
    %v4052 = vpop.f32.mrf.mxu0
    %4053 = vdwg.mxu0
    %v4054 = vadd.f32 %v3976, %v4049
    %v4055 = vld [vmem:[#allocation2 + $0x20] sm:$0x2]
    %s4056 = scalar_lea.vmem %s7, 1056
    %v4057 = vld [vmem:[%s4056] sm:$0xf]
    %v4058 = vld [vmem:[%s4056 + $0x4] sm:$0xf]
    %v4059 = vld [vmem:[%s4056 + $0x8] sm:$0xf]
    %v4060 = vld [vmem:[%s4056 + $0xc] sm:$0xf]
    %v4061 = vld [vmem:[%s4056 + $0x10] sm:$0xf]
    %v4062 = vld [vmem:[%s4056 + $0x14] sm:$0xf]
    %v4063 = vld [vmem:[%s4056 + $0x18] sm:$0xf]
    %v4064 = vld [vmem:[%s4056 + $0x1c] sm:$0xf]
    %v4066 = vunpack.c.l.b16 %v4055
    %v4067 = vpack.c.b16 %v4066, %v4066
    %v4068 = vrot.slane %v4067, 1
    %v4077 = vunpack.c.l.b16 %v4057
    %v4078 = vunpack.c.l.b16 %v4058
    %v4079 = vunpack.c.l.b16 %v4059
    %v4080 = vunpack.c.l.b16 %v4060
    %v4081 = vunpack.c.l.b16 %v4061
    %v4082 = vunpack.c.l.b16 %v4062
    %v4083 = vunpack.c.l.b16 %v4063
    %v4084 = vunpack.c.l.b16 %v4064
    %v4085 = vpack.c.b16 %v4078, %v4077
    %v4086 = vpack.c.b16 %v4080, %v4079
    %v4087 = vpack.c.b16 %v4082, %v4081
    %v4088 = vpack.c.b16 %v4084, %v4083
    %v4094 = vsel %vm1434, %v4068, 0
    %4096 = vmatprep.subr.bf16.mxu0 0
    %4097 = vmatpush1.bf16.msra.mxu0 0
    %4098 = vmatprep.subr.bf16.mxu0 0
    %4099 = vmatpush1.bf16.msra.mxu0 0
    %4100 = vmatprep.subr.bf16.mxu0 0
    %4101 = vmatpush1.bf16.msra.mxu0 0
    %4102 = vmatprep.subr.bf16.mxu0 0
    %4103 = vmatpush1.bf16.msra.mxu0 0
    %4104 = vmatprep.subr.bf16.mxu0 0
    %4105 = vmatpush1.bf16.msra.mxu0 %v4088
    %4106 = vmatprep.subr.bf16.mxu0 0
    %4107 = vmatpush1.bf16.msra.mxu0 %v4087
    %4108 = vmatprep.subr.bf16.mxu0 0
    %4109 = vmatpush1.bf16.msra.mxu0 %v4086
    %4110 = vmatprep.subr.bf16.mxu0 0
    %4111 = vmatpush1.bf16.msra.mxu0 %v4085
    %4112 = vmatprep.subr.bf16.mxu0 0
    %4113 = vmatpush2.bf16.msra.mxu0 0
    %4114 = vmatprep.subr.bf16.mxu0 0
    %4115 = vmatpush2.bf16.msra.mxu0 0
    %4116 = vmatprep.subr.bf16.mxu0 0
    %4117 = vmatpush2.bf16.msra.mxu0 0
    %4118 = vmatprep.subr.bf16.mxu0 0
    %4119 = vmatpush2.bf16.msra.mxu0 0
    %4120 = vmatprep.subr.bf16.mxu0 0
    %4121 = vmatpush2.bf16.msra.mxu0 0
    %4122 = vmatprep.subr.bf16.mxu0 0
    %4123 = vmatpush2.bf16.msra.mxu0 0
    %4124 = vmatprep.subr.bf16.mxu0 0
    %4125 = vmatpush2.bf16.msra.mxu0 0
    %4126 = vmatprep.subr.bf16.mxu0 0
    %4127 = vmatpush2.bf16.msra.mxu0 0
    %4128 = vmatprep.mubr.bf16.mxu0 0
    %4129 = vmatmul.mubr.bf16.gmra.mxu0 %v4094
    %v4130 = vpop.f32.mrf.mxu0
    %v4131 = vadd.f32 0.0, %v4130
    %v4132 = vpop.f32.mrf.mxu0
    %v4133 = vpop.f32.mrf.mxu0
    %v4134 = vpop.f32.mrf.mxu0
    %4135 = vdwg.mxu0
    %v4136 = vadd.f32 %v4054, %v4131
    %v4137 = vld [vmem:[#allocation2 + $0x20] sm:$0x4]
    %s4138 = scalar_lea.vmem %s7, 1088
    %v4139 = vld [vmem:[%s4138] sm:$0xf]
    %v4140 = vld [vmem:[%s4138 + $0x4] sm:$0xf]
    %v4141 = vld [vmem:[%s4138 + $0x8] sm:$0xf]
    %v4142 = vld [vmem:[%s4138 + $0xc] sm:$0xf]
    %v4143 = vld [vmem:[%s4138 + $0x10] sm:$0xf]
    %v4144 = vld [vmem:[%s4138 + $0x14] sm:$0xf]
    %v4145 = vld [vmem:[%s4138 + $0x18] sm:$0xf]
    %v4146 = vld [vmem:[%s4138 + $0x1c] sm:$0xf]
    %v4148 = vunpack.c.l.b16 %v4137
    %v4149 = vpack.c.b16 %v4148, %v4148
    %v4150 = vrot.slane %v4149, 2
    %v4159 = vunpack.c.l.b16 %v4139
    %v4160 = vunpack.c.l.b16 %v4140
    %v4161 = vunpack.c.l.b16 %v4141
    %v4162 = vunpack.c.l.b16 %v4142
    %v4163 = vunpack.c.l.b16 %v4143
    %v4164 = vunpack.c.l.b16 %v4144
    %v4165 = vunpack.c.l.b16 %v4145
    %v4166 = vunpack.c.l.b16 %v4146
    %v4167 = vpack.c.b16 %v4160, %v4159
    %v4168 = vpack.c.b16 %v4162, %v4161
    %v4169 = vpack.c.b16 %v4164, %v4163
    %v4170 = vpack.c.b16 %v4166, %v4165
    %v4176 = vsel %vm1434, %v4150, 0
    %4178 = vmatprep.subr.bf16.mxu0 0
    %4179 = vmatpush1.bf16.msra.mxu0 0
    %4180 = vmatprep.subr.bf16.mxu0 0
    %4181 = vmatpush1.bf16.msra.mxu0 0
    %4182 = vmatprep.subr.bf16.mxu0 0
    %4183 = vmatpush1.bf16.msra.mxu0 0
    %4184 = vmatprep.subr.bf16.mxu0 0
    %4185 = vmatpush1.bf16.msra.mxu0 0
    %4186 = vmatprep.subr.bf16.mxu0 0
    %4187 = vmatpush1.bf16.msra.mxu0 %v4170
    %4188 = vmatprep.subr.bf16.mxu0 0
    %4189 = vmatpush1.bf16.msra.mxu0 %v4169
    %4190 = vmatprep.subr.bf16.mxu0 0
    %4191 = vmatpush1.bf16.msra.mxu0 %v4168
    %4192 = vmatprep.subr.bf16.mxu0 0
    %4193 = vmatpush1.bf16.msra.mxu0 %v4167
    %4194 = vmatprep.subr.bf16.mxu0 0
    %4195 = vmatpush2.bf16.msra.mxu0 0
    %4196 = vmatprep.subr.bf16.mxu0 0
    %4197 = vmatpush2.bf16.msra.mxu0 0
    %4198 = vmatprep.subr.bf16.mxu0 0
    %4199 = vmatpush2.bf16.msra.mxu0 0
    %4200 = vmatprep.subr.bf16.mxu0 0
    %4201 = vmatpush2.bf16.msra.mxu0 0
    %4202 = vmatprep.subr.bf16.mxu0 0
    %4203 = vmatpush2.bf16.msra.mxu0 0
    %4204 = vmatprep.subr.bf16.mxu0 0
    %4205 = vmatpush2.bf16.msra.mxu0 0
    %4206 = vmatprep.subr.bf16.mxu0 0
    %4207 = vmatpush2.bf16.msra.mxu0 0
    %4208 = vmatprep.subr.bf16.mxu0 0
    %4209 = vmatpush2.bf16.msra.mxu0 0
    %4210 = vmatprep.mubr.bf16.mxu0 0
    %4211 = vmatmul.mubr.bf16.gmra.mxu0 %v4176
    %v4212 = vpop.f32.mrf.mxu0
    %v4213 = vadd.f32 0.0, %v4212
    %v4214 = vpop.f32.mrf.mxu0
    %v4215 = vpop.f32.mrf.mxu0
    %v4216 = vpop.f32.mrf.mxu0
    %4217 = vdwg.mxu0
    %v4218 = vadd.f32 %v4136, %v4213
    %v4219 = vld [vmem:[#allocation2 + $0x20] sm:$0x8]
    %s4220 = scalar_lea.vmem %s7, 1120
    %v4221 = vld [vmem:[%s4220] sm:$0xf]
    %v4222 = vld [vmem:[%s4220 + $0x4] sm:$0xf]
    %v4223 = vld [vmem:[%s4220 + $0x8] sm:$0xf]
    %v4224 = vld [vmem:[%s4220 + $0xc] sm:$0xf]
    %v4225 = vld [vmem:[%s4220 + $0x10] sm:$0xf]
    %v4226 = vld [vmem:[%s4220 + $0x14] sm:$0xf]
    %v4227 = vld [vmem:[%s4220 + $0x18] sm:$0xf]
    %v4228 = vld [vmem:[%s4220 + $0x1c] sm:$0xf]
    %v4230 = vunpack.c.l.b16 %v4219
    %v4231 = vpack.c.b16 %v4230, %v4230
    %v4232 = vrot.slane %v4231, 3
    %v4241 = vunpack.c.l.b16 %v4221
    %v4242 = vunpack.c.l.b16 %v4222
    %v4243 = vunpack.c.l.b16 %v4223
    %v4244 = vunpack.c.l.b16 %v4224
    %v4245 = vunpack.c.l.b16 %v4225
    %v4246 = vunpack.c.l.b16 %v4226
    %v4247 = vunpack.c.l.b16 %v4227
    %v4248 = vunpack.c.l.b16 %v4228
    %v4249 = vpack.c.b16 %v4242, %v4241
    %v4250 = vpack.c.b16 %v4244, %v4243
    %v4251 = vpack.c.b16 %v4246, %v4245
    %v4252 = vpack.c.b16 %v4248, %v4247
    %v4258 = vsel %vm1434, %v4232, 0
    %4260 = vmatprep.subr.bf16.mxu0 0
    %4261 = vmatpush1.bf16.msra.mxu0 0
    %4262 = vmatprep.subr.bf16.mxu0 0
    %4263 = vmatpush1.bf16.msra.mxu0 0
    %4264 = vmatprep.subr.bf16.mxu0 0
    %4265 = vmatpush1.bf16.msra.mxu0 0
    %4266 = vmatprep.subr.bf16.mxu0 0
    %4267 = vmatpush1.bf16.msra.mxu0 0
    %4268 = vmatprep.subr.bf16.mxu0 0
    %4269 = vmatpush1.bf16.msra.mxu0 %v4252
    %4270 = vmatprep.subr.bf16.mxu0 0
    %4271 = vmatpush1.bf16.msra.mxu0 %v4251
    %4272 = vmatprep.subr.bf16.mxu0 0
    %4273 = vmatpush1.bf16.msra.mxu0 %v4250
    %4274 = vmatprep.subr.bf16.mxu0 0
    %4275 = vmatpush1.bf16.msra.mxu0 %v4249
    %4276 = vmatprep.subr.bf16.mxu0 0
    %4277 = vmatpush2.bf16.msra.mxu0 0
    %4278 = vmatprep.subr.bf16.mxu0 0
    %4279 = vmatpush2.bf16.msra.mxu0 0
    %4280 = vmatprep.subr.bf16.mxu0 0
    %4281 = vmatpush2.bf16.msra.mxu0 0
    %4282 = vmatprep.subr.bf16.mxu0 0
    %4283 = vmatpush2.bf16.msra.mxu0 0
    %4284 = vmatprep.subr.bf16.mxu0 0
    %4285 = vmatpush2.bf16.msra.mxu0 0
    %4286 = vmatprep.subr.bf16.mxu0 0
    %4287 = vmatpush2.bf16.msra.mxu0 0
    %4288 = vmatprep.subr.bf16.mxu0 0
    %4289 = vmatpush2.bf16.msra.mxu0 0
    %4290 = vmatprep.subr.bf16.mxu0 0
    %4291 = vmatpush2.bf16.msra.mxu0 0
    %4292 = vmatprep.mubr.bf16.mxu0 0
    %4293 = vmatmul.mubr.bf16.gmra.mxu0 %v4258
    %v4294 = vpop.f32.mrf.mxu0
    %v4295 = vadd.f32 0.0, %v4294
    %v4296 = vpop.f32.mrf.mxu0
    %v4297 = vpop.f32.mrf.mxu0
    %v4298 = vpop.f32.mrf.mxu0
    %4299 = vdwg.mxu0
    %v4300 = vadd.f32 %v4218, %v4295
    %v4301 = vld [vmem:[#allocation2 + $0x24] sm:$0x1]
    %s4302 = scalar_lea.vmem %s7, 1152
    %v4303 = vld [vmem:[%s4302] sm:$0xf]
    %v4304 = vld [vmem:[%s4302 + $0x4] sm:$0xf]
    %v4305 = vld [vmem:[%s4302 + $0x8] sm:$0xf]
    %v4306 = vld [vmem:[%s4302 + $0xc] sm:$0xf]
    %v4307 = vld [vmem:[%s4302 + $0x10] sm:$0xf]
    %v4308 = vld [vmem:[%s4302 + $0x14] sm:$0xf]
    %v4309 = vld [vmem:[%s4302 + $0x18] sm:$0xf]
    %v4310 = vld [vmem:[%s4302 + $0x1c] sm:$0xf]
    %v4319 = vunpack.c.l.b16 %v4303
    %v4320 = vunpack.c.l.b16 %v4304
    %v4321 = vunpack.c.l.b16 %v4305
    %v4322 = vunpack.c.l.b16 %v4306
    %v4323 = vunpack.c.l.b16 %v4307
    %v4324 = vunpack.c.l.b16 %v4308
    %v4325 = vunpack.c.l.b16 %v4309
    %v4326 = vunpack.c.l.b16 %v4310
    %v4327 = vpack.c.b16 %v4320, %v4319
    %v4328 = vpack.c.b16 %v4322, %v4321
    %v4329 = vpack.c.b16 %v4324, %v4323
    %v4330 = vpack.c.b16 %v4326, %v4325
    %v4336 = vsel %vm1434, %v4301, 0
    %4338 = vmatprep.subr.bf16.mxu0 0
    %4339 = vmatpush1.bf16.msra.mxu0 0
    %4340 = vmatprep.subr.bf16.mxu0 0
    %4341 = vmatpush1.bf16.msra.mxu0 0
    %4342 = vmatprep.subr.bf16.mxu0 0
    %4343 = vmatpush1.bf16.msra.mxu0 0
    %4344 = vmatprep.subr.bf16.mxu0 0
    %4345 = vmatpush1.bf16.msra.mxu0 0
    %4346 = vmatprep.subr.bf16.mxu0 0
    %4347 = vmatpush1.bf16.msra.mxu0 %v4330
    %4348 = vmatprep.subr.bf16.mxu0 0
    %4349 = vmatpush1.bf16.msra.mxu0 %v4329
    %4350 = vmatprep.subr.bf16.mxu0 0
    %4351 = vmatpush1.bf16.msra.mxu0 %v4328
    %4352 = vmatprep.subr.bf16.mxu0 0
    %4353 = vmatpush1.bf16.msra.mxu0 %v4327
    %4354 = vmatprep.subr.bf16.mxu0 0
    %4355 = vmatpush2.bf16.msra.mxu0 0
    %4356 = vmatprep.subr.bf16.mxu0 0
    %4357 = vmatpush2.bf16.msra.mxu0 0
    %4358 = vmatprep.subr.bf16.mxu0 0
    %4359 = vmatpush2.bf16.msra.mxu0 0
    %4360 = vmatprep.subr.bf16.mxu0 0
    %4361 = vmatpush2.bf16.msra.mxu0 0
    %4362 = vmatprep.subr.bf16.mxu0 0
    %4363 = vmatpush2.bf16.msra.mxu0 0
    %4364 = vmatprep.subr.bf16.mxu0 0
    %4365 = vmatpush2.bf16.msra.mxu0 0
    %4366 = vmatprep.subr.bf16.mxu0 0
    %4367 = vmatpush2.bf16.msra.mxu0 0
    %4368 = vmatprep.subr.bf16.mxu0 0
    %4369 = vmatpush2.bf16.msra.mxu0 0
    %4370 = vmatprep.mubr.bf16.mxu0 0
    %4371 = vmatmul.mubr.bf16.gmra.mxu0 %v4336
    %v4372 = vpop.f32.mrf.mxu0
    %v4373 = vadd.f32 0.0, %v4372
    %v4374 = vpop.f32.mrf.mxu0
    %v4375 = vpop.f32.mrf.mxu0
    %v4376 = vpop.f32.mrf.mxu0
    %4377 = vdwg.mxu0
    %v4378 = vadd.f32 %v4300, %v4373
    %v4379 = vld [vmem:[#allocation2 + $0x24] sm:$0x2]
    %s4380 = scalar_lea.vmem %s7, 1184
    %v4381 = vld [vmem:[%s4380] sm:$0xf]
    %v4382 = vld [vmem:[%s4380 + $0x4] sm:$0xf]
    %v4383 = vld [vmem:[%s4380 + $0x8] sm:$0xf]
    %v4384 = vld [vmem:[%s4380 + $0xc] sm:$0xf]
    %v4385 = vld [vmem:[%s4380 + $0x10] sm:$0xf]
    %v4386 = vld [vmem:[%s4380 + $0x14] sm:$0xf]
    %v4387 = vld [vmem:[%s4380 + $0x18] sm:$0xf]
    %v4388 = vld [vmem:[%s4380 + $0x1c] sm:$0xf]
    %v4390 = vunpack.c.l.b16 %v4379
    %v4391 = vpack.c.b16 %v4390, %v4390
    %v4392 = vrot.slane %v4391, 1
    %v4401 = vunpack.c.l.b16 %v4381
    %v4402 = vunpack.c.l.b16 %v4382
    %v4403 = vunpack.c.l.b16 %v4383
    %v4404 = vunpack.c.l.b16 %v4384
    %v4405 = vunpack.c.l.b16 %v4385
    %v4406 = vunpack.c.l.b16 %v4386
    %v4407 = vunpack.c.l.b16 %v4387
    %v4408 = vunpack.c.l.b16 %v4388
    %v4409 = vpack.c.b16 %v4402, %v4401
    %v4410 = vpack.c.b16 %v4404, %v4403
    %v4411 = vpack.c.b16 %v4406, %v4405
    %v4412 = vpack.c.b16 %v4408, %v4407
    %v4418 = vsel %vm1434, %v4392, 0
    %4420 = vmatprep.subr.bf16.mxu0 0
    %4421 = vmatpush1.bf16.msra.mxu0 0
    %4422 = vmatprep.subr.bf16.mxu0 0
    %4423 = vmatpush1.bf16.msra.mxu0 0
    %4424 = vmatprep.subr.bf16.mxu0 0
    %4425 = vmatpush1.bf16.msra.mxu0 0
    %4426 = vmatprep.subr.bf16.mxu0 0
    %4427 = vmatpush1.bf16.msra.mxu0 0
    %4428 = vmatprep.subr.bf16.mxu0 0
    %4429 = vmatpush1.bf16.msra.mxu0 %v4412
    %4430 = vmatprep.subr.bf16.mxu0 0
    %4431 = vmatpush1.bf16.msra.mxu0 %v4411
    %4432 = vmatprep.subr.bf16.mxu0 0
    %4433 = vmatpush1.bf16.msra.mxu0 %v4410
    %4434 = vmatprep.subr.bf16.mxu0 0
    %4435 = vmatpush1.bf16.msra.mxu0 %v4409
    %4436 = vmatprep.subr.bf16.mxu0 0
    %4437 = vmatpush2.bf16.msra.mxu0 0
    %4438 = vmatprep.subr.bf16.mxu0 0
    %4439 = vmatpush2.bf16.msra.mxu0 0
    %4440 = vmatprep.subr.bf16.mxu0 0
    %4441 = vmatpush2.bf16.msra.mxu0 0
    %4442 = vmatprep.subr.bf16.mxu0 0
    %4443 = vmatpush2.bf16.msra.mxu0 0
    %4444 = vmatprep.subr.bf16.mxu0 0
    %4445 = vmatpush2.bf16.msra.mxu0 0
    %4446 = vmatprep.subr.bf16.mxu0 0
    %4447 = vmatpush2.bf16.msra.mxu0 0
    %4448 = vmatprep.subr.bf16.mxu0 0
    %4449 = vmatpush2.bf16.msra.mxu0 0
    %4450 = vmatprep.subr.bf16.mxu0 0
    %4451 = vmatpush2.bf16.msra.mxu0 0
    %4452 = vmatprep.mubr.bf16.mxu0 0
    %4453 = vmatmul.mubr.bf16.gmra.mxu0 %v4418
    %v4454 = vpop.f32.mrf.mxu0
    %v4455 = vadd.f32 0.0, %v4454
    %v4456 = vpop.f32.mrf.mxu0
    %v4457 = vpop.f32.mrf.mxu0
    %v4458 = vpop.f32.mrf.mxu0
    %4459 = vdwg.mxu0
    %v4460 = vadd.f32 %v4378, %v4455
    %v4461 = vld [vmem:[#allocation2 + $0x24] sm:$0x4]
    %s4462 = scalar_lea.vmem %s7, 1216
    %v4463 = vld [vmem:[%s4462] sm:$0xf]
    %v4464 = vld [vmem:[%s4462 + $0x4] sm:$0xf]
    %v4465 = vld [vmem:[%s4462 + $0x8] sm:$0xf]
    %v4466 = vld [vmem:[%s4462 + $0xc] sm:$0xf]
    %v4467 = vld [vmem:[%s4462 + $0x10] sm:$0xf]
    %v4468 = vld [vmem:[%s4462 + $0x14] sm:$0xf]
    %v4469 = vld [vmem:[%s4462 + $0x18] sm:$0xf]
    %v4470 = vld [vmem:[%s4462 + $0x1c] sm:$0xf]
    %v4472 = vunpack.c.l.b16 %v4461
    %v4473 = vpack.c.b16 %v4472, %v4472
    %v4474 = vrot.slane %v4473, 2
    %v4483 = vunpack.c.l.b16 %v4463
    %v4484 = vunpack.c.l.b16 %v4464
    %v4485 = vunpack.c.l.b16 %v4465
    %v4486 = vunpack.c.l.b16 %v4466
    %v4487 = vunpack.c.l.b16 %v4467
    %v4488 = vunpack.c.l.b16 %v4468
    %v4489 = vunpack.c.l.b16 %v4469
    %v4490 = vunpack.c.l.b16 %v4470
    %v4491 = vpack.c.b16 %v4484, %v4483
    %v4492 = vpack.c.b16 %v4486, %v4485
    %v4493 = vpack.c.b16 %v4488, %v4487
    %v4494 = vpack.c.b16 %v4490, %v4489
    %v4500 = vsel %vm1434, %v4474, 0
    %4502 = vmatprep.subr.bf16.mxu0 0
    %4503 = vmatpush1.bf16.msra.mxu0 0
    %4504 = vmatprep.subr.bf16.mxu0 0
    %4505 = vmatpush1.bf16.msra.mxu0 0
    %4506 = vmatprep.subr.bf16.mxu0 0
    %4507 = vmatpush1.bf16.msra.mxu0 0
    %4508 = vmatprep.subr.bf16.mxu0 0
    %4509 = vmatpush1.bf16.msra.mxu0 0
    %4510 = vmatprep.subr.bf16.mxu0 0
    %4511 = vmatpush1.bf16.msra.mxu0 %v4494
    %4512 = vmatprep.subr.bf16.mxu0 0
    %4513 = vmatpush1.bf16.msra.mxu0 %v4493
    %4514 = vmatprep.subr.bf16.mxu0 0
    %4515 = vmatpush1.bf16.msra.mxu0 %v4492
    %4516 = vmatprep.subr.bf16.mxu0 0
    %4517 = vmatpush1.bf16.msra.mxu0 %v4491
    %4518 = vmatprep.subr.bf16.mxu0 0
    %4519 = vmatpush2.bf16.msra.mxu0 0
    %4520 = vmatprep.subr.bf16.mxu0 0
    %4521 = vmatpush2.bf16.msra.mxu0 0
    %4522 = vmatprep.subr.bf16.mxu0 0
    %4523 = vmatpush2.bf16.msra.mxu0 0
    %4524 = vmatprep.subr.bf16.mxu0 0
    %4525 = vmatpush2.bf16.msra.mxu0 0
    %4526 = vmatprep.subr.bf16.mxu0 0
    %4527 = vmatpush2.bf16.msra.mxu0 0
    %4528 = vmatprep.subr.bf16.mxu0 0
    %4529 = vmatpush2.bf16.msra.mxu0 0
    %4530 = vmatprep.subr.bf16.mxu0 0
    %4531 = vmatpush2.bf16.msra.mxu0 0
    %4532 = vmatprep.subr.bf16.mxu0 0
    %4533 = vmatpush2.bf16.msra.mxu0 0
    %4534 = vmatprep.mubr.bf16.mxu0 0
    %4535 = vmatmul.mubr.bf16.gmra.mxu0 %v4500
    %v4536 = vpop.f32.mrf.mxu0
    %v4537 = vadd.f32 0.0, %v4536
    %v4538 = vpop.f32.mrf.mxu0
    %v4539 = vpop.f32.mrf.mxu0
    %v4540 = vpop.f32.mrf.mxu0
    %4541 = vdwg.mxu0
    %v4542 = vadd.f32 %v4460, %v4537
    %v4543 = vld [vmem:[#allocation2 + $0x24] sm:$0x8]
    %s4544 = scalar_lea.vmem %s7, 1248
    %v4545 = vld [vmem:[%s4544] sm:$0xf]
    %v4546 = vld [vmem:[%s4544 + $0x4] sm:$0xf]
    %v4547 = vld [vmem:[%s4544 + $0x8] sm:$0xf]
    %v4548 = vld [vmem:[%s4544 + $0xc] sm:$0xf]
    %v4549 = vld [vmem:[%s4544 + $0x10] sm:$0xf]
    %v4550 = vld [vmem:[%s4544 + $0x14] sm:$0xf]
    %v4551 = vld [vmem:[%s4544 + $0x18] sm:$0xf]
    %v4552 = vld [vmem:[%s4544 + $0x1c] sm:$0xf]
    %v4554 = vunpack.c.l.b16 %v4543
    %v4555 = vpack.c.b16 %v4554, %v4554
    %v4556 = vrot.slane %v4555, 3
    %v4565 = vunpack.c.l.b16 %v4545
    %v4566 = vunpack.c.l.b16 %v4546
    %v4567 = vunpack.c.l.b16 %v4547
    %v4568 = vunpack.c.l.b16 %v4548
    %v4569 = vunpack.c.l.b16 %v4549
    %v4570 = vunpack.c.l.b16 %v4550
    %v4571 = vunpack.c.l.b16 %v4551
    %v4572 = vunpack.c.l.b16 %v4552
    %v4573 = vpack.c.b16 %v4566, %v4565
    %v4574 = vpack.c.b16 %v4568, %v4567
    %v4575 = vpack.c.b16 %v4570, %v4569
    %v4576 = vpack.c.b16 %v4572, %v4571
    %v4582 = vsel %vm1434, %v4556, 0
    %4584 = vmatprep.subr.bf16.mxu0 0
    %4585 = vmatpush1.bf16.msra.mxu0 0
    %4586 = vmatprep.subr.bf16.mxu0 0
    %4587 = vmatpush1.bf16.msra.mxu0 0
    %4588 = vmatprep.subr.bf16.mxu0 0
    %4589 = vmatpush1.bf16.msra.mxu0 0
    %4590 = vmatprep.subr.bf16.mxu0 0
    %4591 = vmatpush1.bf16.msra.mxu0 0
    %4592 = vmatprep.subr.bf16.mxu0 0
    %4593 = vmatpush1.bf16.msra.mxu0 %v4576
    %4594 = vmatprep.subr.bf16.mxu0 0
    %4595 = vmatpush1.bf16.msra.mxu0 %v4575
    %4596 = vmatprep.subr.bf16.mxu0 0
    %4597 = vmatpush1.bf16.msra.mxu0 %v4574
    %4598 = vmatprep.subr.bf16.mxu0 0
    %4599 = vmatpush1.bf16.msra.mxu0 %v4573
    %4600 = vmatprep.subr.bf16.mxu0 0
    %4601 = vmatpush2.bf16.msra.mxu0 0
    %4602 = vmatprep.subr.bf16.mxu0 0
    %4603 = vmatpush2.bf16.msra.mxu0 0
    %4604 = vmatprep.subr.bf16.mxu0 0
    %4605 = vmatpush2.bf16.msra.mxu0 0
    %4606 = vmatprep.subr.bf16.mxu0 0
    %4607 = vmatpush2.bf16.msra.mxu0 0
    %4608 = vmatprep.subr.bf16.mxu0 0
    %4609 = vmatpush2.bf16.msra.mxu0 0
    %4610 = vmatprep.subr.bf16.mxu0 0
    %4611 = vmatpush2.bf16.msra.mxu0 0
    %4612 = vmatprep.subr.bf16.mxu0 0
    %4613 = vmatpush2.bf16.msra.mxu0 0
    %4614 = vmatprep.subr.bf16.mxu0 0
    %4615 = vmatpush2.bf16.msra.mxu0 0
    %4616 = vmatprep.mubr.bf16.mxu0 0
    %4617 = vmatmul.mubr.bf16.gmra.mxu0 %v4582
    %v4618 = vpop.f32.mrf.mxu0
    %v4619 = vadd.f32 0.0, %v4618
    %v4620 = vpop.f32.mrf.mxu0
    %v4621 = vpop.f32.mrf.mxu0
    %v4622 = vpop.f32.mrf.mxu0
    %4623 = vdwg.mxu0
    %v4624 = vadd.f32 %v4542, %v4619
    %v4625 = vld [vmem:[#allocation2 + $0x28] sm:$0x1]
    %s4626 = scalar_lea.vmem %s7, 1280
    %v4627 = vld [vmem:[%s4626] sm:$0xf]
    %v4628 = vld [vmem:[%s4626 + $0x4] sm:$0xf]
    %v4629 = vld [vmem:[%s4626 + $0x8] sm:$0xf]
    %v4630 = vld [vmem:[%s4626 + $0xc] sm:$0xf]
    %v4631 = vld [vmem:[%s4626 + $0x10] sm:$0xf]
    %v4632 = vld [vmem:[%s4626 + $0x14] sm:$0xf]
    %v4633 = vld [vmem:[%s4626 + $0x18] sm:$0xf]
    %v4634 = vld [vmem:[%s4626 + $0x1c] sm:$0xf]
    %v4643 = vunpack.c.l.b16 %v4627
    %v4644 = vunpack.c.l.b16 %v4628
    %v4645 = vunpack.c.l.b16 %v4629
    %v4646 = vunpack.c.l.b16 %v4630
    %v4647 = vunpack.c.l.b16 %v4631
    %v4648 = vunpack.c.l.b16 %v4632
    %v4649 = vunpack.c.l.b16 %v4633
    %v4650 = vunpack.c.l.b16 %v4634
    %v4651 = vpack.c.b16 %v4644, %v4643
    %v4652 = vpack.c.b16 %v4646, %v4645
    %v4653 = vpack.c.b16 %v4648, %v4647
    %v4654 = vpack.c.b16 %v4650, %v4649
    %v4660 = vsel %vm1434, %v4625, 0
    %4662 = vmatprep.subr.bf16.mxu0 0
    %4663 = vmatpush1.bf16.msra.mxu0 0
    %4664 = vmatprep.subr.bf16.mxu0 0
    %4665 = vmatpush1.bf16.msra.mxu0 0
    %4666 = vmatprep.subr.bf16.mxu0 0
    %4667 = vmatpush1.bf16.msra.mxu0 0
    %4668 = vmatprep.subr.bf16.mxu0 0
    %4669 = vmatpush1.bf16.msra.mxu0 0
    %4670 = vmatprep.subr.bf16.mxu0 0
    %4671 = vmatpush1.bf16.msra.mxu0 %v4654
    %4672 = vmatprep.subr.bf16.mxu0 0
    %4673 = vmatpush1.bf16.msra.mxu0 %v4653
    %4674 = vmatprep.subr.bf16.mxu0 0
    %4675 = vmatpush1.bf16.msra.mxu0 %v4652
    %4676 = vmatprep.subr.bf16.mxu0 0
    %4677 = vmatpush1.bf16.msra.mxu0 %v4651
    %4678 = vmatprep.subr.bf16.mxu0 0
    %4679 = vmatpush2.bf16.msra.mxu0 0
    %4680 = vmatprep.subr.bf16.mxu0 0
    %4681 = vmatpush2.bf16.msra.mxu0 0
    %4682 = vmatprep.subr.bf16.mxu0 0
    %4683 = vmatpush2.bf16.msra.mxu0 0
    %4684 = vmatprep.subr.bf16.mxu0 0
    %4685 = vmatpush2.bf16.msra.mxu0 0
    %4686 = vmatprep.subr.bf16.mxu0 0
    %4687 = vmatpush2.bf16.msra.mxu0 0
    %4688 = vmatprep.subr.bf16.mxu0 0
    %4689 = vmatpush2.bf16.msra.mxu0 0
    %4690 = vmatprep.subr.bf16.mxu0 0
    %4691 = vmatpush2.bf16.msra.mxu0 0
    %4692 = vmatprep.subr.bf16.mxu0 0
    %4693 = vmatpush2.bf16.msra.mxu0 0
    %4694 = vmatprep.mubr.bf16.mxu0 0
    %4695 = vmatmul.mubr.bf16.gmra.mxu0 %v4660
    %v4696 = vpop.f32.mrf.mxu0
    %v4697 = vadd.f32 0.0, %v4696
    %v4698 = vpop.f32.mrf.mxu0
    %v4699 = vpop.f32.mrf.mxu0
    %v4700 = vpop.f32.mrf.mxu0
    %4701 = vdwg.mxu0
    %v4702 = vadd.f32 %v4624, %v4697
    %v4703 = vld [vmem:[#allocation2 + $0x28] sm:$0x2]
    %s4704 = scalar_lea.vmem %s7, 1312
    %v4705 = vld [vmem:[%s4704] sm:$0xf]
    %v4706 = vld [vmem:[%s4704 + $0x4] sm:$0xf]
    %v4707 = vld [vmem:[%s4704 + $0x8] sm:$0xf]
    %v4708 = vld [vmem:[%s4704 + $0xc] sm:$0xf]
    %v4709 = vld [vmem:[%s4704 + $0x10] sm:$0xf]
    %v4710 = vld [vmem:[%s4704 + $0x14] sm:$0xf]
    %v4711 = vld [vmem:[%s4704 + $0x18] sm:$0xf]
    %v4712 = vld [vmem:[%s4704 + $0x1c] sm:$0xf]
    %v4714 = vunpack.c.l.b16 %v4703
    %v4715 = vpack.c.b16 %v4714, %v4714
    %v4716 = vrot.slane %v4715, 1
    %v4725 = vunpack.c.l.b16 %v4705
    %v4726 = vunpack.c.l.b16 %v4706
    %v4727 = vunpack.c.l.b16 %v4707
    %v4728 = vunpack.c.l.b16 %v4708
    %v4729 = vunpack.c.l.b16 %v4709
    %v4730 = vunpack.c.l.b16 %v4710
    %v4731 = vunpack.c.l.b16 %v4711
    %v4732 = vunpack.c.l.b16 %v4712
    %v4733 = vpack.c.b16 %v4726, %v4725
    %v4734 = vpack.c.b16 %v4728, %v4727
    %v4735 = vpack.c.b16 %v4730, %v4729
    %v4736 = vpack.c.b16 %v4732, %v4731
    %v4742 = vsel %vm1434, %v4716, 0
    %4744 = vmatprep.subr.bf16.mxu0 0
    %4745 = vmatpush1.bf16.msra.mxu0 0
    %4746 = vmatprep.subr.bf16.mxu0 0
    %4747 = vmatpush1.bf16.msra.mxu0 0
    %4748 = vmatprep.subr.bf16.mxu0 0
    %4749 = vmatpush1.bf16.msra.mxu0 0
    %4750 = vmatprep.subr.bf16.mxu0 0
    %4751 = vmatpush1.bf16.msra.mxu0 0
    %4752 = vmatprep.subr.bf16.mxu0 0
    %4753 = vmatpush1.bf16.msra.mxu0 %v4736
    %4754 = vmatprep.subr.bf16.mxu0 0
    %4755 = vmatpush1.bf16.msra.mxu0 %v4735
    %4756 = vmatprep.subr.bf16.mxu0 0
    %4757 = vmatpush1.bf16.msra.mxu0 %v4734
    %4758 = vmatprep.subr.bf16.mxu0 0
    %4759 = vmatpush1.bf16.msra.mxu0 %v4733
    %4760 = vmatprep.subr.bf16.mxu0 0
    %4761 = vmatpush2.bf16.msra.mxu0 0
    %4762 = vmatprep.subr.bf16.mxu0 0
    %4763 = vmatpush2.bf16.msra.mxu0 0
    %4764 = vmatprep.subr.bf16.mxu0 0
    %4765 = vmatpush2.bf16.msra.mxu0 0
    %4766 = vmatprep.subr.bf16.mxu0 0
    %4767 = vmatpush2.bf16.msra.mxu0 0
    %4768 = vmatprep.subr.bf16.mxu0 0
    %4769 = vmatpush2.bf16.msra.mxu0 0
    %4770 = vmatprep.subr.bf16.mxu0 0
    %4771 = vmatpush2.bf16.msra.mxu0 0
    %4772 = vmatprep.subr.bf16.mxu0 0
    %4773 = vmatpush2.bf16.msra.mxu0 0
    %4774 = vmatprep.subr.bf16.mxu0 0
    %4775 = vmatpush2.bf16.msra.mxu0 0
    %4776 = vmatprep.mubr.bf16.mxu0 0
    %4777 = vmatmul.mubr.bf16.gmra.mxu0 %v4742
    %v4778 = vpop.f32.mrf.mxu0
    %v4779 = vadd.f32 0.0, %v4778
    %v4780 = vpop.f32.mrf.mxu0
    %v4781 = vpop.f32.mrf.mxu0
    %v4782 = vpop.f32.mrf.mxu0
    %4783 = vdwg.mxu0
    %v4784 = vadd.f32 %v4702, %v4779
    %v4785 = vld [vmem:[#allocation2 + $0x28] sm:$0x4]
    %s4786 = scalar_lea.vmem %s7, 1344
    %v4787 = vld [vmem:[%s4786] sm:$0xf]
    %v4788 = vld [vmem:[%s4786 + $0x4] sm:$0xf]
    %v4789 = vld [vmem:[%s4786 + $0x8] sm:$0xf]
    %v4790 = vld [vmem:[%s4786 + $0xc] sm:$0xf]
    %v4791 = vld [vmem:[%s4786 + $0x10] sm:$0xf]
    %v4792 = vld [vmem:[%s4786 + $0x14] sm:$0xf]
    %v4793 = vld [vmem:[%s4786 + $0x18] sm:$0xf]
    %v4794 = vld [vmem:[%s4786 + $0x1c] sm:$0xf]
    %v4796 = vunpack.c.l.b16 %v4785
    %v4797 = vpack.c.b16 %v4796, %v4796
    %v4798 = vrot.slane %v4797, 2
    %v4807 = vunpack.c.l.b16 %v4787
    %v4808 = vunpack.c.l.b16 %v4788
    %v4809 = vunpack.c.l.b16 %v4789
    %v4810 = vunpack.c.l.b16 %v4790
    %v4811 = vunpack.c.l.b16 %v4791
    %v4812 = vunpack.c.l.b16 %v4792
    %v4813 = vunpack.c.l.b16 %v4793
    %v4814 = vunpack.c.l.b16 %v4794
    %v4815 = vpack.c.b16 %v4808, %v4807
    %v4816 = vpack.c.b16 %v4810, %v4809
    %v4817 = vpack.c.b16 %v4812, %v4811
    %v4818 = vpack.c.b16 %v4814, %v4813
    %v4824 = vsel %vm1434, %v4798, 0
    %4826 = vmatprep.subr.bf16.mxu0 0
    %4827 = vmatpush1.bf16.msra.mxu0 0
    %4828 = vmatprep.subr.bf16.mxu0 0
    %4829 = vmatpush1.bf16.msra.mxu0 0
    %4830 = vmatprep.subr.bf16.mxu0 0
    %4831 = vmatpush1.bf16.msra.mxu0 0
    %4832 = vmatprep.subr.bf16.mxu0 0
    %4833 = vmatpush1.bf16.msra.mxu0 0
    %4834 = vmatprep.subr.bf16.mxu0 0
    %4835 = vmatpush1.bf16.msra.mxu0 %v4818
    %4836 = vmatprep.subr.bf16.mxu0 0
    %4837 = vmatpush1.bf16.msra.mxu0 %v4817
    %4838 = vmatprep.subr.bf16.mxu0 0
    %4839 = vmatpush1.bf16.msra.mxu0 %v4816
    %4840 = vmatprep.subr.bf16.mxu0 0
    %4841 = vmatpush1.bf16.msra.mxu0 %v4815
    %4842 = vmatprep.subr.bf16.mxu0 0
    %4843 = vmatpush2.bf16.msra.mxu0 0
    %4844 = vmatprep.subr.bf16.mxu0 0
    %4845 = vmatpush2.bf16.msra.mxu0 0
    %4846 = vmatprep.subr.bf16.mxu0 0
    %4847 = vmatpush2.bf16.msra.mxu0 0
    %4848 = vmatprep.subr.bf16.mxu0 0
    %4849 = vmatpush2.bf16.msra.mxu0 0
    %4850 = vmatprep.subr.bf16.mxu0 0
    %4851 = vmatpush2.bf16.msra.mxu0 0
    %4852 = vmatprep.subr.bf16.mxu0 0
    %4853 = vmatpush2.bf16.msra.mxu0 0
    %4854 = vmatprep.subr.bf16.mxu0 0
    %4855 = vmatpush2.bf16.msra.mxu0 0
    %4856 = vmatprep.subr.bf16.mxu0 0
    %4857 = vmatpush2.bf16.msra.mxu0 0
    %4858 = vmatprep.mubr.bf16.mxu0 0
    %4859 = vmatmul.mubr.bf16.gmra.mxu0 %v4824
    %v4860 = vpop.f32.mrf.mxu0
    %v4861 = vadd.f32 0.0, %v4860
    %v4862 = vpop.f32.mrf.mxu0
    %v4863 = vpop.f32.mrf.mxu0
    %v4864 = vpop.f32.mrf.mxu0
    %4865 = vdwg.mxu0
    %v4866 = vadd.f32 %v4784, %v4861
    %v4867 = vld [vmem:[#allocation2 + $0x28] sm:$0x8]
    %s4868 = scalar_lea.vmem %s7, 1376
    %v4869 = vld [vmem:[%s4868] sm:$0xf]
    %v4870 = vld [vmem:[%s4868 + $0x4] sm:$0xf]
    %v4871 = vld [vmem:[%s4868 + $0x8] sm:$0xf]
    %v4872 = vld [vmem:[%s4868 + $0xc] sm:$0xf]
    %v4873 = vld [vmem:[%s4868 + $0x10] sm:$0xf]
    %v4874 = vld [vmem:[%s4868 + $0x14] sm:$0xf]
    %v4875 = vld [vmem:[%s4868 + $0x18] sm:$0xf]
    %v4876 = vld [vmem:[%s4868 + $0x1c] sm:$0xf]
    %v4878 = vunpack.c.l.b16 %v4867
    %v4879 = vpack.c.b16 %v4878, %v4878
    %v4880 = vrot.slane %v4879, 3
    %v4889 = vunpack.c.l.b16 %v4869
    %v4890 = vunpack.c.l.b16 %v4870
    %v4891 = vunpack.c.l.b16 %v4871
    %v4892 = vunpack.c.l.b16 %v4872
    %v4893 = vunpack.c.l.b16 %v4873
    %v4894 = vunpack.c.l.b16 %v4874
    %v4895 = vunpack.c.l.b16 %v4875
    %v4896 = vunpack.c.l.b16 %v4876
    %v4897 = vpack.c.b16 %v4890, %v4889
    %v4898 = vpack.c.b16 %v4892, %v4891
    %v4899 = vpack.c.b16 %v4894, %v4893
    %v4900 = vpack.c.b16 %v4896, %v4895
    %v4906 = vsel %vm1434, %v4880, 0
    %4908 = vmatprep.subr.bf16.mxu0 0
    %4909 = vmatpush1.bf16.msra.mxu0 0
    %4910 = vmatprep.subr.bf16.mxu0 0
    %4911 = vmatpush1.bf16.msra.mxu0 0
    %4912 = vmatprep.subr.bf16.mxu0 0
    %4913 = vmatpush1.bf16.msra.mxu0 0
    %4914 = vmatprep.subr.bf16.mxu0 0
    %4915 = vmatpush1.bf16.msra.mxu0 0
    %4916 = vmatprep.subr.bf16.mxu0 0
    %4917 = vmatpush1.bf16.msra.mxu0 %v4900
    %4918 = vmatprep.subr.bf16.mxu0 0
    %4919 = vmatpush1.bf16.msra.mxu0 %v4899
    %4920 = vmatprep.subr.bf16.mxu0 0
    %4921 = vmatpush1.bf16.msra.mxu0 %v4898
    %4922 = vmatprep.subr.bf16.mxu0 0
    %4923 = vmatpush1.bf16.msra.mxu0 %v4897
    %4924 = vmatprep.subr.bf16.mxu0 0
    %4925 = vmatpush2.bf16.msra.mxu0 0
    %4926 = vmatprep.subr.bf16.mxu0 0
    %4927 = vmatpush2.bf16.msra.mxu0 0
    %4928 = vmatprep.subr.bf16.mxu0 0
    %4929 = vmatpush2.bf16.msra.mxu0 0
    %4930 = vmatprep.subr.bf16.mxu0 0
    %4931 = vmatpush2.bf16.msra.mxu0 0
    %4932 = vmatprep.subr.bf16.mxu0 0
    %4933 = vmatpush2.bf16.msra.mxu0 0
    %4934 = vmatprep.subr.bf16.mxu0 0
    %4935 = vmatpush2.bf16.msra.mxu0 0
    %4936 = vmatprep.subr.bf16.mxu0 0
    %4937 = vmatpush2.bf16.msra.mxu0 0
    %4938 = vmatprep.subr.bf16.mxu0 0
    %4939 = vmatpush2.bf16.msra.mxu0 0
    %4940 = vmatprep.mubr.bf16.mxu0 0
    %4941 = vmatmul.mubr.bf16.gmra.mxu0 %v4906
    %v4942 = vpop.f32.mrf.mxu0
    %v4943 = vadd.f32 0.0, %v4942
    %v4944 = vpop.f32.mrf.mxu0
    %v4945 = vpop.f32.mrf.mxu0
    %v4946 = vpop.f32.mrf.mxu0
    %4947 = vdwg.mxu0
    %v4948 = vadd.f32 %v4866, %v4943
    %v4949 = vld [vmem:[#allocation2 + $0x2c] sm:$0x1]
    %s4950 = scalar_lea.vmem %s7, 1408
    %v4951 = vld [vmem:[%s4950] sm:$0xf]
    %v4952 = vld [vmem:[%s4950 + $0x4] sm:$0xf]
    %v4953 = vld [vmem:[%s4950 + $0x8] sm:$0xf]
    %v4954 = vld [vmem:[%s4950 + $0xc] sm:$0xf]
    %v4955 = vld [vmem:[%s4950 + $0x10] sm:$0xf]
    %v4956 = vld [vmem:[%s4950 + $0x14] sm:$0xf]
    %v4957 = vld [vmem:[%s4950 + $0x18] sm:$0xf]
    %v4958 = vld [vmem:[%s4950 + $0x1c] sm:$0xf]
    %v4967 = vunpack.c.l.b16 %v4951
    %v4968 = vunpack.c.l.b16 %v4952
    %v4969 = vunpack.c.l.b16 %v4953
    %v4970 = vunpack.c.l.b16 %v4954
    %v4971 = vunpack.c.l.b16 %v4955
    %v4972 = vunpack.c.l.b16 %v4956
    %v4973 = vunpack.c.l.b16 %v4957
    %v4974 = vunpack.c.l.b16 %v4958
    %v4975 = vpack.c.b16 %v4968, %v4967
    %v4976 = vpack.c.b16 %v4970, %v4969
    %v4977 = vpack.c.b16 %v4972, %v4971
    %v4978 = vpack.c.b16 %v4974, %v4973
    %v4984 = vsel %vm1434, %v4949, 0
    %4986 = vmatprep.subr.bf16.mxu0 0
    %4987 = vmatpush1.bf16.msra.mxu0 0
    %4988 = vmatprep.subr.bf16.mxu0 0
    %4989 = vmatpush1.bf16.msra.mxu0 0
    %4990 = vmatprep.subr.bf16.mxu0 0
    %4991 = vmatpush1.bf16.msra.mxu0 0
    %4992 = vmatprep.subr.bf16.mxu0 0
    %4993 = vmatpush1.bf16.msra.mxu0 0
    %4994 = vmatprep.subr.bf16.mxu0 0
    %4995 = vmatpush1.bf16.msra.mxu0 %v4978
    %4996 = vmatprep.subr.bf16.mxu0 0
    %4997 = vmatpush1.bf16.msra.mxu0 %v4977
    %4998 = vmatprep.subr.bf16.mxu0 0
    %4999 = vmatpush1.bf16.msra.mxu0 %v4976
    %5000 = vmatprep.subr.bf16.mxu0 0
    %5001 = vmatpush1.bf16.msra.mxu0 %v4975
    %5002 = vmatprep.subr.bf16.mxu0 0
    %5003 = vmatpush2.bf16.msra.mxu0 0
    %5004 = vmatprep.subr.bf16.mxu0 0
    %5005 = vmatpush2.bf16.msra.mxu0 0
    %5006 = vmatprep.subr.bf16.mxu0 0
    %5007 = vmatpush2.bf16.msra.mxu0 0
    %5008 = vmatprep.subr.bf16.mxu0 0
    %5009 = vmatpush2.bf16.msra.mxu0 0
    %5010 = vmatprep.subr.bf16.mxu0 0
    %5011 = vmatpush2.bf16.msra.mxu0 0
    %5012 = vmatprep.subr.bf16.mxu0 0
    %5013 = vmatpush2.bf16.msra.mxu0 0
    %5014 = vmatprep.subr.bf16.mxu0 0
    %5015 = vmatpush2.bf16.msra.mxu0 0
    %5016 = vmatprep.subr.bf16.mxu0 0
    %5017 = vmatpush2.bf16.msra.mxu0 0
    %5018 = vmatprep.mubr.bf16.mxu0 0
    %5019 = vmatmul.mubr.bf16.gmra.mxu0 %v4984
    %v5020 = vpop.f32.mrf.mxu0
    %v5021 = vadd.f32 0.0, %v5020
    %v5022 = vpop.f32.mrf.mxu0
    %v5023 = vpop.f32.mrf.mxu0
    %v5024 = vpop.f32.mrf.mxu0
    %5025 = vdwg.mxu0
    %v5026 = vadd.f32 %v4948, %v5021
    %v5027 = vld [vmem:[#allocation2 + $0x2c] sm:$0x2]
    %s5028 = scalar_lea.vmem %s7, 1440
    %v5029 = vld [vmem:[%s5028] sm:$0xf]
    %v5030 = vld [vmem:[%s5028 + $0x4] sm:$0xf]
    %v5031 = vld [vmem:[%s5028 + $0x8] sm:$0xf]
    %v5032 = vld [vmem:[%s5028 + $0xc] sm:$0xf]
    %v5033 = vld [vmem:[%s5028 + $0x10] sm:$0xf]
    %v5034 = vld [vmem:[%s5028 + $0x14] sm:$0xf]
    %v5035 = vld [vmem:[%s5028 + $0x18] sm:$0xf]
    %v5036 = vld [vmem:[%s5028 + $0x1c] sm:$0xf]
    %v5038 = vunpack.c.l.b16 %v5027
    %v5039 = vpack.c.b16 %v5038, %v5038
    %v5040 = vrot.slane %v5039, 1
    %v5049 = vunpack.c.l.b16 %v5029
    %v5050 = vunpack.c.l.b16 %v5030
    %v5051 = vunpack.c.l.b16 %v5031
    %v5052 = vunpack.c.l.b16 %v5032
    %v5053 = vunpack.c.l.b16 %v5033
    %v5054 = vunpack.c.l.b16 %v5034
    %v5055 = vunpack.c.l.b16 %v5035
    %v5056 = vunpack.c.l.b16 %v5036
    %v5057 = vpack.c.b16 %v5050, %v5049
    %v5058 = vpack.c.b16 %v5052, %v5051
    %v5059 = vpack.c.b16 %v5054, %v5053
    %v5060 = vpack.c.b16 %v5056, %v5055
    %v5066 = vsel %vm1434, %v5040, 0
    %5068 = vmatprep.subr.bf16.mxu0 0
    %5069 = vmatpush1.bf16.msra.mxu0 0
    %5070 = vmatprep.subr.bf16.mxu0 0
    %5071 = vmatpush1.bf16.msra.mxu0 0
    %5072 = vmatprep.subr.bf16.mxu0 0
    %5073 = vmatpush1.bf16.msra.mxu0 0
    %5074 = vmatprep.subr.bf16.mxu0 0
    %5075 = vmatpush1.bf16.msra.mxu0 0
    %5076 = vmatprep.subr.bf16.mxu0 0
    %5077 = vmatpush1.bf16.msra.mxu0 %v5060
    %5078 = vmatprep.subr.bf16.mxu0 0
    %5079 = vmatpush1.bf16.msra.mxu0 %v5059
    %5080 = vmatprep.subr.bf16.mxu0 0
    %5081 = vmatpush1.bf16.msra.mxu0 %v5058
    %5082 = vmatprep.subr.bf16.mxu0 0
    %5083 = vmatpush1.bf16.msra.mxu0 %v5057
    %5084 = vmatprep.subr.bf16.mxu0 0
    %5085 = vmatpush2.bf16.msra.mxu0 0
    %5086 = vmatprep.subr.bf16.mxu0 0
    %5087 = vmatpush2.bf16.msra.mxu0 0
    %5088 = vmatprep.subr.bf16.mxu0 0
    %5089 = vmatpush2.bf16.msra.mxu0 0
    %5090 = vmatprep.subr.bf16.mxu0 0
    %5091 = vmatpush2.bf16.msra.mxu0 0
    %5092 = vmatprep.subr.bf16.mxu0 0
    %5093 = vmatpush2.bf16.msra.mxu0 0
    %5094 = vmatprep.subr.bf16.mxu0 0
    %5095 = vmatpush2.bf16.msra.mxu0 0
    %5096 = vmatprep.subr.bf16.mxu0 0
    %5097 = vmatpush2.bf16.msra.mxu0 0
    %5098 = vmatprep.subr.bf16.mxu0 0
    %5099 = vmatpush2.bf16.msra.mxu0 0
    %5100 = vmatprep.mubr.bf16.mxu0 0
    %5101 = vmatmul.mubr.bf16.gmra.mxu0 %v5066
    %v5102 = vpop.f32.mrf.mxu0
    %v5103 = vadd.f32 0.0, %v5102
    %v5104 = vpop.f32.mrf.mxu0
    %v5105 = vpop.f32.mrf.mxu0
    %v5106 = vpop.f32.mrf.mxu0
    %5107 = vdwg.mxu0
    %v5108 = vadd.f32 %v5026, %v5103
    %v5109 = vld [vmem:[#allocation2 + $0x2c] sm:$0x4]
    %s5110 = scalar_lea.vmem %s7, 1472
    %v5111 = vld [vmem:[%s5110] sm:$0xf]
    %v5112 = vld [vmem:[%s5110 + $0x4] sm:$0xf]
    %v5113 = vld [vmem:[%s5110 + $0x8] sm:$0xf]
    %v5114 = vld [vmem:[%s5110 + $0xc] sm:$0xf]
    %v5115 = vld [vmem:[%s5110 + $0x10] sm:$0xf]
    %v5116 = vld [vmem:[%s5110 + $0x14] sm:$0xf]
    %v5117 = vld [vmem:[%s5110 + $0x18] sm:$0xf]
    %v5118 = vld [vmem:[%s5110 + $0x1c] sm:$0xf]
    %v5120 = vunpack.c.l.b16 %v5109
    %v5121 = vpack.c.b16 %v5120, %v5120
    %v5122 = vrot.slane %v5121, 2
    %v5131 = vunpack.c.l.b16 %v5111
    %v5132 = vunpack.c.l.b16 %v5112
    %v5133 = vunpack.c.l.b16 %v5113
    %v5134 = vunpack.c.l.b16 %v5114
    %v5135 = vunpack.c.l.b16 %v5115
    %v5136 = vunpack.c.l.b16 %v5116
    %v5137 = vunpack.c.l.b16 %v5117
    %v5138 = vunpack.c.l.b16 %v5118
    %v5139 = vpack.c.b16 %v5132, %v5131
    %v5140 = vpack.c.b16 %v5134, %v5133
    %v5141 = vpack.c.b16 %v5136, %v5135
    %v5142 = vpack.c.b16 %v5138, %v5137
    %v5148 = vsel %vm1434, %v5122, 0
    %5150 = vmatprep.subr.bf16.mxu0 0
    %5151 = vmatpush1.bf16.msra.mxu0 0
    %5152 = vmatprep.subr.bf16.mxu0 0
    %5153 = vmatpush1.bf16.msra.mxu0 0
    %5154 = vmatprep.subr.bf16.mxu0 0
    %5155 = vmatpush1.bf16.msra.mxu0 0
    %5156 = vmatprep.subr.bf16.mxu0 0
    %5157 = vmatpush1.bf16.msra.mxu0 0
    %5158 = vmatprep.subr.bf16.mxu0 0
    %5159 = vmatpush1.bf16.msra.mxu0 %v5142
    %5160 = vmatprep.subr.bf16.mxu0 0
    %5161 = vmatpush1.bf16.msra.mxu0 %v5141
    %5162 = vmatprep.subr.bf16.mxu0 0
    %5163 = vmatpush1.bf16.msra.mxu0 %v5140
    %5164 = vmatprep.subr.bf16.mxu0 0
    %5165 = vmatpush1.bf16.msra.mxu0 %v5139
    %5166 = vmatprep.subr.bf16.mxu0 0
    %5167 = vmatpush2.bf16.msra.mxu0 0
    %5168 = vmatprep.subr.bf16.mxu0 0
    %5169 = vmatpush2.bf16.msra.mxu0 0
    %5170 = vmatprep.subr.bf16.mxu0 0
    %5171 = vmatpush2.bf16.msra.mxu0 0
    %5172 = vmatprep.subr.bf16.mxu0 0
    %5173 = vmatpush2.bf16.msra.mxu0 0
    %5174 = vmatprep.subr.bf16.mxu0 0
    %5175 = vmatpush2.bf16.msra.mxu0 0
    %5176 = vmatprep.subr.bf16.mxu0 0
    %5177 = vmatpush2.bf16.msra.mxu0 0
    %5178 = vmatprep.subr.bf16.mxu0 0
    %5179 = vmatpush2.bf16.msra.mxu0 0
    %5180 = vmatprep.subr.bf16.mxu0 0
    %5181 = vmatpush2.bf16.msra.mxu0 0
    %5182 = vmatprep.mubr.bf16.mxu0 0
    %5183 = vmatmul.mubr.bf16.gmra.mxu0 %v5148
    %v5184 = vpop.f32.mrf.mxu0
    %v5185 = vadd.f32 0.0, %v5184
    %v5186 = vpop.f32.mrf.mxu0
    %v5187 = vpop.f32.mrf.mxu0
    %v5188 = vpop.f32.mrf.mxu0
    %5189 = vdwg.mxu0
    %v5190 = vadd.f32 %v5108, %v5185
    %v5191 = vld [vmem:[#allocation2 + $0x2c] sm:$0x8]
    %s5192 = scalar_lea.vmem %s7, 1504
    %v5193 = vld [vmem:[%s5192] sm:$0xf]
    %v5194 = vld [vmem:[%s5192 + $0x4] sm:$0xf]
    %v5195 = vld [vmem:[%s5192 + $0x8] sm:$0xf]
    %v5196 = vld [vmem:[%s5192 + $0xc] sm:$0xf]
    %v5197 = vld [vmem:[%s5192 + $0x10] sm:$0xf]
    %v5198 = vld [vmem:[%s5192 + $0x14] sm:$0xf]
    %v5199 = vld [vmem:[%s5192 + $0x18] sm:$0xf]
    %v5200 = vld [vmem:[%s5192 + $0x1c] sm:$0xf]
    %v5202 = vunpack.c.l.b16 %v5191
    %v5203 = vpack.c.b16 %v5202, %v5202
    %v5204 = vrot.slane %v5203, 3
    %v5213 = vunpack.c.l.b16 %v5193
    %v5214 = vunpack.c.l.b16 %v5194
    %v5215 = vunpack.c.l.b16 %v5195
    %v5216 = vunpack.c.l.b16 %v5196
    %v5217 = vunpack.c.l.b16 %v5197
    %v5218 = vunpack.c.l.b16 %v5198
    %v5219 = vunpack.c.l.b16 %v5199
    %v5220 = vunpack.c.l.b16 %v5200
    %v5221 = vpack.c.b16 %v5214, %v5213
    %v5222 = vpack.c.b16 %v5216, %v5215
    %v5223 = vpack.c.b16 %v5218, %v5217
    %v5224 = vpack.c.b16 %v5220, %v5219
    %v5230 = vsel %vm1434, %v5204, 0
    %5232 = vmatprep.subr.bf16.mxu0 0
    %5233 = vmatpush1.bf16.msra.mxu0 0
    %5234 = vmatprep.subr.bf16.mxu0 0
    %5235 = vmatpush1.bf16.msra.mxu0 0
    %5236 = vmatprep.subr.bf16.mxu0 0
    %5237 = vmatpush1.bf16.msra.mxu0 0
    %5238 = vmatprep.subr.bf16.mxu0 0
    %5239 = vmatpush1.bf16.msra.mxu0 0
    %5240 = vmatprep.subr.bf16.mxu0 0
    %5241 = vmatpush1.bf16.msra.mxu0 %v5224
    %5242 = vmatprep.subr.bf16.mxu0 0
    %5243 = vmatpush1.bf16.msra.mxu0 %v5223
    %5244 = vmatprep.subr.bf16.mxu0 0
    %5245 = vmatpush1.bf16.msra.mxu0 %v5222
    %5246 = vmatprep.subr.bf16.mxu0 0
    %5247 = vmatpush1.bf16.msra.mxu0 %v5221
    %5248 = vmatprep.subr.bf16.mxu0 0
    %5249 = vmatpush2.bf16.msra.mxu0 0
    %5250 = vmatprep.subr.bf16.mxu0 0
    %5251 = vmatpush2.bf16.msra.mxu0 0
    %5252 = vmatprep.subr.bf16.mxu0 0
    %5253 = vmatpush2.bf16.msra.mxu0 0
    %5254 = vmatprep.subr.bf16.mxu0 0
    %5255 = vmatpush2.bf16.msra.mxu0 0
    %5256 = vmatprep.subr.bf16.mxu0 0
    %5257 = vmatpush2.bf16.msra.mxu0 0
    %5258 = vmatprep.subr.bf16.mxu0 0
    %5259 = vmatpush2.bf16.msra.mxu0 0
    %5260 = vmatprep.subr.bf16.mxu0 0
    %5261 = vmatpush2.bf16.msra.mxu0 0
    %5262 = vmatprep.subr.bf16.mxu0 0
    %5263 = vmatpush2.bf16.msra.mxu0 0
    %5264 = vmatprep.mubr.bf16.mxu0 0
    %5265 = vmatmul.mubr.bf16.gmra.mxu0 %v5230
    %v5266 = vpop.f32.mrf.mxu0
    %v5267 = vadd.f32 0.0, %v5266
    %v5268 = vpop.f32.mrf.mxu0
    %v5269 = vpop.f32.mrf.mxu0
    %v5270 = vpop.f32.mrf.mxu0
    %5271 = vdwg.mxu0
    %v5272 = vadd.f32 %v5190, %v5267
    %v5273 = vld [vmem:[#allocation2 + $0x30] sm:$0x1]
    %s5274 = scalar_lea.vmem %s7, 1536
    %v5275 = vld [vmem:[%s5274] sm:$0xf]
    %v5276 = vld [vmem:[%s5274 + $0x4] sm:$0xf]
    %v5277 = vld [vmem:[%s5274 + $0x8] sm:$0xf]
    %v5278 = vld [vmem:[%s5274 + $0xc] sm:$0xf]
    %v5279 = vld [vmem:[%s5274 + $0x10] sm:$0xf]
    %v5280 = vld [vmem:[%s5274 + $0x14] sm:$0xf]
    %v5281 = vld [vmem:[%s5274 + $0x18] sm:$0xf]
    %v5282 = vld [vmem:[%s5274 + $0x1c] sm:$0xf]
    %v5291 = vunpack.c.l.b16 %v5275
    %v5292 = vunpack.c.l.b16 %v5276
    %v5293 = vunpack.c.l.b16 %v5277
    %v5294 = vunpack.c.l.b16 %v5278
    %v5295 = vunpack.c.l.b16 %v5279
    %v5296 = vunpack.c.l.b16 %v5280
    %v5297 = vunpack.c.l.b16 %v5281
    %v5298 = vunpack.c.l.b16 %v5282
    %v5299 = vpack.c.b16 %v5292, %v5291
    %v5300 = vpack.c.b16 %v5294, %v5293
    %v5301 = vpack.c.b16 %v5296, %v5295
    %v5302 = vpack.c.b16 %v5298, %v5297
    %v5308 = vsel %vm1434, %v5273, 0
    %5310 = vmatprep.subr.bf16.mxu0 0
    %5311 = vmatpush1.bf16.msra.mxu0 0
    %5312 = vmatprep.subr.bf16.mxu0 0
    %5313 = vmatpush1.bf16.msra.mxu0 0
    %5314 = vmatprep.subr.bf16.mxu0 0
    %5315 = vmatpush1.bf16.msra.mxu0 0
    %5316 = vmatprep.subr.bf16.mxu0 0
    %5317 = vmatpush1.bf16.msra.mxu0 0
    %5318 = vmatprep.subr.bf16.mxu0 0
    %5319 = vmatpush1.bf16.msra.mxu0 %v5302
    %5320 = vmatprep.subr.bf16.mxu0 0
    %5321 = vmatpush1.bf16.msra.mxu0 %v5301
    %5322 = vmatprep.subr.bf16.mxu0 0
    %5323 = vmatpush1.bf16.msra.mxu0 %v5300
    %5324 = vmatprep.subr.bf16.mxu0 0
    %5325 = vmatpush1.bf16.msra.mxu0 %v5299
    %5326 = vmatprep.subr.bf16.mxu0 0
    %5327 = vmatpush2.bf16.msra.mxu0 0
    %5328 = vmatprep.subr.bf16.mxu0 0
    %5329 = vmatpush2.bf16.msra.mxu0 0
    %5330 = vmatprep.subr.bf16.mxu0 0
    %5331 = vmatpush2.bf16.msra.mxu0 0
    %5332 = vmatprep.subr.bf16.mxu0 0
    %5333 = vmatpush2.bf16.msra.mxu0 0
    %5334 = vmatprep.subr.bf16.mxu0 0
    %5335 = vmatpush2.bf16.msra.mxu0 0
    %5336 = vmatprep.subr.bf16.mxu0 0
    %5337 = vmatpush2.bf16.msra.mxu0 0
    %5338 = vmatprep.subr.bf16.mxu0 0
    %5339 = vmatpush2.bf16.msra.mxu0 0
    %5340 = vmatprep.subr.bf16.mxu0 0
    %5341 = vmatpush2.bf16.msra.mxu0 0
    %5342 = vmatprep.mubr.bf16.mxu0 0
    %5343 = vmatmul.mubr.bf16.gmra.mxu0 %v5308
    %v5344 = vpop.f32.mrf.mxu0
    %v5345 = vadd.f32 0.0, %v5344
    %v5346 = vpop.f32.mrf.mxu0
    %v5347 = vpop.f32.mrf.mxu0
    %v5348 = vpop.f32.mrf.mxu0
    %5349 = vdwg.mxu0
    %v5350 = vadd.f32 %v5272, %v5345
    %v5351 = vld [vmem:[%s8] sm:$0x1]
    %v5353 = vlaneseq
    %v5354 = vshrl.u32 %v5353, 7
    %v5355 = vsub.s32 0, %v5354
    %v5356 = vrot.slane %v5351, %v5355
    %v5358 = vadd.f32 %v5350, %v5356
    %v5359 = vmax.f32 %v5358, 0.0
    %v5360 = vpack.c.bf16 %v5359, %v5359
    %v5361 = vld [vmem:[#allocation6] sm:$0xf]
    %v5362 = vld [vmem:[#allocation6 + $0x4] sm:$0xf]
    %v5363 = vld [vmem:[#allocation6 + $0x8] sm:$0xf]
    %v5364 = vld [vmem:[#allocation6 + $0xc] sm:$0xf]
    %v5365 = vld [vmem:[#allocation6 + $0x10] sm:$0xf]
    %v5366 = vld [vmem:[#allocation6 + $0x14] sm:$0xf]
    %v5367 = vld [vmem:[#allocation6 + $0x18] sm:$0xf]
    %v5368 = vld [vmem:[#allocation6 + $0x1c] sm:$0xf]
    %v5369 = vld [vmem:[#allocation6 + $0x20] sm:$0xf]
    %v5370 = vld [vmem:[#allocation6 + $0x24] sm:$0xf]
    %v5371 = vld [vmem:[#allocation6 + $0x28] sm:$0xf]
    %v5372 = vld [vmem:[#allocation6 + $0x2c] sm:$0xf]
    %v5373 = vld [vmem:[#allocation6 + $0x30] sm:$0xf]
    %v5374 = vld [vmem:[#allocation6 + $0x34] sm:$0xf]
    %v5375 = vld [vmem:[#allocation6 + $0x38] sm:$0xf]
    %v5376 = vld [vmem:[#allocation6 + $0x3c] sm:$0xf]
    %v5377 = vld [vmem:[%s10] sm:$0x1]
    %v5379 = vlaneseq
    %v5380 = vshrl.u32 %v5379, 7
    %v5381 = vsub.s32 0, %v5380
    %v5382 = vrot.slane %v5377, %v5381
    %v5400 = vunpack.c.l.b16 %v5361
    %v5401 = vunpack.c.l.b16 %v5362
    %v5402 = vunpack.c.l.b16 %v5363
    %v5403 = vunpack.c.l.b16 %v5364
    %v5404 = vunpack.c.l.b16 %v5365
    %v5405 = vunpack.c.l.b16 %v5366
    %v5406 = vunpack.c.l.b16 %v5367
    %v5407 = vunpack.c.l.b16 %v5368
    %v5408 = vunpack.c.l.b16 %v5369
    %v5409 = vunpack.c.l.b16 %v5370
    %v5410 = vunpack.c.l.b16 %v5371
    %v5411 = vunpack.c.l.b16 %v5372
    %v5412 = vunpack.c.l.b16 %v5373
    %v5413 = vunpack.c.l.b16 %v5374
    %v5414 = vunpack.c.l.b16 %v5375
    %v5415 = vunpack.c.l.b16 %v5376
    %v5416 = vpack.c.b16 %v5401, %v5400
    %v5417 = vpack.c.b16 %v5403, %v5402
    %v5418 = vpack.c.b16 %v5405, %v5404
    %v5419 = vpack.c.b16 %v5407, %v5406
    %v5420 = vpack.c.b16 %v5409, %v5408
    %v5421 = vpack.c.b16 %v5411, %v5410
    %v5422 = vpack.c.b16 %v5413, %v5412
    %v5423 = vpack.c.b16 %v5415, %v5414
    %5432 = vmatprep.subr.bf16.mxu0 0
    %5433 = vmatpush1.bf16.msra.mxu0 %v5423
    %5434 = vmatprep.subr.bf16.mxu0 0
    %5435 = vmatpush1.bf16.msra.mxu0 %v5422
    %5436 = vmatprep.subr.bf16.mxu0 0
    %5437 = vmatpush1.bf16.msra.mxu0 %v5421
    %5438 = vmatprep.subr.bf16.mxu0 0
    %5439 = vmatpush1.bf16.msra.mxu0 %v5420
    %5440 = vmatprep.subr.bf16.mxu0 0
    %5441 = vmatpush1.bf16.msra.mxu0 %v5419
    %5442 = vmatprep.subr.bf16.mxu0 0
    %5443 = vmatpush1.bf16.msra.mxu0 %v5418
    %5444 = vmatprep.subr.bf16.mxu0 0
    %5445 = vmatpush1.bf16.msra.mxu0 %v5417
    %5446 = vmatprep.subr.bf16.mxu0 0
    %5447 = vmatpush1.bf16.msra.mxu0 %v5416
    %5448 = vmatprep.subr.bf16.mxu0 0
    %5449 = vmatpush2.bf16.msra.mxu0 0
    %5450 = vmatprep.subr.bf16.mxu0 0
    %5451 = vmatpush2.bf16.msra.mxu0 0
    %5452 = vmatprep.subr.bf16.mxu0 0
    %5453 = vmatpush2.bf16.msra.mxu0 0
    %5454 = vmatprep.subr.bf16.mxu0 0
    %5455 = vmatpush2.bf16.msra.mxu0 0
    %5456 = vmatprep.subr.bf16.mxu0 0
    %5457 = vmatpush2.bf16.msra.mxu0 0
    %5458 = vmatprep.subr.bf16.mxu0 0
    %5459 = vmatpush2.bf16.msra.mxu0 0
    %5460 = vmatprep.subr.bf16.mxu0 0
    %5461 = vmatpush2.bf16.msra.mxu0 0
    %5462 = vmatprep.subr.bf16.mxu0 0
    %5463 = vmatpush2.bf16.msra.mxu0 0
    %5464 = vmatprep.mubr.bf16.mxu0 0
    %5465 = vmatmul.mubr.bf16.gmra.mxu0 %v5360
    %v5466 = vpop.f32.mrf.mxu0
    %v5467 = vadd.f32 %v5382, %v5466
    %v5468 = vpop.f32.mrf.mxu0
    %v5469 = vpop.f32.mrf.mxu0
    %v5470 = vpop.f32.mrf.mxu0
    %5471 = vdwg.mxu0
    %5472 = vst [vmem:[#allocation8] sm:$0x3] %v5467
    // Predicated region
    $region54: #{net_forward.1} parent=1 // pred_check
      _
    $region55: #{net_forward.1} parent=1 // pred_check_branch
      %5474 = sbr.rel (0) target = $region57
    $region56: #{net_forward.1} parent=1 // pred_region
      %s5476 = ssub.s32 32, 32
      %5477 = vsyncadd [#allocation5], %s5476
      %s5479 = sshll.u32 [#allocation8], 4
      %s5480 = int_to_ptr.vmem [resolvable:$true] %s5479
      %5482 = dma.vmem_to_hbm [thread:$0]  %s5480, 32, %s11, [#allocation5]
    $region57: #{net_forward.1} parent=1 // pred_fallthru
      _
    // Predicated region
    $region58: #{net_forward.1} parent=1 // pred_check
      _
    $region59: #{net_forward.1} parent=1 // pred_check_branch
      %5484 = sbr.rel (0) target = $region61
    $region60: #{net_forward.1} parent=1 // pred_region
      %5485 = dma.done [#allocation5], 32
    $region61: #{net_forward.1} parent=1 // pred_fallthru
      _
    %5486 = vsyncpa [#allocation4], 1
    %5487 = vsyncpa [#allocation7], 1
    %5488 = vsyncpa [#allocation5], 1

</llo_original>
